<compile_context>
chip_gen: v6e
topology: v6e:2x2x1
jax: 0.10.0
libtpu: 0.0.40
codegen_flags: <defaults>
</compile_context>

<pallas_src>
import jax
import jax.numpy as jnp
from jax.experimental import pallas as pl
from jax.experimental.pallas import tpu as pltpu

# 3x3 neighborhood offsets (dy, dx); the same ordering is used for the stacked
# conv weights, the validity masks and the in-kernel tap loops.
OFFSETS = tuple((dy, dx) for dy in (-1, 0, 1) for dx in (-1, 0, 1))


# ----------------------------------------------------------------------------
# Host-side constant builders (interp matrix, conv masks, pooling weights)
# ----------------------------------------------------------------------------
def bilinear_matrix(out_size, in_size):
    """Row-interpolation matrix matching F.interpolate(align_corners=True)."""
    if in_size == 1:
        return jnp.ones((out_size, 1), jnp.float32)
    src = jnp.arange(out_size, dtype=jnp.float32) * (in_size - 1) / (out_size - 1)
    i0 = jnp.clip(jnp.floor(src).astype(jnp.int32), 0, in_size - 2)
    frac = src - i0.astype(jnp.float32)
    r = jnp.zeros((out_size, in_size), jnp.float32)
    r = r.at[jnp.arange(out_size), i0].add(1.0 - frac)
    r = r.at[jnp.arange(out_size), i0 + 1].add(frac)
    return r


def interp_matrix(S, h, w):
    """(h*w, S*S) matrix M with (x_flat @ M)[c, s*S+t] = bilinear upsample."""
    rh = bilinear_matrix(S, h)          # (S, h)
    rw = bilinear_matrix(S, w)          # (S, w)
    m = jnp.einsum('si,tj->ijst', rh, rw)
    return m.reshape(h * w, S * S)


def conv_offset_masks(S, Bt):
    """(9, 1, Bt*S*S) per-tap validity masks, tiled over the Bt lane-packed samples."""
    n = jnp.arange(S * S)
    si = n // S
    ti = n % S
    masks = []
    for dy, dx in OFFSETS:
        valid = ((si + dy >= 0) & (si + dy < S) & (ti + dx >= 0) & (ti + dx < S))
        masks.append(jnp.tile(valid.astype(jnp.float32), (Bt,)).reshape(1, Bt * S * S))
    return jnp.stack(masks, axis=0)


def pool_weights(S, h, w):
    """(h*w, 1) weights s.t. weighted sum of x == GAP(bilinear_upsample(x))."""
    rh = bilinear_matrix(S, h)
    rw = bilinear_matrix(S, w)
    a = jnp.sum(rh, axis=0) / float(S)  # (h,)
    b = jnp.sum(rw, axis=0) / float(S)  # (w,)
    return (a[:, None] * b[None, :]).reshape(h * w, 1)


def stack_conv_weight_rows(w_oihw):
    """(Cout, Cin, 3, 3) -> (9*Cout, Cin); row block k holds tap OFFSETS[k]."""
    taps = [w_oihw[:, :, dy + 1, dx + 1] for dy, dx in OFFSETS]
    return jnp.concatenate(taps, axis=0)


def _pick_batch_tile(B, max_bt=8):
    """Largest divisor of B that is <= max_bt (samples per decoder grid step)."""
    bt = 1
    for cand in range(1, min(B, max_bt) + 1):
        if B % cand == 0:
            bt = cand
    return bt


# ----------------------------------------------------------------------------
# In-kernel helper: static lane shift with zero fill
# (masks zero every position whose shift leaves the sample, so this equals the
#  circular pltpu.roll variant; kept as slice+concat for guaranteed semantics)
# ----------------------------------------------------------------------------
def _shift_lanes(x, off):
    """y[:, n] = x[:, n + off] (zero-filled at the flat ends); off is static."""
    if off == 0:
        return x
    rows = x.shape[0]
    z = jnp.zeros((rows, abs(off)), x.dtype)
    if off > 0:
        return jnp.concatenate([x[:, off:], z], axis=1)
    return jnp.concatenate([z, x[:, :off]], axis=1)


# ----------------------------------------------------------------------------
# Kernel 1: fused local decoder
#   grid = (2 passes, nbt batch tiles of Bt samples)
#   pass 0: (W1_stacked @ x) @ interp -> tap slabs -> shift/mask/accumulate
#           -> conv1 cached in VMEM + BN batch-stat accumulation
#   pass 1: BN+ReLU on cached conv1 -> tap-fused conv2 + bias -> softplus BCE
#           against the fused _image_restore target -> scalar loss.
# ----------------------------------------------------------------------------
def _make_decoder_kernel(S, B, Bt, hidden, nbt):
    S2 = S * S
    L = Bt * S2
    inv_bn = 1.0 / float(B * S2)            # BN mean/var denominator
    inv_loss = 1.0 / float(B * 3 * S2)      # BCE mean denominator

    def kernel(x_ref, img_ref, interp_ref, masks_ref, w1_ref, gamma_ref, beta_ref,
               w2_ref, b2_ref, std_ref, mean_ref, loss_ref,
               cache_ref, sum_ref, sq_ref, lacc_ref):
        p = pl.program_id(0)    # pass index (0: stats, 1: apply)
        bt = pl.program_id(1)   # batch-tile index

        @pl.when((p == 0) & (bt == 0))
        def _init():
            sum_ref[...] = jnp.zeros_like(sum_ref)
            sq_ref[...] = jnp.zeros_like(sq_ref)
            lacc_ref[...] = jnp.zeros_like(lacc_ref)

        @pl.when(p == 0)
        def _pass0():
            interp = interp_ref[...]          # (hw, S2)
            w1 = w1_ref[...]                  # (9*hidden, C)
            masks = masks_ref[...]            # (9, 1, L)
            parts = []
            for b in range(Bt):
                # upsample folded into conv1: (9*hidden, C) @ (C, hw) @ (hw, S2)
                mid = jnp.dot(w1, x_ref[b], preferred_element_type=jnp.float32)
                taps = jnp.dot(mid, interp, preferred_element_type=jnp.float32)
                acc = jnp.zeros((hidden, S2), jnp.float32)
                for k, (dy, dx) in enumerate(OFFSETS):
                    off = dy * S + dx
                    slab = taps[k * hidden:(k + 1) * hidden, :]
                    acc = acc + _shift_lanes(slab, off) * masks[k, :, :S2]
                parts.append(acc)
            conv1 = jnp.concatenate(parts, axis=1) if Bt > 1 else parts[0]  # (hidden, L)

            cache_ref[bt] = conv1                                   # reuse in pass 1
            sum_ref[...] += jnp.sum(conv1, axis=1, keepdims=True)
            sq_ref[...] += jnp.sum(conv1 * conv1, axis=1, keepdims=True)

        @pl.when(p == 1)
        def _pass1():
            conv1 = cache_ref[bt]                                   # (hidden, L)
            mu = sum_ref[...] * inv_bn
            var = sq_ref[...] * inv_bn - mu * mu                    # biased, like PyTorch BN
            h1 = (conv1 - mu) * jax.lax.rsqrt(var + 1e-5)
            h1 = jnp.maximum(h1 * gamma_ref[...] + beta_ref[...], 0.0)

            # conv2 (3x3, hidden -> 3, pad=1): one tap-stacked matmul + 9 slab shifts
            taps2 = jnp.dot(w2_ref[...], h1, preferred_element_type=jnp.float32)  # (27, L)
            masks = masks_ref[...]
            conv2 = jnp.zeros((3, L), jnp.float32) + b2_ref[...]
            for k, (dy, dx) in enumerate(OFFSETS):
                off = dy * S + dx
                slab = taps2[k * 3:(k + 1) * 3, :]
                conv2 = conv2 + _shift_lanes(slab, off) * masks[k]

            # fused _image_restore target: img * std + mean (per channel)
            tgt = img_ref[0] * std_ref[...] + mean_ref[...]          # (3, L)

            # BCE(sigmoid(conv2), tgt) in softplus form; clamp matches PyTorch's
            # BCELoss log clamp at -100.
            sp = jnp.maximum(conv2, 0.0) + jnp.log(1.0 + jnp.exp(-jnp.abs(conv2)))
            bce = (tgt * jnp.minimum(sp - conv2, 100.0)
                   + (1.0 - tgt) * jnp.minimum(sp, 100.0))
            lacc_ref[...] += jnp.sum(bce, keepdims=True)

            @pl.when(bt == nbt - 1)
            def _final():
                loss_ref[...] = lacc_ref[...] * inv_loss

    return kernel


def decoder_loss(x_flat, img_re, interp, masks, w1s, gamma, beta, w2s, b2,
                 std_col, mean_col, S, Bt):
    B, C, hw = x_flat.shape
    hidden = gamma.shape[0]
    S2 = S * S
    L = Bt * S2
    nbt = B // Bt
    return pl.pallas_call(
        _make_decoder_kernel(S, B, Bt, hidden, nbt),
        out_shape=jax.ShapeDtypeStruct((1, 1), jnp.float32),
        grid=(2, nbt),
        in_specs=[
            # x: real block only in pass 0; pinned to block 0 in pass 1 (no refetch)
            pl.BlockSpec((Bt, C, hw), lambda p, b: ((1 - p) * b, 0, 0)),
            # img: real block only in pass 1; pinned to block 0 in pass 0
            pl.BlockSpec((1, 3, L), lambda p, b: (p * b, 0, 0)),
            pl.BlockSpec((hw, S2), lambda p, b: (0, 0)),            # interp matrix
            pl.BlockSpec((9, 1, L), lambda p, b: (0, 0, 0)),        # tap masks (tiled)
            pl.BlockSpec((9 * hidden, C), lambda p, b: (0, 0)),     # conv1 weights (tap-stacked)
            pl.BlockSpec((hidden, 1), lambda p, b: (0, 0)),         # BN gamma
            pl.BlockSpec((hidden, 1), lambda p, b: (0, 0)),         # BN beta
            pl.BlockSpec((9 * 3, hidden), lambda p, b: (0, 0)),     # conv2 weights (tap-stacked)
            pl.BlockSpec((3, 1), lambda p, b: (0, 0)),              # conv2 bias
            pl.BlockSpec((3, 1), lambda p, b: (0, 0)),              # mask_std
            pl.BlockSpec((3, 1), lambda p, b: (0, 0)),              # mask_mean
        ],
        out_specs=pl.BlockSpec((1, 1), lambda p, b: (0, 0)),
        scratch_shapes=[
            pltpu.VMEM((nbt, hidden, L), jnp.float32),   # conv1 cache (pass0 -> pass1)
            pltpu.VMEM((hidden, 1), jnp.float32),        # BN sum
            pltpu.VMEM((hidden, 1), jnp.float32),        # BN sum of squares
            pltpu.VMEM((1, 1), jnp.float32),             # BCE accumulator
        ],
        compiler_params=pltpu.CompilerParams(
            dimension_semantics=("arbitrary", "arbitrary")),
    )(x_flat, img_re, interp, masks, w1s, gamma, beta, w2s, b2, std_col, mean_col)


# ----------------------------------------------------------------------------
# Kernel 2: aux classifier head, one grid step over the whole batch.
#   Interpolation-weighted pooling of the ORIGINAL NCHW-flat feature
#   (== GAP of the align_corners bilinear upsample), linear layer, cross-entropy.
# ----------------------------------------------------------------------------
def _make_head_kernel(B):
    inv_b = 1.0 / float(B)

    def kernel(x_ref, pw_ref, w_ref, bias_ref, y_ref, logits_ref, loss_ref):
        pooled = jnp.sum(x_ref[...] * pw_ref[...], axis=2)                 # (B, C)
        logits = jnp.dot(pooled, w_ref[...],
                         preferred_element_type=jnp.float32) + bias_ref[...]  # (B, K)
        logits_ref[...] = logits

        m = jnp.max(logits, axis=1, keepdims=True)
        lse = m + jnp.log(jnp.sum(jnp.exp(logits - m), axis=1, keepdims=True))
        picked = jnp.sum(logits * y_ref[...], axis=1, keepdims=True)
        loss_ref[...] = jnp.sum(lse - picked, keepdims=True) * inv_b

    return kernel


def classifier_head(x_flat, pool_w, w, bias, y_onehot):
    B, C, hw = x_flat.shape
    K = w.shape[1]
    return pl.pallas_call(
        _make_head_kernel(B),
        out_shape=(jax.ShapeDtypeStruct((B, K), jnp.float32),
                   jax.ShapeDtypeStruct((1, 1), jnp.float32)),
        grid=(1,),
        in_specs=[
            pl.BlockSpec((B, C, hw), lambda i: (0, 0, 0)),   # NCHW-flat feature (no transpose)
            pl.BlockSpec((1, 1, hw), lambda i: (0, 0, 0)),   # pooling weights
            pl.BlockSpec((C, K), lambda i: (0, 0)),          # linear weight
            pl.BlockSpec((1, K), lambda i: (0, 0)),          # linear bias
            pl.BlockSpec((B, K), lambda i: (0, 0)),          # one-hot targets
        ],
        out_specs=(pl.BlockSpec((B, K), lambda i: (0, 0)),   # logits (single lane-dense store)
                   pl.BlockSpec((1, 1), lambda i: (0, 0))),  # loss
        compiler_params=pltpu.CompilerParams(dimension_semantics=("arbitrary",)),
    )(x_flat, pool_w, w, bias, y_onehot)


# ----------------------------------------------------------------------------
# Parameter init (stand-in for the external Decoder / resnet18_head modules)
# ----------------------------------------------------------------------------
def init_params(key, wide_list, infopro_config, class_num, aux_net_widen=1):
    modules = []
    hidden = 12 * aux_net_widen
    for mi, _ in enumerate(infopro_config):
        c = wide_list[mi]
        key, k1, k2, k3, k4 = jax.random.split(key, 5)
        modules.append(dict(
            dec_w1=0.1 * jax.random.normal(k1, (hidden, c, 3, 3), jnp.float32),
            dec_gamma=jnp.ones((hidden, 1), jnp.float32),
            dec_beta=jnp.zeros((hidden, 1), jnp.float32),
            dec_w2=0.1 * jax.random.normal(k2, (3, hidden, 3, 3), jnp.float32),
            dec_b2=0.01 * jax.random.normal(k3, (3, 1), jnp.float32),
            cls_w=0.05 * jax.random.normal(k4, (c, class_num), jnp.float32),
            cls_b=jnp.zeros((1, class_num), jnp.float32),
        ))
    return modules


# ----------------------------------------------------------------------------
# Full forward (mirrors ResNetMIEstimator.forward; losses stay on device)
# ----------------------------------------------------------------------------
def mi_estimator_forward(img, hidden_xs, target, params, infopro_config,
                         image_size, class_num, mask_mean, mask_std):
    B = img.shape[0]
    S = image_size
    S2 = S * S
    Bt = _pick_batch_tile(B)
    nbt = B // Bt

    # image re-laid out to the decoder's lane layout: (nbt, 3, Bt*S*S)
    img_re = (img.reshape(nbt, Bt, 3, S2)
                 .transpose(0, 2, 1, 3)
                 .reshape(nbt, 3, Bt * S2))
    std_col = mask_std.reshape(3, 1).astype(jnp.float32)
    mean_col = mask_mean.reshape(3, 1).astype(jnp.float32)
    masks = conv_offset_masks(S, Bt)
    y_onehot = jax.nn.one_hot(target, class_num, dtype=jnp.float32)

    h_logits, loss_ixx, loss_ixy = [], [], []
    for module_index, layer_index in enumerate(infopro_config):
        if layer_index != module_index:
            continue
        x = hidden_xs[module_index]                          # (B, C, h, w)
        C, h, w = x.shape[1], x.shape[2], x.shape[3]
        x_flat = x.reshape(B, C, h * w)                      # shared by both kernels

        interp = interp_matrix(S, h, w)
        pw = pool_weights(S, h, w).reshape(1, 1, h * w)
        prm = params[module_index]
        w1s = stack_conv_weight_rows(prm['dec_w1'])          # (9*hidden, C)
        w2s = stack_conv_weight_rows(prm['dec_w2'])          # (27, hidden)

        lxx = decoder_loss(x_flat, img_re, interp, masks, w1s,
                           prm['dec_gamma'], prm['dec_beta'], w2s, prm['dec_b2'],
                           std_col, mean_col, S, Bt)
        logits, lxy = classifier_head(x_flat, pw, prm['cls_w'], prm['cls_b'], y_onehot)

        h_logits.append(logits)
        loss_ixx.append(lxx.reshape(()))
        loss_ixy.append(lxy.reshape(()))
        # TODO(synk): loss_ixx.backward() / loss_ixy.backward() (autograd) not translated.

    return h_logits, jnp.stack(loss_ixx), jnp.stack(loss_ixy)


# ----------------------------------------------------------------------------
# Pure-JAX reference (independent implementation, for the self-check)
# ----------------------------------------------------------------------------
def reference_forward(img, hidden_xs, target, params, infopro_config,
                      image_size, class_num, mask_mean, mask_std):
    HI = jax.lax.Precision.HIGHEST
    S = image_size
    restored = img * mask_std.reshape(1, 3, 1, 1) + mask_mean.reshape(1, 3, 1, 1)

    def conv3x3(x, wt):
        return jax.lax.conv_general_dilated(
            x, wt, (1, 1), ((1, 1), (1, 1)),
            dimension_numbers=('NCHW', 'OIHW', 'NCHW'), precision=HI)

    h_logits, lxx, lxy = [], [], []
    for mi, li in enumerate(infopro_config):
        if li != mi:
            continue
        x = hidden_xs[mi]
        h, w = x.shape[2], x.shape[3]
        rh = bilinear_matrix(S, h)
        rw = bilinear_matrix(S, w)
        xup = jnp.einsum('si,bcij->bcsj', rh, x, precision=HI)
        xup = jnp.einsum('tj,bcsj->bcst', rw, xup, precision=HI)     # (B, C, S, S)
        prm = params[mi]

        c1 = conv3x3(xup, prm['dec_w1'])
        m1 = jnp.mean(c1, axis=(0, 2, 3), keepdims=True)
        v1 = jnp.mean((c1 - m1) ** 2, axis=(0, 2, 3), keepdims=True)
        h1 = (c1 - m1) / jnp.sqrt(v1 + 1e-5)
        h1 = h1 * prm['dec_gamma'].reshape(1, -1, 1, 1) + prm['dec_beta'].reshape(1, -1, 1, 1)
        h1 = jnp.maximum(h1, 0.0)
        c2 = conv3x3(h1, prm['dec_w2']) + prm['dec_b2'].reshape(1, 3, 1, 1)
        pr = 1.0 / (1.0 + jnp.exp(-c2))
        logp = jnp.maximum(jnp.log(pr), -100.0)
        log1mp = jnp.maximum(jnp.log(1.0 - pr), -100.0)
        bce = -(restored * logp + (1.0 - restored) * log1mp)
        lxx.append(jnp.mean(bce))

        pooled = jnp.mean(xup, axis=(2, 3))                          # (B, C)
        logits = jnp.dot(pooled, prm['cls_w'], precision=HI) + prm['cls_b']
        y = jax.nn.one_hot(target, class_num, dtype=jnp.float32)
        lse = jax.nn.logsumexp(logits, axis=1)
        nll = lse - jnp.sum(logits * y, axis=1)
        lxy.append(jnp.mean(nll))
        h_logits.append(logits)

    return h_logits, jnp.stack(lxx), jnp.stack(lxy)


# ----------------------------------------------------------------------------
if __name__ == "__main__":
    key = jax.random.PRNGKey(0)
    B, IMG_S, CLASS_NUM = 2, 16, 10
    WIDE_LIST = (16, 16, 32, 64)
    INFOPRO_CONFIG = (0, 1)          # synthetic stand-in for InfoPro[arch][local_module_num]

    k_img, k_h0, k_h1, k_t, k_p = jax.random.split(key, 5)

    mask_mean = jnp.array([125.3, 123.0, 113.9], jnp.float32) / 255.0   # cifar10
    mask_std = jnp.array([63.0, 62.1, 66.7], jnp.float32) / 255.0

    # normalized image (NCHW) so that _image_restore returns values in [0, 1]
    raw = jax.random.uniform(k_img, (B, 3, IMG_S, IMG_S), jnp.float32)
    img = (raw - mask_mean.reshape(1, 3, 1, 1)) / mask_std.reshape(1, 3, 1, 1)

    hidden_xs = [
        jax.random.normal(k_h0, (B, WIDE_LIST[0], 8, 8), jnp.float32),
        jax.random.normal(k_h1, (B, WIDE_LIST[1], 8, 8), jnp.float32),
    ]
    target = jax.random.randint(k_t, (B,), 0, CLASS_NUM)
    params = init_params(k_p, WIDE_LIST, INFOPRO_CONFIG, CLASS_NUM)

    fwd = jax.jit(mi_estimator_forward, static_argnums=(4, 5, 6))
    h_logits, lxx, lxy = fwd(img, hidden_xs, target, params,
                             INFOPRO_CONFIG, IMG_S, CLASS_NUM, mask_mean, mask_std)
    jax.block_until_ready((h_logits, lxx, lxy))

    assert len(h_logits) == len(INFOPRO_CONFIG)
    assert all(l.shape == (B, CLASS_NUM) for l in h_logits)
    assert lxx.shape == (len(INFOPRO_CONFIG),) and lxy.shape == (len(INFOPRO_CONFIG),)

    # numerical self-check against an independent pure-JAX reference
    ref_logits, ref_lxx, ref_lxy = reference_forward(
        img, hidden_xs, target, params, INFOPRO_CONFIG, IMG_S, CLASS_NUM,
        mask_mean, mask_std)
    for a, r in zip(h_logits, ref_logits):
        assert float(jnp.max(jnp.abs(a - r))) < 2e-3
    assert float(jnp.max(jnp.abs(lxx - ref_lxx))) < 2e-3
    assert float(jnp.max(jnp.abs(lxy - ref_lxy))) < 2e-3
    assert bool(jnp.all(jnp.isfinite(lxx))) and bool(jnp.all(jnp.isfinite(lxy)))

    print("KERNEL_OK")
</pallas_src>

<mosaic_0001>
module attributes {stable_mosaic.version = 11 : i64} {
  func.func private @main(%arg0: i32) attributes {dimension_semantics = [#tpu.dimension_semantics<core_parallel>], iteration_bounds = array<i64: 2>, tpu.core_type = #tpu.core_type<sc_scalar_subcore>, window_params = []} {
    return
  }
}

module attributes {stable_mosaic.version = 11 : i64} {
  func.func private @main(%arg0: i32) attributes {dimension_semantics = [#tpu.dimension_semantics<core_parallel>], iteration_bounds = array<i64: 2>, tpu.core_type = #tpu.core_type<sc_scalar_subcore>, window_params = []} {
    return
  }
}

module attributes {stable_mosaic.version = 11 : i64} {
  func.func @kernel(%arg0: i32, %arg1: memref<2x16x64xf32, #tpu.memory_space<vmem>>, %arg2: memref<1x1x64xf32, #tpu.memory_space<vmem>>, %arg3: memref<16x10xf32, #tpu.memory_space<vmem>>, %arg4: memref<1x10xf32, #tpu.memory_space<vmem>>, %arg5: memref<2x10xf32, #tpu.memory_space<vmem>>, %arg6: memref<2x10xf32, #tpu.memory_space<vmem>>, %arg7: memref<1x1xf32, #tpu.memory_space<vmem>>) attributes {dimension_semantics = [#tpu.dimension_semantics<arbitrary>], iteration_bounds = array<i64: 1>, scalar_prefetch = 0 : i64, scratch_operands = 0 : i64, tpu.core_type = #tpu.core_type<tc>, window_params = [{pipeline_mode = #tpu.pipeline_mode<synchronous>, transform_indices = @transform_0, window_bounds = array<i64: 2, 16, 64>}, {pipeline_mode = #tpu.pipeline_mode<synchronous>, transform_indices = @transform_1, window_bounds = array<i64: 1, 1, 64>}, {pipeline_mode = #tpu.pipeline_mode<synchronous>, transform_indices = @transform_2, window_bounds = array<i64: 16, 10>}, {pipeline_mode = #tpu.pipeline_mode<synchronous>, transform_indices = @transform_3, window_bounds = array<i64: 1, 10>}, {pipeline_mode = #tpu.pipeline_mode<synchronous>, transform_indices = @transform_4, window_bounds = array<i64: 2, 10>}, {pipeline_mode = #tpu.pipeline_mode<synchronous>, transform_indices = @transform_5, window_bounds = array<i64: 2, 10>}, {pipeline_mode = #tpu.pipeline_mode<synchronous>, transform_indices = @transform_6, window_bounds = array<i64: 1, 1>}]} {
    %c0 = arith.constant 0 : index
    %c0_0 = arith.constant 0 : index
    %c0_1 = arith.constant 0 : index
    %0 = vector.load %arg1[%c0, %c0_0, %c0_1] : memref<2x16x64xf32, #tpu.memory_space<vmem>>, vector<2x16x64xf32>
    %c0_2 = arith.constant 0 : index
    %c0_3 = arith.constant 0 : index
    %c0_4 = arith.constant 0 : index
    %1 = vector.load %arg2[%c0_2, %c0_3, %c0_4] : memref<1x1x64xf32, #tpu.memory_space<vmem>>, vector<1x1x64xf32>
    %2 = vector.broadcast %1 : vector<1x1x64xf32> to vector<2x16x64xf32>
    %3 = arith.mulf %0, %2 : vector<2x16x64xf32>
    %cst = arith.constant dense<0.000000e+00> : vector<2x16xf32>
    %4 = vector.multi_reduction <add>, %3, %cst [2] : vector<2x16x64xf32> to vector<2x16xf32>
    %c0_5 = arith.constant 0 : index
    %c0_6 = arith.constant 0 : index
    %5 = vector.load %arg3[%c0_5, %c0_6] : memref<16x10xf32, #tpu.memory_space<vmem>>, vector<16x10xf32>
    %cst_7 = arith.constant dense<0.000000e+00> : vector<2x10xf32>
    %6 = tpu.matmul %4, %5, %cst_7 {dimension_numbers = #tpu.dot_dimension_numbers<[1], [0], [0], [1], [0, 0, 1, 1], [], []>} : vector<2x16xf32>, vector<16x10xf32>, vector<2x10xf32> -> vector<2x10xf32>
    %c0_8 = arith.constant 0 : index
    %c0_9 = arith.constant 0 : index
    %7 = vector.load %arg4[%c0_8, %c0_9] : memref<1x10xf32, #tpu.memory_space<vmem>>, vector<1x10xf32>
    %8 = vector.broadcast %7 : vector<1x10xf32> to vector<2x10xf32>
    %9 = arith.addf %6, %8 : vector<2x10xf32>
    %c0_10 = arith.constant 0 : index
    %c0_11 = arith.constant 0 : index
    %10 = vector.load %arg6[%c0_10, %c0_11] : memref<2x10xf32, #tpu.memory_space<vmem>>, vector<2x10xf32>
    tpu.vector_store %arg6[%c0_10, %c0_11], %9 {strides = array<i32>} : memref<2x10xf32, #tpu.memory_space<vmem>>, vector<2x10xf32>,
    %cst_12 = arith.constant dense<0xFF800000> : vector<2xf32>
    %11 = vector.multi_reduction <maximumf>, %9, %cst_12 [1] : vector<2x10xf32> to vector<2xf32>
    %12 = vector.shape_cast %11 : vector<2xf32> to vector<2x1xf32>
    %13 = vector.broadcast %12 : vector<2x1xf32> to vector<2x10xf32>
    %14 = arith.subf %9, %13 : vector<2x10xf32>
    %15 = math.exp %14 : vector<2x10xf32>
    %cst_13 = arith.constant dense<0.000000e+00> : vector<2xf32>
    %16 = vector.multi_reduction <add>, %15, %cst_13 [1] : vector<2x10xf32> to vector<2xf32>
    %17 = vector.shape_cast %16 : vector<2xf32> to vector<2x1xf32>
    %18 = math.log %17 : vector<2x1xf32>
    %19 = arith.addf %12, %18 : vector<2x1xf32>
    %c0_14 = arith.constant 0 : index
    %c0_15 = arith.constant 0 : index
    %20 = vector.load %arg5[%c0_14, %c0_15] : memref<2x10xf32, #tpu.memory_space<vmem>>, vector<2x10xf32>
    %21 = arith.mulf %9, %20 : vector<2x10xf32>
    %cst_16 = arith.constant dense<0.000000e+00> : vector<2xf32>
    %22 = vector.multi_reduction <add>, %21, %cst_16 [1] : vector<2x10xf32> to vector<2xf32>
    %23 = vector.shape_cast %22 : vector<2xf32> to vector<2x1xf32>
    %24 = arith.subf %19, %23 : vector<2x1xf32>
    %25 = vector.shape_cast %24 : vector<2x1xf32> to vector<1x2x1xf32>
    %cst_17 = arith.constant dense<0.000000e+00> : vector<1xf32>
    %26 = vector.multi_reduction <add>, %25, %cst_17 [1, 2] : vector<1x2x1xf32> to vector<1xf32>
    %27 = vector.shape_cast %26 : vector<1xf32> to vector<1x1x1xf32>
    %28 = vector.extract %27[0, 0, 0] : f32 from vector<1x1x1xf32>
    %29 = vector.broadcast %28 : f32 to vector<1x1xf32>
    %cst_18 = arith.constant 5.000000e-01 : f32
    %30 = vector.broadcast %cst_18 : f32 to vector<1x1xf32>
    %31 = arith.mulf %29, %30 : vector<1x1xf32>
    %c0_19 = arith.constant 0 : index
    %c0_20 = arith.constant 0 : index
    %32 = vector.load %arg7[%c0_19, %c0_20] : memref<1x1xf32, #tpu.memory_space<vmem>>, vector<1x1xf32>
    tpu.vector_store %arg7[%c0_19, %c0_20], %31 {strides = array<i32>} : memref<1x1xf32, #tpu.memory_space<vmem>>, vector<1x1xf32>,
    return
  }
  func.func @transform_0(%arg0: i32) -> (i32, i32, i32) {
    %c0_i32 = arith.constant 0 : i32
    %c0_i32_0 = arith.constant 0 : i32
    %c0_i32_1 = arith.constant 0 : i32
    %c0_i32_2 = arith.constant 0 : i32
    return %c0_i32, %c0_i32_0, %c0_i32_1 : i32, i32, i32
  }
  func.func @transform_1(%arg0: i32) -> (i32, i32, i32) {
    %c0_i32 = arith.constant 0 : i32
    %c0_i32_0 = arith.constant 0 : i32
    %c0_i32_1 = arith.constant 0 : i32
    %c0_i32_2 = arith.constant 0 : i32
    return %c0_i32, %c0_i32_0, %c0_i32_1 : i32, i32, i32
  }
  func.func @transform_2(%arg0: i32) -> (i32, i32) {
    %c0_i32 = arith.constant 0 : i32
    %c0_i32_0 = arith.constant 0 : i32
    %c0_i32_1 = arith.constant 0 : i32
    return %c0_i32, %c0_i32_0 : i32, i32
  }
  func.func @transform_3(%arg0: i32) -> (i32, i32) {
    %c0_i32 = arith.constant 0 : i32
    %c0_i32_0 = arith.constant 0 : i32
    %c0_i32_1 = arith.constant 0 : i32
    return %c0_i32, %c0_i32_0 : i32, i32
  }
  func.func @transform_4(%arg0: i32) -> (i32, i32) {
    %c0_i32 = arith.constant 0 : i32
    %c0_i32_0 = arith.constant 0 : i32
    %c0_i32_1 = arith.constant 0 : i32
    return %c0_i32, %c0_i32_0 : i32, i32
  }
  func.func @transform_5(%arg0: i32) -> (i32, i32) {
    %c0_i32 = arith.constant 0 : i32
    %c0_i32_0 = arith.constant 0 : i32
    %c0_i32_1 = arith.constant 0 : i32
    return %c0_i32, %c0_i32_0 : i32, i32
  }
  func.func @transform_6(%arg0: i32) -> (i32, i32) {
    %c0_i32 = arith.constant 0 : i32
    %c0_i32_0 = arith.constant 0 : i32
    %c0_i32_1 = arith.constant 0 : i32
    return %c0_i32, %c0_i32_0 : i32, i32
  }
}

module attributes {stable_mosaic.version = 11 : i64} {
  func.func @kernel(%arg0: i32, %arg1: i32, %arg2: memref<2x16x64xf32, #tpu.memory_space<vmem>>, %arg3: memref<1x3x512xf32, #tpu.memory_space<vmem>>, %arg4: memref<64x256xf32, #tpu.memory_space<vmem>>, %arg5: memref<9x1x512xf32, #tpu.memory_space<vmem>>, %arg6: memref<108x16xf32, #tpu.memory_space<vmem>>, %arg7: memref<12x1xf32, #tpu.memory_space<vmem>>, %arg8: memref<12x1xf32, #tpu.memory_space<vmem>>, %arg9: memref<27x12xf32, #tpu.memory_space<vmem>>, %arg10: memref<3x1xf32, #tpu.memory_space<vmem>>, %arg11: memref<3x1xf32, #tpu.memory_space<vmem>>, %arg12: memref<3x1xf32, #tpu.memory_space<vmem>>, %arg13: memref<1x1xf32, #tpu.memory_space<vmem>>, %arg14: memref<1x12x512xf32, #tpu.memory_space<vmem>>, %arg15: memref<12x1xf32, #tpu.memory_space<vmem>>, %arg16: memref<12x1xf32, #tpu.memory_space<vmem>>, %arg17: memref<1x1xf32, #tpu.memory_space<vmem>>) attributes {dimension_semantics = [#tpu.dimension_semantics<arbitrary>, #tpu.dimension_semantics<arbitrary>], iteration_bounds = array<i64: 2, 1>, scalar_prefetch = 0 : i64, scratch_operands = 4 : i64, tpu.core_type = #tpu.core_type<tc>, window_params = [{transform_indices = @transform_0, window_bounds = array<i64: 2, 16, 64>}, {transform_indices = @transform_1, window_bounds = array<i64: 1, 3, 512>}, {pipeline_mode = #tpu.pipeline_mode<synchronous>, transform_indices = @transform_2, window_bounds = array<i64: 64, 256>}, {pipeline_mode = #tpu.pipeline_mode<synchronous>, transform_indices = @transform_3, window_bounds = array<i64: 9, 1, 512>}, {pipeline_mode = #tpu.pipeline_mode<synchronous>, transform_indices = @transform_4, window_bounds = array<i64: 108, 16>}, {pipeline_mode = #tpu.pipeline_mode<synchronous>, transform_indices = @transform_5, window_bounds = array<i64: 12, 1>}, {pipeline_mode = #tpu.pipeline_mode<synchronous>, transform_indices = @transform_6, window_bounds = array<i64: 12, 1>}, {pipeline_mode = #tpu.pipeline_mode<synchronous>, transform_indices = @transform_7, window_bounds = array<i64: 27, 12>}, {pipeline_mode = #tpu.pipeline_mode<synchronous>, transform_indices = @transform_8, window_bounds = array<i64: 3, 1>}, {pipeline_mode = #tpu.pipeline_mode<synchronous>, transform_indices = @transform_9, window_bounds = array<i64: 3, 1>}, {pipeline_mode = #tpu.pipeline_mode<synchronous>, transform_indices = @transform_10, window_bounds = array<i64: 3, 1>}, {pipeline_mode = #tpu.pipeline_mode<synchronous>, transform_indices = @transform_11, window_bounds = array<i64: 1, 1>}]} {
    %c0_i32 = arith.constant 0 : i32
    %0 = arith.cmpi eq, %arg0, %c0_i32 : i32
    %c0_i32_0 = arith.constant 0 : i32
    %1 = arith.cmpi eq, %arg1, %c0_i32_0 : i32
    %2 = arith.andi %0, %1 : i1
    %3 = arith.extui %2 : i1 to i32
    %c0_i32_1 = arith.constant 0 : i32
    %4 = arith.cmpi ne, %3, %c0_i32_1 : i32
    scf.if %4 {
      %cst = arith.constant 0.000000e+00 : f32
      %11 = vector.broadcast %cst : f32 to vector<12x1xf32>
      %c0 = arith.constant 0 : index
      %c0_5 = arith.constant 0 : index
      %12 = vector.load %arg15[%c0, %c0_5] : memref<12x1xf32, #tpu.memory_space<vmem>>, vector<12x1xf32>
      tpu.vector_store %arg15[%c0, %c0_5], %11 {strides = array<i32>} : memref<12x1xf32, #tpu.memory_space<vmem>>, vector<12x1xf32>,
      %cst_6 = arith.constant 0.000000e+00 : f32
      %13 = vector.broadcast %cst_6 : f32 to vector<12x1xf32>
      %c0_7 = arith.constant 0 : index
      %c0_8 = arith.constant 0 : index
      %14 = vector.load %arg16[%c0_7, %c0_8] : memref<12x1xf32, #tpu.memory_space<vmem>>, vector<12x1xf32>
      tpu.vector_store %arg16[%c0_7, %c0_8], %13 {strides = array<i32>} : memref<12x1xf32, #tpu.memory_space<vmem>>, vector<12x1xf32>,
      %cst_9 = arith.constant 0.000000e+00 : f32
      %15 = vector.broadcast %cst_9 : f32 to vector<1x1xf32>
      %c0_10 = arith.constant 0 : index
      %c0_11 = arith.constant 0 : index
      %16 = vector.load %arg17[%c0_10, %c0_11] : memref<1x1xf32, #tpu.memory_space<vmem>>, vector<1x1xf32>
      tpu.vector_store %arg17[%c0_10, %c0_11], %15 {strides = array<i32>} : memref<1x1xf32, #tpu.memory_space<vmem>>, vector<1x1xf32>,
    } else {
    }
    %c0_i32_2 = arith.constant 0 : i32
    %5 = arith.cmpi eq, %arg0, %c0_i32_2 : i32
    %6 = arith.extui %5 : i1 to i32
    %c0_i32_3 = arith.constant 0 : i32
    %7 = arith.cmpi ne, %6, %c0_i32_3 : i32
    scf.if %7 {
      %c0 = arith.constant 0 : index
      %c0_5 = arith.constant 0 : index
      %11 = vector.load %arg4[%c0, %c0_5] : memref<64x256xf32, #tpu.memory_space<vmem>>, vector<64x256xf32>
      %c0_6 = arith.constant 0 : index
      %c0_7 = arith.constant 0 : index
      %12 = vector.load %arg6[%c0_6, %c0_7] : memref<108x16xf32, #tpu.memory_space<vmem>>, vector<108x16xf32>
      %c0_8 = arith.constant 0 : index
      %c0_9 = arith.constant 0 : index
      %c0_10 = arith.constant 0 : index
      %13 = vector.load %arg5[%c0_8, %c0_9, %c0_10] : memref<9x1x512xf32, #tpu.memory_space<vmem>>, vector<9x1x512xf32>
      %c0_11 = arith.constant 0 : index
      %c0_12 = arith.constant 0 : index
      %c0_13 = arith.constant 0 : index
      %14 = vector.load %arg2[%c0_11, %c0_12, %c0_13] : memref<2x16x64xf32, #tpu.memory_space<vmem>>, vector<1x16x64xf32>
      %15 = vector.shape_cast %14 : vector<1x16x64xf32> to vector<16x64xf32>
      %cst = arith.constant dense<0.000000e+00> : vector<108x64xf32>
      %16 = tpu.matmul %12, %15, %cst {dimension_numbers = #tpu.dot_dimension_numbers<[1], [0], [0], [1], [0, 0, 1, 1], [], []>} : vector<108x16xf32>, vector<16x64xf32>, vector<108x64xf32> -> vector<108x64xf32>
      %cst_14 = arith.constant dense<0.000000e+00> : vector<108x256xf32>
      %17 = tpu.matmul %16, %11, %cst_14 {dimension_numbers = #tpu.dot_dimension_numbers<[1], [0], [0], [1], [0, 0, 1, 1], [], []>} : vector<108x64xf32>, vector<64x256xf32>, vector<108x256xf32> -> vector<108x256xf32>
      %cst_15 = arith.constant 0.000000e+00 : f32
      %18 = vector.broadcast %cst_15 : f32 to vector<12x256xf32>
      %19 = vector.extract_strided_slice %17 {offsets = [0, 0], sizes = [12, 256], strides = [1, 1]} : vector<108x256xf32> to vector<12x256xf32>
      %cst_16 = arith.constant 0.000000e+00 : f32
      %20 = vector.broadcast %cst_16 : f32 to vector<12x17xf32>
      %21 = vector.extract_strided_slice %19 {offsets = [0, 0], sizes = [12, 239], strides = [1, 1]} : vector<12x256xf32> to vector<12x239xf32>
      %22 = tpu.concatenate %20, %21 in 1 : vector<12x17xf32>, vector<12x239xf32> -> vector<12x256xf32>
      %23 = vector.extract_strided_slice %13 {offsets = [0, 0, 0], sizes = [1, 1, 256], strides = [1, 1, 1]} : vector<9x1x512xf32> to vector<1x1x256xf32>
      %24 = vector.shape_cast %23 : vector<1x1x256xf32> to vector<1x256xf32>
      %25 = vector.broadcast %24 : vector<1x256xf32> to vector<12x256xf32>
      %26 = arith.mulf %22, %25 : vector<12x256xf32>
      %27 = arith.addf %18, %26 : vector<12x256xf32>
      %28 = vector.extract_strided_slice %17 {offsets = [12, 0], sizes = [12, 256], strides = [1, 1]} : vector<108x256xf32> to vector<12x256xf32>
      %cst_17 = arith.constant 0.000000e+00 : f32
      %29 = vector.broadcast %cst_17 : f32 to vector<12x16xf32>
      %30 = vector.extract_strided_slice %28 {offsets = [0, 0], sizes = [12, 240], strides = [1, 1]} : vector<12x256xf32> to vector<12x240xf32>
      %31 = tpu.concatenate %29, %30 in 1 : vector<12x16xf32>, vector<12x240xf32> -> vector<12x256xf32>
      %32 = vector.extract_strided_slice %13 {offsets = [1, 0, 0], sizes = [1, 1, 256], strides = [1, 1, 1]} : vector<9x1x512xf32> to vector<1x1x256xf32>
      %33 = vector.shape_cast %32 : vector<1x1x256xf32> to vector<1x256xf32>
      %34 = vector.broadcast %33 : vector<1x256xf32> to vector<12x256xf32>
      %35 = arith.mulf %31, %34 : vector<12x256xf32>
      %36 = arith.addf %27, %35 : vector<12x256xf32>
      %37 = vector.extract_strided_slice %17 {offsets = [24, 0], sizes = [12, 256], strides = [1, 1]} : vector<108x256xf32> to vector<12x256xf32>
      %cst_18 = arith.constant 0.000000e+00 : f32
      %38 = vector.broadcast %cst_18 : f32 to vector<12x15xf32>
      %39 = vector.extract_strided_slice %37 {offsets = [0, 0], sizes = [12, 241], strides = [1, 1]} : vector<12x256xf32> to vector<12x241xf32>
      %40 = tpu.concatenate %38, %39 in 1 : vector<12x15xf32>, vector<12x241xf32> -> vector<12x256xf32>
      %41 = vector.extract_strided_slice %13 {offsets = [2, 0, 0], sizes = [1, 1, 256], strides = [1, 1, 1]} : vector<9x1x512xf32> to vector<1x1x256xf32>
      %42 = vector.shape_cast %41 : vector<1x1x256xf32> to vector<1x256xf32>
      %43 = vector.broadcast %42 : vector<1x256xf32> to vector<12x256xf32>
      %44 = arith.mulf %40, %43 : vector<12x256xf32>
      %45 = arith.addf %36, %44 : vector<12x256xf32>
      %46 = vector.extract_strided_slice %17 {offsets = [36, 0], sizes = [12, 256], strides = [1, 1]} : vector<108x256xf32> to vector<12x256xf32>
      %cst_19 = arith.constant 0.000000e+00 : f32
      %47 = vector.broadcast %cst_19 : f32 to vector<12x1xf32>
      %48 = vector.extract_strided_slice %46 {offsets = [0, 0], sizes = [12, 255], strides = [1, 1]} : vector<12x256xf32> to vector<12x255xf32>
      %49 = tpu.concatenate %47, %48 in 1 : vector<12x1xf32>, vector<12x255xf32> -> vector<12x256xf32>
      %50 = vector.extract_strided_slice %13 {offsets = [3, 0, 0], sizes = [1, 1, 256], strides = [1, 1, 1]} : vector<9x1x512xf32> to vector<1x1x256xf32>
      %51 = vector.shape_cast %50 : vector<1x1x256xf32> to vector<1x256xf32>
      %52 = vector.broadcast %51 : vector<1x256xf32> to vector<12x256xf32>
      %53 = arith.mulf %49, %52 : vector<12x256xf32>
      %54 = arith.addf %45, %53 : vector<12x256xf32>
      %55 = vector.extract_strided_slice %17 {offsets = [48, 0], sizes = [12, 256], strides = [1, 1]} : vector<108x256xf32> to vector<12x256xf32>
      %56 = vector.extract_strided_slice %13 {offsets = [4, 0, 0], sizes = [1, 1, 256], strides = [1, 1, 1]} : vector<9x1x512xf32> to vector<1x1x256xf32>
      %57 = vector.shape_cast %56 : vector<1x1x256xf32> to vector<1x256xf32>
      %58 = vector.broadcast %57 : vector<1x256xf32> to vector<12x256xf32>
      %59 = arith.mulf %55, %58 : vector<12x256xf32>
      %60 = arith.addf %54, %59 : vector<12x256xf32>
      %61 = vector.extract_strided_slice %17 {offsets = [60, 0], sizes = [12, 256], strides = [1, 1]} : vector<108x256xf32> to vector<12x256xf32>
      %cst_20 = arith.constant 0.000000e+00 : f32
      %62 = vector.broadcast %cst_20 : f32 to vector<12x1xf32>
      %63 = vector.extract_strided_slice %61 {offsets = [0, 1], sizes = [12, 255], strides = [1, 1]} : vector<12x256xf32> to vector<12x255xf32>
      %64 = tpu.concatenate %63, %62 in 1 : vector<12x255xf32>, vector<12x1xf32> -> vector<12x256xf32>
      %65 = vector.extract_strided_slice %13 {offsets = [5, 0, 0], sizes = [1, 1, 256], strides = [1, 1, 1]} : vector<9x1x512xf32> to vector<1x1x256xf32>
      %66 = vector.shape_cast %65 : vector<1x1x256xf32> to vector<1x256xf32>
      %67 = vector.broadcast %66 : vector<1x256xf32> to vector<12x256xf32>
      %68 = arith.mulf %64, %67 : vector<12x256xf32>
      %69 = arith.addf %60, %68 : vector<12x256xf32>
      %70 = vector.extract_strided_slice %17 {offsets = [72, 0], sizes = [12, 256], strides = [1, 1]} : vector<108x256xf32> to vector<12x256xf32>
      %cst_21 = arith.constant 0.000000e+00 : f32
      %71 = vector.broadcast %cst_21 : f32 to vector<12x15xf32>
      %72 = vector.extract_strided_slice %70 {offsets = [0, 15], sizes = [12, 241], strides = [1, 1]} : vector<12x256xf32> to vector<12x241xf32>
      %73 = tpu.concatenate %72, %71 in 1 : vector<12x241xf32>, vector<12x15xf32> -> vector<12x256xf32>
      %74 = vector.extract_strided_slice %13 {offsets = [6, 0, 0], sizes = [1, 1, 256], strides = [1, 1, 1]} : vector<9x1x512xf32> to vector<1x1x256xf32>
      %75 = vector.shape_cast %74 : vector<1x1x256xf32> to vector<1x256xf32>
      %76 = vector.broadcast %75 : vector<1x256xf32> to vector<12x256xf32>
      %77 = arith.mulf %73, %76 : vector<12x256xf32>
      %78 = arith.addf %69, %77 : vector<12x256xf32>
      %79 = vector.extract_strided_slice %17 {offsets = [84, 0], sizes = [12, 256], strides = [1, 1]} : vector<108x256xf32> to vector<12x256xf32>
      %cst_22 = arith.constant 0.000000e+00 : f32
      %80 = vector.broadcast %cst_22 : f32 to vector<12x16xf32>
      %81 = vector.extract_strided_slice %79 {offsets = [0, 16], sizes = [12, 240], strides = [1, 1]} : vector<12x256xf32> to vector<12x240xf32>
      %82 = tpu.concatenate %81, %80 in 1 : vector<12x240xf32>, vector<12x16xf32> -> vector<12x256xf32>
      %83 = vector.extract_strided_slice %13 {offsets = [7, 0, 0], sizes = [1, 1, 256], strides = [1, 1, 1]} : vector<9x1x512xf32> to vector<1x1x256xf32>
      %84 = vector.shape_cast %83 : vector<1x1x256xf32> to vector<1x256xf32>
      %85 = vector.broadcast %84 : vector<1x256xf32> to vector<12x256xf32>
      %86 = arith.mulf %82, %85 : vector<12x256xf32>
      %87 = arith.addf %78, %86 : vector<12x256xf32>
      %88 = vector.extract_strided_slice %17 {offsets = [96, 0], sizes = [12, 256], strides = [1, 1]} : vector<108x256xf32> to vector<12x256xf32>
      %cst_23 = arith.constant 0.000000e+00 : f32
      %89 = vector.broadcast %cst_23 : f32 to vector<12x17xf32>
      %90 = vector.extract_strided_slice %88 {offsets = [0, 17], sizes = [12, 239], strides = [1, 1]} : vector<12x256xf32> to vector<12x239xf32>
      %91 = tpu.concatenate %90, %89 in 1 : vector<12x239xf32>, vector<12x17xf32> -> vector<12x256xf32>
      %92 = vector.extract_strided_slice %13 {offsets = [8, 0, 0], sizes = [1, 1, 256], strides = [1, 1, 1]} : vector<9x1x512xf32> to vector<1x1x256xf32>
      %93 = vector.shape_cast %92 : vector<1x1x256xf32> to vector<1x256xf32>
      %94 = vector.broadcast %93 : vector<1x256xf32> to vector<12x256xf32>
      %95 = arith.mulf %91, %94 : vector<12x256xf32>
      %96 = arith.addf %87, %95 : vector<12x256xf32>
      %c1 = arith.constant 1 : index
      %c0_24 = arith.constant 0 : index
      %c0_25 = arith.constant 0 : index
      %97 = vector.load %arg2[%c1, %c0_24, %c0_25] : memref<2x16x64xf32, #tpu.memory_space<vmem>>, vector<1x16x64xf32>
      %98 = vector.shape_cast %97 : vector<1x16x64xf32> to vector<16x64xf32>
      %cst_26 = arith.constant dense<0.000000e+00> : vector<108x64xf32>
      %99 = tpu.matmul %12, %98, %cst_26 {dimension_numbers = #tpu.dot_dimension_numbers<[1], [0], [0], [1], [0, 0, 1, 1], [], []>} : vector<108x16xf32>, vector<16x64xf32>, vector<108x64xf32> -> vector<108x64xf32>
      %cst_27 = arith.constant dense<0.000000e+00> : vector<108x256xf32>
      %100 = tpu.matmul %99, %11, %cst_27 {dimension_numbers = #tpu.dot_dimension_numbers<[1], [0], [0], [1], [0, 0, 1, 1], [], []>} : vector<108x64xf32>, vector<64x256xf32>, vector<108x256xf32> -> vector<108x256xf32>
      %cst_28 = arith.constant 0.000000e+00 : f32
      %101 = vector.broadcast %cst_28 : f32 to vector<12x256xf32>
      %102 = vector.extract_strided_slice %100 {offsets = [0, 0], sizes = [12, 256], strides = [1, 1]} : vector<108x256xf32> to vector<12x256xf32>
      %cst_29 = arith.constant 0.000000e+00 : f32
      %103 = vector.broadcast %cst_29 : f32 to vector<12x17xf32>
      %104 = vector.extract_strided_slice %102 {offsets = [0, 0], sizes = [12, 239], strides = [1, 1]} : vector<12x256xf32> to vector<12x239xf32>
      %105 = tpu.concatenate %103, %104 in 1 : vector<12x17xf32>, vector<12x239xf32> -> vector<12x256xf32>
      %106 = vector.extract_strided_slice %13 {offsets = [0, 0, 0], sizes = [1, 1, 256], strides = [1, 1, 1]} : vector<9x1x512xf32> to vector<1x1x256xf32>
      %107 = vector.shape_cast %106 : vector<1x1x256xf32> to vector<1x256xf32>
      %108 = vector.broadcast %107 : vector<1x256xf32> to vector<12x256xf32>
      %109 = arith.mulf %105, %108 : vector<12x256xf32>
      %110 = arith.addf %101, %109 : vector<12x256xf32>
      %111 = vector.extract_strided_slice %100 {offsets = [12, 0], sizes = [12, 256], strides = [1, 1]} : vector<108x256xf32> to vector<12x256xf32>
      %cst_30 = arith.constant 0.000000e+00 : f32
      %112 = vector.broadcast %cst_30 : f32 to vector<12x16xf32>
      %113 = vector.extract_strided_slice %111 {offsets = [0, 0], sizes = [12, 240], strides = [1, 1]} : vector<12x256xf32> to vector<12x240xf32>
      %114 = tpu.concatenate %112, %113 in 1 : vector<12x16xf32>, vector<12x240xf32> -> vector<12x256xf32>
      %115 = vector.extract_strided_slice %13 {offsets = [1, 0, 0], sizes = [1, 1, 256], strides = [1, 1, 1]} : vector<9x1x512xf32> to vector<1x1x256xf32>
      %116 = vector.shape_cast %115 : vector<1x1x256xf32> to vector<1x256xf32>
      %117 = vector.broadcast %116 : vector<1x256xf32> to vector<12x256xf32>
      %118 = arith.mulf %114, %117 : vector<12x256xf32>
      %119 = arith.addf %110, %118 : vector<12x256xf32>
      %120 = vector.extract_strided_slice %100 {offsets = [24, 0], sizes = [12, 256], strides = [1, 1]} : vector<108x256xf32> to vector<12x256xf32>
      %cst_31 = arith.constant 0.000000e+00 : f32
      %121 = vector.broadcast %cst_31 : f32 to vector<12x15xf32>
      %122 = vector.extract_strided_slice %120 {offsets = [0, 0], sizes = [12, 241], strides = [1, 1]} : vector<12x256xf32> to vector<12x241xf32>
      %123 = tpu.concatenate %121, %122 in 1 : vector<12x15xf32>, vector<12x241xf32> -> vector<12x256xf32>
      %124 = vector.extract_strided_slice %13 {offsets = [2, 0, 0], sizes = [1, 1, 256], strides = [1, 1, 1]} : vector<9x1x512xf32> to vector<1x1x256xf32>
      %125 = vector.shape_cast %124 : vector<1x1x256xf32> to vector<1x256xf32>
      %126 = vector.broadcast %125 : vector<1x256xf32> to vector<12x256xf32>
      %127 = arith.mulf %123, %126 : vector<12x256xf32>
      %128 = arith.addf %119, %127 : vector<12x256xf32>
      %129 = vector.extract_strided_slice %100 {offsets = [36, 0], sizes = [12, 256], strides = [1, 1]} : vector<108x256xf32> to vector<12x256xf32>
      %cst_32 = arith.constant 0.000000e+00 : f32
      %130 = vector.broadcast %cst_32 : f32 to vector<12x1xf32>
      %131 = vector.extract_strided_slice %129 {offsets = [0, 0], sizes = [12, 255], strides = [1, 1]} : vector<12x256xf32> to vector<12x255xf32>
      %132 = tpu.concatenate %130, %131 in 1 : vector<12x1xf32>, vector<12x255xf32> -> vector<12x256xf32>
      %133 = vector.extract_strided_slice %13 {offsets = [3, 0, 0], sizes = [1, 1, 256], strides = [1, 1, 1]} : vector<9x1x512xf32> to vector<1x1x256xf32>
      %134 = vector.shape_cast %133 : vector<1x1x256xf32> to vector<1x256xf32>
      %135 = vector.broadcast %134 : vector<1x256xf32> to vector<12x256xf32>
      %136 = arith.mulf %132, %135 : vector<12x256xf32>
      %137 = arith.addf %128, %136 : vector<12x256xf32>
      %138 = vector.extract_strided_slice %100 {offsets = [48, 0], sizes = [12, 256], strides = [1, 1]} : vector<108x256xf32> to vector<12x256xf32>
      %139 = vector.extract_strided_slice %13 {offsets = [4, 0, 0], sizes = [1, 1, 256], strides = [1, 1, 1]} : vector<9x1x512xf32> to vector<1x1x256xf32>
      %140 = vector.shape_cast %139 : vector<1x1x256xf32> to vector<1x256xf32>
      %141 = vector.broadcast %140 : vector<1x256xf32> to vector<12x256xf32>
      %142 = arith.mulf %138, %141 : vector<12x256xf32>
      %143 = arith.addf %137, %142 : vector<12x256xf32>
      %144 = vector.extract_strided_slice %100 {offsets = [60, 0], sizes = [12, 256], strides = [1, 1]} : vector<108x256xf32> to vector<12x256xf32>
      %cst_33 = arith.constant 0.000000e+00 : f32
      %145 = vector.broadcast %cst_33 : f32 to vector<12x1xf32>
      %146 = vector.extract_strided_slice %144 {offsets = [0, 1], sizes = [12, 255], strides = [1, 1]} : vector<12x256xf32> to vector<12x255xf32>
      %147 = tpu.concatenate %146, %145 in 1 : vector<12x255xf32>, vector<12x1xf32> -> vector<12x256xf32>
      %148 = vector.extract_strided_slice %13 {offsets = [5, 0, 0], sizes = [1, 1, 256], strides = [1, 1, 1]} : vector<9x1x512xf32> to vector<1x1x256xf32>
      %149 = vector.shape_cast %148 : vector<1x1x256xf32> to vector<1x256xf32>
      %150 = vector.broadcast %149 : vector<1x256xf32> to vector<12x256xf32>
      %151 = arith.mulf %147, %150 : vector<12x256xf32>
      %152 = arith.addf %143, %151 : vector<12x256xf32>
      %153 = vector.extract_strided_slice %100 {offsets = [72, 0], sizes = [12, 256], strides = [1, 1]} : vector<108x256xf32> to vector<12x256xf32>
      %cst_34 = arith.constant 0.000000e+00 : f32
      %154 = vector.broadcast %cst_34 : f32 to vector<12x15xf32>
      %155 = vector.extract_strided_slice %153 {offsets = [0, 15], sizes = [12, 241], strides = [1, 1]} : vector<12x256xf32> to vector<12x241xf32>
      %156 = tpu.concatenate %155, %154 in 1 : vector<12x241xf32>, vector<12x15xf32> -> vector<12x256xf32>
      %157 = vector.extract_strided_slice %13 {offsets = [6, 0, 0], sizes = [1, 1, 256], strides = [1, 1, 1]} : vector<9x1x512xf32> to vector<1x1x256xf32>
      %158 = vector.shape_cast %157 : vector<1x1x256xf32> to vector<1x256xf32>
      %159 = vector.broadcast %158 : vector<1x256xf32> to vector<12x256xf32>
      %160 = arith.mulf %156, %159 : vector<12x256xf32>
      %161 = arith.addf %152, %160 : vector<12x256xf32>
      %162 = vector.extract_strided_slice %100 {offsets = [84, 0], sizes = [12, 256], strides = [1, 1]} : vector<108x256xf32> to vector<12x256xf32>
      %cst_35 = arith.constant 0.000000e+00 : f32
      %163 = vector.broadcast %cst_35 : f32 to vector<12x16xf32>
      %164 = vector.extract_strided_slice %162 {offsets = [0, 16], sizes = [12, 240], strides = [1, 1]} : vector<12x256xf32> to vector<12x240xf32>
      %165 = tpu.concatenate %164, %163 in 1 : vector<12x240xf32>, vector<12x16xf32> -> vector<12x256xf32>
      %166 = vector.extract_strided_slice %13 {offsets = [7, 0, 0], sizes = [1, 1, 256], strides = [1, 1, 1]} : vector<9x1x512xf32> to vector<1x1x256xf32>
      %167 = vector.shape_cast %166 : vector<1x1x256xf32> to vector<1x256xf32>
      %168 = vector.broadcast %167 : vector<1x256xf32> to vector<12x256xf32>
      %169 = arith.mulf %165, %168 : vector<12x256xf32>
      %170 = arith.addf %161, %169 : vector<12x256xf32>
      %171 = vector.extract_strided_slice %100 {offsets = [96, 0], sizes = [12, 256], strides = [1, 1]} : vector<108x256xf32> to vector<12x256xf32>
      %cst_36 = arith.constant 0.000000e+00 : f32
      %172 = vector.broadcast %cst_36 : f32 to vector<12x17xf32>
      %173 = vector.extract_strided_slice %171 {offsets = [0, 17], sizes = [12, 239], strides = [1, 1]} : vector<12x256xf32> to vector<12x239xf32>
      %174 = tpu.concatenate %173, %172 in 1 : vector<12x239xf32>, vector<12x17xf32> -> vector<12x256xf32>
      %175 = vector.extract_strided_slice %13 {offsets = [8, 0, 0], sizes = [1, 1, 256], strides = [1, 1, 1]} : vector<9x1x512xf32> to vector<1x1x256xf32>
      %176 = vector.shape_cast %175 : vector<1x1x256xf32> to vector<1x256xf32>
      %177 = vector.broadcast %176 : vector<1x256xf32> to vector<12x256xf32>
      %178 = arith.mulf %174, %177 : vector<12x256xf32>
      %179 = arith.addf %170, %178 : vector<12x256xf32>
      %180 = tpu.concatenate %96, %179 in 1 : vector<12x256xf32>, vector<12x256xf32> -> vector<12x512xf32>
      %181 = arith.index_cast %arg1 : i32 to index
      %c0_37 = arith.constant 0 : index
      %c0_38 = arith.constant 0 : index
      %182 = vector.load %arg14[%181, %c0_37, %c0_38] : memref<1x12x512xf32, #tpu.memory_space<vmem>>, vector<1x12x512xf32>
      %183 = vector.shape_cast %182 : vector<1x12x512xf32> to vector<12x512xf32>
      %184 = vector.shape_cast %180 : vector<12x512xf32> to vector<1x12x512xf32>
      tpu.vector_store %arg14[%181, %c0_37, %c0_38], %184 {strides = array<i32>} : memref<1x12x512xf32, #tpu.memory_space<vmem>>, vector<1x12x512xf32>,
      %c0_39 = arith.constant 0 : index
      %c0_40 = arith.constant 0 : index
      %185 = vector.load %arg15[%c0_39, %c0_40] : memref<12x1xf32, #tpu.memory_space<vmem>>, vector<12x1xf32>
      %cst_41 = arith.constant dense<0.000000e+00> : vector<12xf32>
      %186 = vector.multi_reduction <add>, %180, %cst_41 [1] : vector<12x512xf32> to vector<12xf32>
      %187 = vector.shape_cast %186 : vector<12xf32> to vector<12x1xf32>
      %188 = arith.addf %185, %187 : vector<12x1xf32>
      %c0_42 = arith.constant 0 : index
      %c0_43 = arith.constant 0 : index
      %189 = vector.load %arg15[%c0_42, %c0_43] : memref<12x1xf32, #tpu.memory_space<vmem>>, vector<12x1xf32>
      tpu.vector_store %arg15[%c0_42, %c0_43], %188 {strides = array<i32>} : memref<12x1xf32, #tpu.memory_space<vmem>>, vector<12x1xf32>,
      %c0_44 = arith.constant 0 : index
      %c0_45 = arith.constant 0 : index
      %190 = vector.load %arg16[%c0_44, %c0_45] : memref<12x1xf32, #tpu.memory_space<vmem>>, vector<12x1xf32>
      %191 = arith.mulf %180, %180 : vector<12x512xf32>
      %cst_46 = arith.constant dense<0.000000e+00> : vector<12xf32>
      %192 = vector.multi_reduction <add>, %191, %cst_46 [1] : vector<12x512xf32> to vector<12xf32>
      %193 = vector.shape_cast %192 : vector<12xf32> to vector<12x1xf32>
      %194 = arith.addf %190, %193 : vector<12x1xf32>
      %c0_47 = arith.constant 0 : index
      %c0_48 = arith.constant 0 : index
      %195 = vector.load %arg16[%c0_47, %c0_48] : memref<12x1xf32, #tpu.memory_space<vmem>>, vector<12x1xf32>
      tpu.vector_store %arg16[%c0_47, %c0_48], %194 {strides = array<i32>} : memref<12x1xf32, #tpu.memory_space<vmem>>, vector<12x1xf32>,
    } else {
    }
    %c1_i32 = arith.constant 1 : i32
    %8 = arith.cmpi eq, %arg0, %c1_i32 : i32
    %9 = arith.extui %8 : i1 to i32
    %c0_i32_4 = arith.constant 0 : i32
    %10 = arith.cmpi ne, %9, %c0_i32_4 : i32
    scf.if %10 {
      %11 = arith.index_cast %arg1 : i32 to index
      %c0 = arith.constant 0 : index
      %c0_5 = arith.constant 0 : index
      %12 = vector.load %arg14[%11, %c0, %c0_5] : memref<1x12x512xf32, #tpu.memory_space<vmem>>, vector<1x12x512xf32>
      %13 = vector.shape_cast %12 : vector<1x12x512xf32> to vector<12x512xf32>
      %c0_6 = arith.constant 0 : index
      %c0_7 = arith.constant 0 : index
      %14 = vector.load %arg15[%c0_6, %c0_7] : memref<12x1xf32, #tpu.memory_space<vmem>>, vector<12x1xf32>
      %cst = arith.constant 0.001953125 : f32
      %15 = vector.broadcast %cst : f32 to vector<12x1xf32>
      %16 = arith.mulf %14, %15 : vector<12x1xf32>
      %c0_8 = arith.constant 0 : index
      %c0_9 = arith.constant 0 : index
      %17 = vector.load %arg16[%c0_8, %c0_9] : memref<12x1xf32, #tpu.memory_space<vmem>>, vector<12x1xf32>
      %cst_10 = arith.constant 0.001953125 : f32
      %18 = vector.broadcast %cst_10 : f32 to vector<12x1xf32>
      %19 = arith.mulf %17, %18 : vector<12x1xf32>
      %20 = arith.mulf %16, %16 : vector<12x1xf32>
      %21 = arith.subf %19, %20 : vector<12x1xf32>
      %22 = vector.broadcast %16 : vector<12x1xf32> to vector<12x512xf32>
      %23 = arith.subf %13, %22 : vector<12x512xf32>
      %cst_11 = arith.constant 9.99999974E-6 : f32
      %24 = vector.broadcast %cst_11 : f32 to vector<12x1xf32>
      %25 = arith.addf %21, %24 : vector<12x1xf32>
      %26 = math.rsqrt %25 : vector<12x1xf32>
      %27 = vector.broadcast %26 : vector<12x1xf32> to vector<12x512xf32>
      %28 = arith.mulf %23, %27 : vector<12x512xf32>
      %c0_12 = arith.constant 0 : index
      %c0_13 = arith.constant 0 : index
      %29 = vector.load %arg7[%c0_12, %c0_13] : memref<12x1xf32, #tpu.memory_space<vmem>>, vector<12x1xf32>
      %30 = vector.broadcast %29 : vector<12x1xf32> to vector<12x512xf32>
      %31 = arith.mulf %28, %30 : vector<12x512xf32>
      %c0_14 = arith.constant 0 : index
      %c0_15 = arith.constant 0 : index
      %32 = vector.load %arg8[%c0_14, %c0_15] : memref<12x1xf32, #tpu.memory_space<vmem>>, vector<12x1xf32>
      %33 = vector.broadcast %32 : vector<12x1xf32> to vector<12x512xf32>
      %34 = arith.addf %31, %33 : vector<12x512xf32>
      %cst_16 = arith.constant 0.000000e+00 : f32
      %35 = vector.broadcast %cst_16 : f32 to vector<12x512xf32>
      %36 = arith.maximumf %34, %35 : vector<12x512xf32>
      %c0_17 = arith.constant 0 : index
      %c0_18 = arith.constant 0 : index
      %37 = vector.load %arg9[%c0_17, %c0_18] : memref<27x12xf32, #tpu.memory_space<vmem>>, vector<27x12xf32>
      %cst_19 = arith.constant dense<0.000000e+00> : vector<27x512xf32>
      %38 = tpu.matmul %37, %36, %cst_19 {dimension_numbers = #tpu.dot_dimension_numbers<[1], [0], [0], [1], [0, 0, 1, 1], [], []>} : vector<27x12xf32>, vector<12x512xf32>, vector<27x512xf32> -> vector<27x512xf32>
      %c0_20 = arith.constant 0 : index
      %c0_21 = arith.constant 0 : index
      %c0_22 = arith.constant 0 : index
      %39 = vector.load %arg5[%c0_20, %c0_21, %c0_22] : memref<9x1x512xf32, #tpu.memory_space<vmem>>, vector<9x1x512xf32>
      %cst_23 = arith.constant 0.000000e+00 : f32
      %40 = vector.broadcast %cst_23 : f32 to vector<3x512xf32>
      %c0_24 = arith.constant 0 : index
      %c0_25 = arith.constant 0 : index
      %41 = vector.load %arg10[%c0_24, %c0_25] : memref<3x1xf32, #tpu.memory_space<vmem>>, vector<3x1xf32>
      %42 = vector.broadcast %41 : vector<3x1xf32> to vector<3x512xf32>
      %43 = arith.addf %40, %42 : vector<3x512xf32>
      %44 = vector.extract_strided_slice %38 {offsets = [0, 0], sizes = [3, 512], strides = [1, 1]} : vector<27x512xf32> to vector<3x512xf32>
      %cst_26 = arith.constant 0.000000e+00 : f32
      %45 = vector.broadcast %cst_26 : f32 to vector<3x17xf32>
      %46 = vector.extract_strided_slice %44 {offsets = [0, 0], sizes = [3, 495], strides = [1, 1]} : vector<3x512xf32> to vector<3x495xf32>
      %47 = tpu.concatenate %45, %46 in 1 : vector<3x17xf32>, vector<3x495xf32> -> vector<3x512xf32>
      %48 = vector.extract_strided_slice %39 {offsets = [0, 0, 0], sizes = [1, 1, 512], strides = [1, 1, 1]} : vector<9x1x512xf32> to vector<1x1x512xf32>
      %49 = vector.shape_cast %48 : vector<1x1x512xf32> to vector<1x512xf32>
      %50 = vector.broadcast %49 : vector<1x512xf32> to vector<3x512xf32>
      %51 = arith.mulf %47, %50 : vector<3x512xf32>
      %52 = arith.addf %43, %51 : vector<3x512xf32>
      %53 = vector.extract_strided_slice %38 {offsets = [3, 0], sizes = [3, 512], strides = [1, 1]} : vector<27x512xf32> to vector<3x512xf32>
      %cst_27 = arith.constant 0.000000e+00 : f32
      %54 = vector.broadcast %cst_27 : f32 to vector<3x16xf32>
      %55 = vector.extract_strided_slice %53 {offsets = [0, 0], sizes = [3, 496], strides = [1, 1]} : vector<3x512xf32> to vector<3x496xf32>
      %56 = tpu.concatenate %54, %55 in 1 : vector<3x16xf32>, vector<3x496xf32> -> vector<3x512xf32>
      %57 = vector.extract_strided_slice %39 {offsets = [1, 0, 0], sizes = [1, 1, 512], strides = [1, 1, 1]} : vector<9x1x512xf32> to vector<1x1x512xf32>
      %58 = vector.shape_cast %57 : vector<1x1x512xf32> to vector<1x512xf32>
      %59 = vector.broadcast %58 : vector<1x512xf32> to vector<3x512xf32>
      %60 = arith.mulf %56, %59 : vector<3x512xf32>
      %61 = arith.addf %52, %60 : vector<3x512xf32>
      %62 = vector.extract_strided_slice %38 {offsets = [6, 0], sizes = [3, 512], strides = [1, 1]} : vector<27x512xf32> to vector<3x512xf32>
      %cst_28 = arith.constant 0.000000e+00 : f32
      %63 = vector.broadcast %cst_28 : f32 to vector<3x15xf32>
      %64 = vector.extract_strided_slice %62 {offsets = [0, 0], sizes = [3, 497], strides = [1, 1]} : vector<3x512xf32> to vector<3x497xf32>
      %65 = tpu.concatenate %63, %64 in 1 : vector<3x15xf32>, vector<3x497xf32> -> vector<3x512xf32>
      %66 = vector.extract_strided_slice %39 {offsets = [2, 0, 0], sizes = [1, 1, 512], strides = [1, 1, 1]} : vector<9x1x512xf32> to vector<1x1x512xf32>
      %67 = vector.shape_cast %66 : vector<1x1x512xf32> to vector<1x512xf32>
      %68 = vector.broadcast %67 : vector<1x512xf32> to vector<3x512xf32>
      %69 = arith.mulf %65, %68 : vector<3x512xf32>
      %70 = arith.addf %61, %69 : vector<3x512xf32>
      %71 = vector.extract_strided_slice %38 {offsets = [9, 0], sizes = [3, 512], strides = [1, 1]} : vector<27x512xf32> to vector<3x512xf32>
      %cst_29 = arith.constant 0.000000e+00 : f32
      %72 = vector.broadcast %cst_29 : f32 to vector<3x1xf32>
      %73 = vector.extract_strided_slice %71 {offsets = [0, 0], sizes = [3, 511], strides = [1, 1]} : vector<3x512xf32> to vector<3x511xf32>
      %74 = tpu.concatenate %72, %73 in 1 : vector<3x1xf32>, vector<3x511xf32> -> vector<3x512xf32>
      %75 = vector.extract_strided_slice %39 {offsets = [3, 0, 0], sizes = [1, 1, 512], strides = [1, 1, 1]} : vector<9x1x512xf32> to vector<1x1x512xf32>
      %76 = vector.shape_cast %75 : vector<1x1x512xf32> to vector<1x512xf32>
      %77 = vector.broadcast %76 : vector<1x512xf32> to vector<3x512xf32>
      %78 = arith.mulf %74, %77 : vector<3x512xf32>
      %79 = arith.addf %70, %78 : vector<3x512xf32>
      %80 = vector.extract_strided_slice %38 {offsets = [12, 0], sizes = [3, 512], strides = [1, 1]} : vector<27x512xf32> to vector<3x512xf32>
      %81 = vector.extract_strided_slice %39 {offsets = [4, 0, 0], sizes = [1, 1, 512], strides = [1, 1, 1]} : vector<9x1x512xf32> to vector<1x1x512xf32>
      %82 = vector.shape_cast %81 : vector<1x1x512xf32> to vector<1x512xf32>
      %83 = vector.broadcast %82 : vector<1x512xf32> to vector<3x512xf32>
      %84 = arith.mulf %80, %83 : vector<3x512xf32>
      %85 = arith.addf %79, %84 : vector<3x512xf32>
      %86 = vector.extract_strided_slice %38 {offsets = [15, 0], sizes = [3, 512], strides = [1, 1]} : vector<27x512xf32> to vector<3x512xf32>
      %cst_30 = arith.constant 0.000000e+00 : f32
      %87 = vector.broadcast %cst_30 : f32 to vector<3x1xf32>
      %88 = vector.extract_strided_slice %86 {offsets = [0, 1], sizes = [3, 511], strides = [1, 1]} : vector<3x512xf32> to vector<3x511xf32>
      %89 = tpu.concatenate %88, %87 in 1 : vector<3x511xf32>, vector<3x1xf32> -> vector<3x512xf32>
      %90 = vector.extract_strided_slice %39 {offsets = [5, 0, 0], sizes = [1, 1, 512], strides = [1, 1, 1]} : vector<9x1x512xf32> to vector<1x1x512xf32>
      %91 = vector.shape_cast %90 : vector<1x1x512xf32> to vector<1x512xf32>
      %92 = vector.broadcast %91 : vector<1x512xf32> to vector<3x512xf32>
      %93 = arith.mulf %89, %92 : vector<3x512xf32>
      %94 = arith.addf %85, %93 : vector<3x512xf32>
      %95 = vector.extract_strided_slice %38 {offsets = [18, 0], sizes = [3, 512], strides = [1, 1]} : vector<27x512xf32> to vector<3x512xf32>
      %cst_31 = arith.constant 0.000000e+00 : f32
      %96 = vector.broadcast %cst_31 : f32 to vector<3x15xf32>
      %97 = vector.extract_strided_slice %95 {offsets = [0, 15], sizes = [3, 497], strides = [1, 1]} : vector<3x512xf32> to vector<3x497xf32>
      %98 = tpu.concatenate %97, %96 in 1 : vector<3x497xf32>, vector<3x15xf32> -> vector<3x512xf32>
      %99 = vector.extract_strided_slice %39 {offsets = [6, 0, 0], sizes = [1, 1, 512], strides = [1, 1, 1]} : vector<9x1x512xf32> to vector<1x1x512xf32>
      %100 = vector.shape_cast %99 : vector<1x1x512xf32> to vector<1x512xf32>
      %101 = vector.broadcast %100 : vector<1x512xf32> to vector<3x512xf32>
      %102 = arith.mulf %98, %101 : vector<3x512xf32>
      %103 = arith.addf %94, %102 : vector<3x512xf32>
      %104 = vector.extract_strided_slice %38 {offsets = [21, 0], sizes = [3, 512], strides = [1, 1]} : vector<27x512xf32> to vector<3x512xf32>
      %cst_32 = arith.constant 0.000000e+00 : f32
      %105 = vector.broadcast %cst_32 : f32 to vector<3x16xf32>
      %106 = vector.extract_strided_slice %104 {offsets = [0, 16], sizes = [3, 496], strides = [1, 1]} : vector<3x512xf32> to vector<3x496xf32>
      %107 = tpu.concatenate %106, %105 in 1 : vector<3x496xf32>, vector<3x16xf32> -> vector<3x512xf32>
      %108 = vector.extract_strided_slice %39 {offsets = [7, 0, 0], sizes = [1, 1, 512], strides = [1, 1, 1]} : vector<9x1x512xf32> to vector<1x1x512xf32>
      %109 = vector.shape_cast %108 : vector<1x1x512xf32> to vector<1x512xf32>
      %110 = vector.broadcast %109 : vector<1x512xf32> to vector<3x512xf32>
      %111 = arith.mulf %107, %110 : vector<3x512xf32>
      %112 = arith.addf %103, %111 : vector<3x512xf32>
      %113 = vector.extract_strided_slice %38 {offsets = [24, 0], sizes = [3, 512], strides = [1, 1]} : vector<27x512xf32> to vector<3x512xf32>
      %cst_33 = arith.constant 0.000000e+00 : f32
      %114 = vector.broadcast %cst_33 : f32 to vector<3x17xf32>
      %115 = vector.extract_strided_slice %113 {offsets = [0, 17], sizes = [3, 495], strides = [1, 1]} : vector<3x512xf32> to vector<3x495xf32>
      %116 = tpu.concatenate %115, %114 in 1 : vector<3x495xf32>, vector<3x17xf32> -> vector<3x512xf32>
      %117 = vector.extract_strided_slice %39 {offsets = [8, 0, 0], sizes = [1, 1, 512], strides = [1, 1, 1]} : vector<9x1x512xf32> to vector<1x1x512xf32>
      %118 = vector.shape_cast %117 : vector<1x1x512xf32> to vector<1x512xf32>
      %119 = vector.broadcast %118 : vector<1x512xf32> to vector<3x512xf32>
      %120 = arith.mulf %116, %119 : vector<3x512xf32>
      %121 = arith.addf %112, %120 : vector<3x512xf32>
      %c0_34 = arith.constant 0 : index
      %c0_35 = arith.constant 0 : index
      %c0_36 = arith.constant 0 : index
      %122 = vector.load %arg3[%c0_34, %c0_35, %c0_36] : memref<1x3x512xf32, #tpu.memory_space<vmem>>, vector<1x3x512xf32>
      %123 = vector.shape_cast %122 : vector<1x3x512xf32> to vector<3x512xf32>
      %c0_37 = arith.constant 0 : index
      %c0_38 = arith.constant 0 : index
      %124 = vector.load %arg11[%c0_37, %c0_38] : memref<3x1xf32, #tpu.memory_space<vmem>>, vector<3x1xf32>
      %125 = vector.broadcast %124 : vector<3x1xf32> to vector<3x512xf32>
      %126 = arith.mulf %123, %125 : vector<3x512xf32>
      %c0_39 = arith.constant 0 : index
      %c0_40 = arith.constant 0 : index
      %127 = vector.load %arg12[%c0_39, %c0_40] : memref<3x1xf32, #tpu.memory_space<vmem>>, vector<3x1xf32>
      %128 = vector.broadcast %127 : vector<3x1xf32> to vector<3x512xf32>
      %129 = arith.addf %126, %128 : vector<3x512xf32>
      %cst_41 = arith.constant 0.000000e+00 : f32
      %130 = vector.broadcast %cst_41 : f32 to vector<3x512xf32>
      %131 = arith.maximumf %121, %130 : vector<3x512xf32>
      %132 = math.absf %121 : vector<3x512xf32>
      %cst_42 = arith.constant 0.000000e+00 : f32
      %133 = vector.broadcast %cst_42 : f32 to vector<3x512xf32>
      %134 = arith.subf %133, %132 : vector<3x512xf32>
      %135 = math.exp %134 : vector<3x512xf32>
      %cst_43 = arith.constant 1.000000e+00 : f32
      %136 = vector.broadcast %cst_43 : f32 to vector<3x512xf32>
      %137 = arith.addf %136, %135 : vector<3x512xf32>
      %138 = math.log %137 : vector<3x512xf32>
      %139 = arith.addf %131, %138 : vector<3x512xf32>
      %140 = arith.subf %139, %121 : vector<3x512xf32>
      %cst_44 = arith.constant 1.000000e+02 : f32
      %141 = vector.broadcast %cst_44 : f32 to vector<3x512xf32>
      %142 = arith.minimumf %140, %141 : vector<3x512xf32>
      %143 = arith.mulf %129, %142 : vector<3x512xf32>
      %cst_45 = arith.constant 1.000000e+00 : f32
      %144 = vector.broadcast %cst_45 : f32 to vector<3x512xf32>
      %145 = arith.subf %144, %129 : vector<3x512xf32>
      %cst_46 = arith.constant 1.000000e+02 : f32
      %146 = vector.broadcast %cst_46 : f32 to vector<3x512xf32>
      %147 = arith.minimumf %139, %146 : vector<3x512xf32>
      %148 = arith.mulf %145, %147 : vector<3x512xf32>
      %149 = arith.addf %143, %148 : vector<3x512xf32>
      %c0_47 = arith.constant 0 : index
      %c0_48 = arith.constant 0 : index
      %150 = vector.load %arg17[%c0_47, %c0_48] : memref<1x1xf32, #tpu.memory_space<vmem>>, vector<1x1xf32>
      %151 = vector.shape_cast %149 : vector<3x512xf32> to vector<1x3x512xf32>
      %cst_49 = arith.constant dense<0.000000e+00> : vector<1xf32>
      %152 = vector.multi_reduction <add>, %151, %cst_49 [1, 2] : vector<1x3x512xf32> to vector<1xf32>
      %153 = vector.shape_cast %152 : vector<1xf32> to vector<1x1x1xf32>
      %154 = vector.extract %153[0, 0, 0] : f32 from vector<1x1x1xf32>
      %155 = vector.broadcast %154 : f32 to vector<1x1xf32>
      %156 = arith.addf %150, %155 : vector<1x1xf32>
      %c0_50 = arith.constant 0 : index
      %c0_51 = arith.constant 0 : index
      %157 = vector.load %arg17[%c0_50, %c0_51] : memref<1x1xf32, #tpu.memory_space<vmem>>, vector<1x1xf32>
      tpu.vector_store %arg17[%c0_50, %c0_51], %156 {strides = array<i32>} : memref<1x1xf32, #tpu.memory_space<vmem>>, vector<1x1xf32>,
      %c0_i32_52 = arith.constant 0 : i32
      %158 = arith.cmpi eq, %arg1, %c0_i32_52 : i32
      %159 = arith.extui %158 : i1 to i32
      %c0_i32_53 = arith.constant 0 : i32
      %160 = arith.cmpi ne, %159, %c0_i32_53 : i32
      scf.if %160 {
        %c0_54 = arith.constant 0 : index
        %c0_55 = arith.constant 0 : index
        %161 = vector.load %arg17[%c0_54, %c0_55] : memref<1x1xf32, #tpu.memory_space<vmem>>, vector<1x1xf32>
        %cst_56 = arith.constant 6.51041686E-4 : f32
        %162 = vector.broadcast %cst_56 : f32 to vector<1x1xf32>
        %163 = arith.mulf %161, %162 : vector<1x1xf32>
        %c0_57 = arith.constant 0 : index
        %c0_58 = arith.constant 0 : index
        %164 = vector.load %arg13[%c0_57, %c0_58] : memref<1x1xf32, #tpu.memory_space<vmem>>, vector<1x1xf32>
        tpu.vector_store %arg13[%c0_57, %c0_58], %163 {strides = array<i32>} : memref<1x1xf32, #tpu.memory_space<vmem>>, vector<1x1xf32>,
      } else {
      }
    } else {
    }
    return
  }
  func.func @transform_0(%arg0: i32, %arg1: i32) -> (i32, i32, i32) {
    %c1_i32 = arith.constant 1 : i32
    %0 = arith.subi %c1_i32, %arg0 : i32
    %1 = arith.muli %0, %arg1 : i32
    %c0_i32 = arith.constant 0 : i32
    %c0_i32_0 = arith.constant 0 : i32
    %c0_i32_1 = arith.constant 0 : i32
    return %1, %c0_i32, %c0_i32_0 : i32, i32, i32
  }
  func.func @transform_1(%arg0: i32, %arg1: i32) -> (i32, i32, i32) {
    %0 = arith.muli %arg0, %arg1 : i32
    %c0_i32 = arith.constant 0 : i32
    %c0_i32_0 = arith.constant 0 : i32
    %c0_i32_1 = arith.constant 0 : i32
    return %0, %c0_i32, %c0_i32_0 : i32, i32, i32
  }
  func.func @transform_2(%arg0: i32, %arg1: i32) -> (i32, i32) {
    %c0_i32 = arith.constant 0 : i32
    %c0_i32_0 = arith.constant 0 : i32
    %c0_i32_1 = arith.constant 0 : i32
    return %c0_i32, %c0_i32_0 : i32, i32
  }
  func.func @transform_3(%arg0: i32, %arg1: i32) -> (i32, i32, i32) {
    %c0_i32 = arith.constant 0 : i32
    %c0_i32_0 = arith.constant 0 : i32
    %c0_i32_1 = arith.constant 0 : i32
    %c0_i32_2 = arith.constant 0 : i32
    return %c0_i32, %c0_i32_0, %c0_i32_1 : i32, i32, i32
  }
  func.func @transform_4(%arg0: i32, %arg1: i32) -> (i32, i32) {
    %c0_i32 = arith.constant 0 : i32
    %c0_i32_0 = arith.constant 0 : i32
    %c0_i32_1 = arith.constant 0 : i32
    return %c0_i32, %c0_i32_0 : i32, i32
  }
  func.func @transform_5(%arg0: i32, %arg1: i32) -> (i32, i32) {
    %c0_i32 = arith.constant 0 : i32
    %c0_i32_0 = arith.constant 0 : i32
    %c0_i32_1 = arith.constant 0 : i32
    return %c0_i32, %c0_i32_0 : i32, i32
  }
  func.func @transform_6(%arg0: i32, %arg1: i32) -> (i32, i32) {
    %c0_i32 = arith.constant 0 : i32
    %c0_i32_0 = arith.constant 0 : i32
    %c0_i32_1 = arith.constant 0 : i32
    return %c0_i32, %c0_i32_0 : i32, i32
  }
  func.func @transform_7(%arg0: i32, %arg1: i32) -> (i32, i32) {
    %c0_i32 = arith.constant 0 : i32
    %c0_i32_0 = arith.constant 0 : i32
    %c0_i32_1 = arith.constant 0 : i32
    return %c0_i32, %c0_i32_0 : i32, i32
  }
  func.func @transform_8(%arg0: i32, %arg1: i32) -> (i32, i32) {
    %c0_i32 = arith.constant 0 : i32
    %c0_i32_0 = arith.constant 0 : i32
    %c0_i32_1 = arith.constant 0 : i32
    return %c0_i32, %c0_i32_0 : i32, i32
  }
  func.func @transform_9(%arg0: i32, %arg1: i32) -> (i32, i32) {
    %c0_i32 = arith.constant 0 : i32
    %c0_i32_0 = arith.constant 0 : i32
    %c0_i32_1 = arith.constant 0 : i32
    return %c0_i32, %c0_i32_0 : i32, i32
  }
  func.func @transform_10(%arg0: i32, %arg1: i32) -> (i32, i32) {
    %c0_i32 = arith.constant 0 : i32
    %c0_i32_0 = arith.constant 0 : i32
    %c0_i32_1 = arith.constant 0 : i32
    return %c0_i32, %c0_i32_0 : i32, i32
  }
  func.func @transform_11(%arg0: i32, %arg1: i32) -> (i32, i32) {
    %c0_i32 = arith.constant 0 : i32
    %c0_i32_0 = arith.constant 0 : i32
    %c0_i32_1 = arith.constant 0 : i32
    return %c0_i32, %c0_i32_0 : i32, i32
  }
}

</mosaic_0001>

<llo_original>
// kernel: tile.48
$region0: #{tile.48}
  #allocation0 [shape = 's32[1]{0}', space=sflag, size = 0x4, scoped, tag = 'scoped memory for tile.48']
  %s0 = inlined_call_operand.vmem [shape: f32[256], index: 0, kind: input, shape index: {}]
  %s1 = inlined_call_operand.vmem [shape: f32[2,256], index: 1, kind: output, shape index: {}]
  // Predicated region
  $region2: #{tile.48} parent=0 // pred_check
    _
  $region3: #{tile.48} parent=0 // pred_check_branch
    %3 = sbr.rel (0) target = $region5
  $region4: #{tile.48} parent=0 // pred_region
    _
  $region5: #{tile.48} parent=0 // pred_fallthru
    _
  %v4 = vld [vmem:[%s0] ss:$0 sm:$0xff]
  %5 = vst [vmem:[%s1] sm:$0x3] %v4
  %s6 = scalar_lea.vmem %s0, 1
  %v7 = vld [vmem:[%s6] ss:$0 sm:$0xff]
  %s8 = scalar_lea.vmem %s1, 2
  %9 = vst [vmem:[%s8] sm:$0x3] %v7

// kernel: tile.81
$region0: #{tile.81}
  %s0 = inlined_call_operand.vmem [shape: f32[2,256], index: 0, kind: input, shape index: {}]
  %s1 = inlined_call_operand.vmem [shape: f32[1,1,512], index: 1, kind: output, shape index: {}]
  $region1: #{tile.81} parent=0
    #allocation0 [shape = 'u8[16384]{0}', space=vmem, size = 0x4000, scoped, tag = 'scoped mem for output reshape']
    #allocation1 [shape = 'u8[8192]{0}', space=vmem, size = 0x2000, scoped, tag = 'scoped mem for input reshape']
    %s3 = sshll.u32 1, 2
    %s4 = ssub.s32 %s3, 1
    %s5 = scalar_lea.vmem %s0, 2
    %v6 = vld [vmem:[%s5] sm:%s4]
    %s7 = scalar_lea.vmem [#allocation1], 8
    %8 = vst [vmem:[%s7] sm:%s4] %v6
    %v9 = vld [vmem:[%s0] sm:%s4]
    %10 = vst [vmem:[#allocation1] sm:%s4] %v9
    %v11 = vld [vmem:[#allocation1] sm:$0x3]
    %12 = vst [vmem:[#allocation0] ss:$16 sm:$0x3] %v11
    %s13 = scalar_lea.vmem [#allocation1], 8
    %v14 = vld [vmem:[%s13] sm:$0x3]
    %s15 = scalar_lea.vmem [#allocation0], 8
    %16 = vst [vmem:[%s15] ss:$16 sm:$0x3] %v14
    %s18 = sshll.u32 1, 1
    %s19 = ssub.s32 %s18, 1
    %v21 = vld [vmem:[#allocation0] sm:%s19]
    %s22 = sshll.u32 1, 1
    %s23 = ssub.s32 %s22, 1
    %24 = vst [vmem:[%s1] sm:%s23] %v21
    %s25 = scalar_lea.vmem [#allocation0], 8
    %v26 = vld [vmem:[%s25] sm:%s19]
    %s27 = sshll.u32 1, 1
    %s28 = ssub.s32 %s27, 1
    %s29 = scalar_lea.vmem %s1, 1
    %30 = vst [vmem:[%s29] sm:%s28] %v26
    %s31 = scalar_lea.vmem [#allocation0], 16
    %v32 = vld [vmem:[%s31] sm:%s19]
    %s33 = sshll.u32 1, 1
    %s34 = ssub.s32 %s33, 1
    %s35 = smul.addr 1, 2
    %s36 = scalar_lea.vmem %s1, %s35
    %37 = vst [vmem:[%s36] sm:%s34] %v32
    %s38 = scalar_lea.vmem [#allocation0], 24
    %v39 = vld [vmem:[%s38] sm:%s19]
    %s40 = sshll.u32 1, 1
    %s41 = ssub.s32 %s40, 1
    %s42 = smul.addr 1, 3
    %s43 = scalar_lea.vmem %s1, %s42
    %44 = vst [vmem:[%s43] sm:%s41] %v39

// kernel: mi_estimator_forward.5
$region0: #{mi_estimator_forward.5}
  #allocation0 [shape = 'u32[]', space=smem, size = 0x4, offset = 0x4, fixed_abs, tag = 'smem constant byte address 0x4 - core index']
  #allocation1 [shape = 'u32[144,128]{1,0:T(1,128)}', space=vmem, size = 0x12000, scoped, tag = 'internal scratch']
  %s0 = inlined_call_operand.vmem [shape: f32[2,16,64], index: 0, kind: input, shape index: {}]
  %s1 = inlined_call_operand.vmem [shape: f32[1,1,64], index: 1, kind: input, shape index: {}]
  %s2 = inlined_call_operand.vmem [shape: f32[16,10], index: 2, kind: input, shape index: {}]
  %s3 = inlined_call_operand.vmem [shape: f32[1,10], index: 3, kind: input, shape index: {}]
  %s4 = inlined_call_operand.vmem [shape: f32[2,10], index: 4, kind: input, shape index: {}]
  %s5 = inlined_call_operand.hbm [shape: f32[2,10], index: 5, kind: output, shape index: {0}]
  %s6 = inlined_call_operand.hbm [shape: f32[1,1], index: 6, kind: output, shape index: {1}]
  %7 = xla_tuple %s5, %s6
  %s8 = sld [smem:[#allocation0]]
  $region38: #{mi_estimator_forward.5} parent=0
    _
  %s10 = ssub.s32 1, %s8
  %s11 = scalar_select 0, %s10, %s8
  $region1: #{mi_estimator_forward.5} parent=0
    #allocation2 [shape = 'u8[1024]{0}', space=vmem, size = 0x400, scoped, tag = 'output window, operand 0, single buffered']
    #allocation3 [shape = 's32[1]{0}', space=sflag, size = 0x4, scoped, tag = 'scoped memory for mi_estimator_forward.5']
    #allocation4 [shape = 'u8[512]{0}', space=vmem, size = 0x400, scoped, tag = 'output window, operand 1, single buffered']
    #allocation5 [shape = 's32[1]{0}', space=sflag, size = 0x4, scoped, tag = 'scoped memory for mi_estimator_forward.5']
    %12 = vsyncpa [#allocation3], 0
    %13 = vsyncpa [#allocation5], 0
    // Predicated region
    $region2: #{mi_estimator_forward.5} parent=1 // pred_check
      _
    $region3: #{mi_estimator_forward.5} parent=1 // pred_check_branch
      %15 = sbr.rel (0) target = $region5
    $region4: #{mi_estimator_forward.5} parent=1 // pred_region
      _
    $region5: #{mi_estimator_forward.5} parent=1 // pred_fallthru
      _
    // Predicated region
    $region6: #{mi_estimator_forward.5} parent=1 // pred_check
      _
    $region7: #{mi_estimator_forward.5} parent=1 // pred_check_branch
      %17 = sbr.rel (0) target = $region9
    $region8: #{mi_estimator_forward.5} parent=1 // pred_region
      _
    $region9: #{mi_estimator_forward.5} parent=1 // pred_fallthru
      _
    // Predicated region
    $region10: #{mi_estimator_forward.5} parent=1 // pred_check
      _
    $region11: #{mi_estimator_forward.5} parent=1 // pred_check_branch
      %19 = sbr.rel (0) target = $region13
    $region12: #{mi_estimator_forward.5} parent=1 // pred_region
      _
    $region13: #{mi_estimator_forward.5} parent=1 // pred_fallthru
      _
    // Predicated region
    $region14: #{mi_estimator_forward.5} parent=1 // pred_check
      _
    $region15: #{mi_estimator_forward.5} parent=1 // pred_check_branch
      %21 = sbr.rel (0) target = $region17
    $region16: #{mi_estimator_forward.5} parent=1 // pred_region
      _
    $region17: #{mi_estimator_forward.5} parent=1 // pred_fallthru
      _
    // Predicated region
    $region18: #{mi_estimator_forward.5} parent=1 // pred_check
      _
    $region19: #{mi_estimator_forward.5} parent=1 // pred_check_branch
      %23 = sbr.rel (0) target = $region21
    $region20: #{mi_estimator_forward.5} parent=1 // pred_region
      _
    $region21: #{mi_estimator_forward.5} parent=1 // pred_fallthru
      _
    %v24 = vld [vmem:[%s0] sm:$0xff]
    %v25 = vld [vmem:[%s0 + $0x8] sm:$0xff]
    %v26 = vld [vmem:[%s0 + $0x10] sm:$0xff]
    %v27 = vld [vmem:[%s0 + $0x18] sm:$0xff]
    %v28 = vld [vmem:[%s1] sm:$0x1]
    %v30 = vlaneseq
    %v31 = vshrl.u32 %v30, 7
    %v32 = vsub.s32 0, %v31
    %v33 = vrot.slane %v28, %v32
    %v35 = vmul.f32 %v24, %v33
    %v36 = vmul.f32 %v25, %v33
    %v37 = vmul.f32 %v26, %v33
    %v38 = vmul.f32 %v27, %v33
    %vm39 = vcmask 523264
    %v40 = vsel %vm39, %v35, 0.0
    %41 = vadd.xlane.f32.xlu0 %v40
    %v42 = vpop.xlane.xlu0 %41
    %v43 = vsel %vm39, %v36, 0.0
    %44 = vadd.xlane.f32.xlu0 %v43
    %v45 = vpop.xlane.xlu0 %44
    %v46 = vsel %vm39, %v37, 0.0
    %47 = vadd.xlane.f32.xlu0 %v46
    %v48 = vpop.xlane.xlu0 %47
    %v49 = vsel %vm39, %v38, 0.0
    %50 = vadd.xlane.f32.xlu0 %v49
    %v51 = vpop.xlane.xlu0 %50
    %v52 = vld [vmem:[%s2] sm:$0xff]
    %v53 = vld [vmem:[%s2 + $0x8] sm:$0xff]
    %v54 = vld [vmem:[%s3] sm:$0x1]
    %v56 = vlaneseq
    %v57 = vshrl.u32 %v56, 7
    %v58 = vsub.s32 0, %v57
    %v59 = vrot.slane %v54, %v58
    %v65 = vlaneseq
    %v66 = vand.u32 %v65, 127
    %v67 = vlaneseq
    %v68 = vshrl.u32 %v67, 7
    %v69 = vsub.s32 %v66, %v68
    %v70 = vrot.slane %v42, %v69
    %v71 = vadd.s32 %v66, 4294967288
    %v72 = vlaneseq
    %v73 = vshrl.u32 %v72, 7
    %v74 = vsub.s32 %v71, %v73
    %v75 = vrot.slane %v45, %v74
    %vm76 = vcmask 130112
    %v77 = vsel %vm76, %v75, %v70
    %v78 = vlaneseq
    %v79 = vshrl.u32 %v78, 7
    %v80 = vsub.s32 %v66, %v79
    %v81 = vrot.slane %v48, %v80
    %v82 = vlaneseq
    %v83 = vshrl.u32 %v82, 7
    %v84 = vsub.s32 %v71, %v83
    %v85 = vrot.slane %v51, %v84
    %v86 = vsel %vm76, %v85, %v81
    %vm87 = vcmask 1041409
    %v88 = vsel %vm87, %v86, %v77
    %vm89 = vcmask 130048
    %v90 = vsel %vm89, %v88, 0
    %92 = vmatprep.subr.mxu0 0.0
    %93 = vmatpush1.msra.mxu0 0.0
    %94 = vmatprep.subr.mxu0 0.0
    %95 = vmatpush1.msra.mxu0 0.0
    %96 = vmatprep.subr.mxu0 0.0
    %97 = vmatpush1.msra.mxu0 0.0
    %98 = vmatprep.subr.mxu0 0.0
    %99 = vmatpush1.msra.mxu0 0.0
    %100 = vmatprep.subr.mxu0 0.0
    %101 = vmatpush1.msra.mxu0 0.0
    %102 = vmatprep.subr.mxu0 0.0
    %103 = vmatpush1.msra.mxu0 0.0
    %104 = vmatprep.subr.mxu0 0.0
    %105 = vmatpush1.msra.mxu0 0.0
    %106 = vmatprep.subr.mxu0 0.0
    %107 = vmatpush1.msra.mxu0 0.0
    %108 = vmatprep.subr.mxu0 0.0
    %109 = vmatpush1.msra.mxu0 0.0
    %110 = vmatprep.subr.mxu0 0.0
    %111 = vmatpush1.msra.mxu0 0.0
    %112 = vmatprep.subr.mxu0 0.0
    %113 = vmatpush1.msra.mxu0 0.0
    %114 = vmatprep.subr.mxu0 0.0
    %115 = vmatpush1.msra.mxu0 0.0
    %116 = vmatprep.subr.mxu0 0.0
    %117 = vmatpush1.msra.mxu0 0.0
    %118 = vmatprep.subr.mxu0 0.0
    %119 = vmatpush1.msra.mxu0 0.0
    %120 = vmatprep.subr.mxu0 0.0
    %121 = vmatpush1.msra.mxu0 %v53
    %122 = vmatprep.subr.mxu0 0.0
    %123 = vmatpush1.msra.mxu0 %v52
    %124 = vmatprep.subr.mxu0 0.0
    %125 = vmatpush2.msra.mxu0 0.0
    %126 = vmatprep.subr.mxu0 0.0
    %127 = vmatpush2.msra.mxu0 0.0
    %128 = vmatprep.subr.mxu0 0.0
    %129 = vmatpush2.msra.mxu0 0.0
    %130 = vmatprep.subr.mxu0 0.0
    %131 = vmatpush2.msra.mxu0 0.0
    %132 = vmatprep.subr.mxu0 0.0
    %133 = vmatpush2.msra.mxu0 0.0
    %134 = vmatprep.subr.mxu0 0.0
    %135 = vmatpush2.msra.mxu0 0.0
    %136 = vmatprep.subr.mxu0 0.0
    %137 = vmatpush2.msra.mxu0 0.0
    %138 = vmatprep.subr.mxu0 0.0
    %139 = vmatpush2.msra.mxu0 0.0
    %140 = vmatprep.subr.mxu0 0.0
    %141 = vmatpush2.msra.mxu0 0.0
    %142 = vmatprep.subr.mxu0 0.0
    %143 = vmatpush2.msra.mxu0 0.0
    %144 = vmatprep.subr.mxu0 0.0
    %145 = vmatpush2.msra.mxu0 0.0
    %146 = vmatprep.subr.mxu0 0.0
    %147 = vmatpush2.msra.mxu0 0.0
    %148 = vmatprep.subr.mxu0 0.0
    %149 = vmatpush2.msra.mxu0 0.0
    %150 = vmatprep.subr.mxu0 0.0
    %151 = vmatpush2.msra.mxu0 0.0
    %152 = vmatprep.subr.mxu0 0.0
    %153 = vmatpush2.msra.mxu0 0.0
    %154 = vmatprep.subr.mxu0 0.0
    %155 = vmatpush2.msra.mxu0 0.0
    %156 = vmatprep.mubr.f32.mxu0 0.0
    %157 = vmatmul.mubr.f32.gmra.mxu0 %v90
    %v158 = vpop.f32.mrf.mxu0
    %v159 = vadd.f32 %v59, %v158
    %v160 = vpop.f32.mrf.mxu0
    %161 = vdwg.mxu0
    %vm162 = vcmask 74752
    %163 = vst.msk [vmem:[#allocation2] sm:$0x3] %vm162, %v159
    %v164 = vsel %vm162, %v159, -inf
    %165 = vmax.xlane.f32.xlu0 %v164
    %v166 = vpop.xlane.xlu0 %165
    %v167 = vsub.f32 %v159, %v166
    %v168 = vmul.f32 %v167, 1.442695
    %v169 = vpow.pop %v168
    %v170 = vsel %vm162, %v169, 0.0
    %171 = vadd.xlane.f32.xlu0 %v170
    %v172 = vpop.xlane.xlu0 %171
    %v173 = vlog2.pop %v172
    %v174 = vmul.f32 %v173, 0.6931472
    %v175 = vadd.f32 %v166, %v174
    %v176 = vld [vmem:[%s4] sm:$0x3]
    %v177 = vmul.f32 %v159, %v176
    %v178 = vsel %vm162, %v177, 0.0
    %179 = vadd.xlane.f32.xlu0 %v178
    %v180 = vpop.xlane.xlu0 %179
    %v181 = vsub.f32 %v175, %v180
    %vm182 = vcmask 1024
    %v183 = vsel %vm182, %v181, 0.0
    %184 = vadd.xlane.f32.xlu0 %v183
    %v185 = vpop.xlane.xlu0 %184
    %v186 = vrot.slane %v185, 4
    %v187 = vadd.f32 %v185, %v186
    %v188 = vrot.slane %v187, 2
    %v189 = vadd.f32 %v187, %v188
    %v190 = vrot.slane %v189, 1
    %v191 = vadd.f32 %v189, %v190
    %s192 = vtos %v191
    %v193 = vstv %s192
    %v194 = vmul.f32 %v193, 0.5
    %vm195 = vcmask 0
    %196 = vst.msk [vmem:[#allocation4] sm:$0x1] %vm195, %v194
    // Predicated region
    $region22: #{mi_estimator_forward.5} parent=1 // pred_check
      _
    $region23: #{mi_estimator_forward.5} parent=1 // pred_check_branch
      %198 = sbr.rel (0) target = $region25
    $region24: #{mi_estimator_forward.5} parent=1 // pred_region
      %s200 = ssub.s32 32, 32
      %201 = vsyncadd [#allocation3], %s200
      %s203 = sshll.u32 [#allocation2], 4
      %s204 = int_to_ptr.vmem [resolvable:$true] %s203
      %206 = dma.vmem_to_hbm [thread:$0]  %s204, 32, %s5, [#allocation3]
    $region25: #{mi_estimator_forward.5} parent=1 // pred_fallthru
      _
    // Predicated region
    $region26: #{mi_estimator_forward.5} parent=1 // pred_check
      _
    $region27: #{mi_estimator_forward.5} parent=1 // pred_check_branch
      %208 = sbr.rel (0) target = $region29
    $region28: #{mi_estimator_forward.5} parent=1 // pred_region
      %s210 = ssub.s32 16, 16
      %211 = vsyncadd [#allocation5], %s210
      %s213 = sshll.u32 [#allocation4], 4
      %s214 = int_to_ptr.vmem [resolvable:$true] %s213
      %216 = dma.vmem_to_hbm [thread:$0]  %s214, 16, %s6, [#allocation5]
    $region29: #{mi_estimator_forward.5} parent=1 // pred_fallthru
      _
    // Predicated region
    $region30: #{mi_estimator_forward.5} parent=1 // pred_check
      _
    $region31: #{mi_estimator_forward.5} parent=1 // pred_check_branch
      %218 = sbr.rel (0) target = $region33
    $region32: #{mi_estimator_forward.5} parent=1 // pred_region
      %219 = dma.done [#allocation3], 32
    $region33: #{mi_estimator_forward.5} parent=1 // pred_fallthru
      _
    // Predicated region
    $region34: #{mi_estimator_forward.5} parent=1 // pred_check
      _
    $region35: #{mi_estimator_forward.5} parent=1 // pred_check_branch
      %221 = sbr.rel (0) target = $region37
    $region36: #{mi_estimator_forward.5} parent=1 // pred_region
      %222 = dma.done [#allocation5], 16
    $region37: #{mi_estimator_forward.5} parent=1 // pred_fallthru
      _
    %223 = vsyncpa [#allocation3], 1
    %224 = vsyncpa [#allocation5], 1

// kernel: mi_estimator_forward.6
$region0: #{mi_estimator_forward.6}
  #allocation0 [shape = 'u32[]', space=smem, size = 0x4, offset = 0x4, fixed_abs, tag = 'smem constant byte address 0x4 - core index']
  #allocation1 [shape = 'u32[144,128]{1,0:T(1,128)}', space=vmem, size = 0x12000, scoped, tag = 'internal scratch']
  #allocation2 [shape = 'f32[1,12,512]{2,1,0:T(8,128)}', space=vmem, size = 0x8000, scoped, tag = 'scratch operand']
  #allocation3 [shape = 'f32[12,1]{1,0:T(8,128)}', space=vmem, size = 0x2000, scoped, tag = 'scratch operand']
  #allocation4 [shape = 'f32[12,1]{1,0:T(8,128)}', space=vmem, size = 0x2000, scoped, tag = 'scratch operand']
  #allocation5 [shape = 'f32[1,1]{1,0:T(1,128)}', space=vmem, size = 0x200, scoped, tag = 'scratch operand']
  %s0 = inlined_call_operand.vmem [shape: f32[2,16,64], index: 0, kind: input, shape index: {}]
  %s1 = inlined_call_operand.vmem [shape: f32[1,3,512], index: 1, kind: input, shape index: {}]
  %s2 = inlined_call_operand.vmem [shape: f32[64,256], index: 2, kind: input, shape index: {}]
  %s3 = inlined_call_operand.vmem [shape: f32[9,1,512], index: 3, kind: input, shape index: {}]
  %s4 = inlined_call_operand.vmem [shape: f32[108,16], index: 4, kind: input, shape index: {}]
  %s5 = inlined_call_operand.vmem [shape: f32[12,1], index: 5, kind: input, shape index: {}]
  %s6 = inlined_call_operand.vmem [shape: f32[12,1], index: 6, kind: input, shape index: {}]
  %s7 = inlined_call_operand.vmem [shape: f32[27,12], index: 7, kind: input, shape index: {}]
  %s8 = inlined_call_operand.vmem [shape: f32[3,1], index: 8, kind: input, shape index: {}]
  %s9 = inlined_call_operand.vmem [shape: f32[3,1], index: 9, kind: input, shape index: {}]
  %s10 = inlined_call_operand.vmem [shape: f32[3,1], index: 10, kind: input, shape index: {}]
  %s11 = inlined_call_operand.hbm [shape: f32[1,1], index: 11, kind: output, shape index: {}]
  %s12 = sld [smem:[#allocation0]]
  $region93: #{mi_estimator_forward.6} parent=0
    _
  %s14 = ssub.s32 1, %s12
  %s15 = scalar_select 0, %s14, %s12
  $region1: #{mi_estimator_forward.6} parent=0
    #allocation6 [shape = 'u8[512]{0}', space=vmem, size = 0x400, scoped, tag = 'output window, operand 0, single buffered']
    #allocation7 [shape = 's32[2]{0}', space=sflag, size = 0x8, scoped, tag = 'scoped memory for mi_estimator_forward.6']
    %16 = vsyncpa [#allocation7], 0
    loop: start=0, step=1, limit=4
    $region2: #{mi_estimator_forward.6} parent=1 // loop_pre_header
      _
    $region3: #{mi_estimator_forward.6} parent=1 // loop_header
      %s18 = sphi 0, %s22
      %p19 = scmp.ge.s32.totalorder %s18, 4
      %s25 = sphi 0, %s37
      %s26 = sphi 0, %s33
      %s27 = sphi 0, %s25
      %s28 = sphi 0, %s26
      %s29 = sphi 0, %s27
      %s30 = sphi 0, %s28
      %s44 = sphi 0, %s46
      %s47 = sphi 0, %s44
      %s48 = sphi 0, %s47
      %s64 = sphi 0, %s48
      %s72 = sphi 0, %s74
      %s75 = sphi 0, %s72
      %s76 = sphi 0, %s75
      %s92 = sphi 0, %s76
      %s96 = sphi 0, %s96
      %s98 = sphi 0, %s96
      %s99 = sphi 0, %s98
      %s113 = sphi 0, %s99
      %s117 = sphi 0, %s117
      %s119 = sphi 0, %s117
      %s120 = sphi 0, %s119
      %s134 = sphi 0, %s120
      %s138 = sphi 0, %s138
      %s140 = sphi 0, %s138
      %s141 = sphi 0, %s140
      %s155 = sphi 0, %s141
      %s159 = sphi 0, %s159
      %s161 = sphi 0, %s159
      %s162 = sphi 0, %s161
      %s176 = sphi 0, %s162
      %s180 = sphi 0, %s180
      %s182 = sphi 0, %s180
      %s183 = sphi 0, %s182
      %s197 = sphi 0, %s183
      %s201 = sphi 0, %s201
      %s203 = sphi 0, %s201
      %s204 = sphi 0, %s203
      %s218 = sphi 0, %s204
      %s222 = sphi 0, %s222
      %s224 = sphi 0, %s222
      %s225 = sphi 0, %s224
      %s239 = sphi 0, %s225
      %s243 = sphi 0, %s243
      %s245 = sphi 0, %s243
      %s246 = sphi 0, %s245
      %s260 = sphi 0, %s246
      %s264 = sphi 0, %s264
      %s266 = sphi 0, %s264
      %s267 = sphi 0, %s266
      %s281 = sphi 0, %s267
      %s285 = sphi 0, %s285
      %s287 = sphi 0, %s285
      %s288 = sphi 0, %s287
      %s302 = sphi 0, %s288
    $region4: #{mi_estimator_forward.6} parent=1 // loop_header_branch
      %21 = sbr.rel (%p19) target = $region8
    $region5: #{mi_estimator_forward.6} parent=1 // loop_body
      %s23 = ssub.s32 %s18, 1
      %s24 = ssub.s32 %s18, 2
      %s31 = sadd.s32 1, %s26
      %p32 = scmp.ge.s32.totalorder %s31, 1
      %s33 = scalar_select %p32, 0, %s31
      %s34 = sadd.s32 1, %s25
      %s35 = scalar_select %p32, %s34, %s25
      %p36 = scmp.ge.s32.totalorder %s35, 2
      %s37 = scalar_select %p36, 0, %s35
      %s38 = ssub.s32 1, %s25
      %s39 = smul.u32 %s38, %s26
      %s40 = ssub.s32 1, %s37
      %s41 = smul.u32 %s40, %s33
      %s42 = ssub.s32 %s39, %s41
      %p43 = scmp.eq.s32.totalorder %s42, 0
      %s45 = sadd.s32 %s44, 1
      %s46 = scalar_select %p43, %s44, %s45
      %p49 = pneg %p43
      %p50 = scmp.eq.s32.totalorder %s18, 1
      %p51 = por %p49, %p50
      %p52 = scmp.ne.s32.totalorder %s44, %s47
      %p53 = scmp.eq.s32.totalorder %s18, 0
      %p54 = por %p52, %p53
      %p55 = scmp.ne.s32.totalorder %s44, %s47
      %p56 = scmp.eq.s32.totalorder %s23, 1
      %p57 = por %p55, %p56
      %p58 = scmp.ne.s32.totalorder %s47, %s48
      %p59 = scmp.eq.s32.totalorder %s23, 0
      %p60 = por %p58, %p59
      %p61 = scmp.ne.s32.totalorder %s47, %s48
      %p62 = scmp.eq.s32.totalorder %s24, 1
      %p63 = por %p61, %p62
      %p65 = scmp.ne.s32.totalorder %s48, %s64
      %p66 = scmp.eq.s32.totalorder %s24, 0
      %p67 = por %p65, %p66
      %s68 = smul.u32 %s25, %s26
      %s69 = smul.u32 %s37, %s33
      %s70 = ssub.s32 %s68, %s69
      %p71 = scmp.eq.s32.totalorder %s70, 0
      %s73 = sadd.s32 %s72, 1
      %s74 = scalar_select %p71, %s72, %s73
      %p77 = pneg %p71
      %p78 = scmp.eq.s32.totalorder %s18, 1
      %p79 = por %p77, %p78
      %p80 = scmp.ne.s32.totalorder %s72, %s75
      %p81 = scmp.eq.s32.totalorder %s18, 0
      %p82 = por %p80, %p81
      %p83 = scmp.ne.s32.totalorder %s72, %s75
      %p84 = scmp.eq.s32.totalorder %s23, 1
      %p85 = por %p83, %p84
      %p86 = scmp.ne.s32.totalorder %s75, %s76
      %p87 = scmp.eq.s32.totalorder %s23, 0
      %p88 = por %p86, %p87
      %p89 = scmp.ne.s32.totalorder %s75, %s76
      %p90 = scmp.eq.s32.totalorder %s24, 1
      %p91 = por %p89, %p90
      %p93 = scmp.ne.s32.totalorder %s76, %s92
      %p94 = scmp.eq.s32.totalorder %s24, 0
      %p95 = por %p93, %p94
      %s97 = sadd.s32 %s96, 1
      %p100 = scmp.eq.s32.totalorder %s18, 1
      %p101 = scmp.ne.s32.totalorder %s96, %s98
      %p102 = scmp.eq.s32.totalorder %s18, 0
      %p103 = por %p101, %p102
      %p104 = scmp.ne.s32.totalorder %s96, %s98
      %p105 = scmp.eq.s32.totalorder %s23, 1
      %p106 = por %p104, %p105
      %p107 = scmp.ne.s32.totalorder %s98, %s99
      %p108 = scmp.eq.s32.totalorder %s23, 0
      %p109 = por %p107, %p108
      %p110 = scmp.ne.s32.totalorder %s98, %s99
      %p111 = scmp.eq.s32.totalorder %s24, 1
      %p112 = por %p110, %p111
      %p114 = scmp.ne.s32.totalorder %s99, %s113
      %p115 = scmp.eq.s32.totalorder %s24, 0
      %p116 = por %p114, %p115
      %s118 = sadd.s32 %s117, 1
      %p121 = scmp.eq.s32.totalorder %s18, 1
      %p122 = scmp.ne.s32.totalorder %s117, %s119
      %p123 = scmp.eq.s32.totalorder %s18, 0
      %p124 = por %p122, %p123
      %p125 = scmp.ne.s32.totalorder %s117, %s119
      %p126 = scmp.eq.s32.totalorder %s23, 1
      %p127 = por %p125, %p126
      %p128 = scmp.ne.s32.totalorder %s119, %s120
      %p129 = scmp.eq.s32.totalorder %s23, 0
      %p130 = por %p128, %p129
      %p131 = scmp.ne.s32.totalorder %s119, %s120
      %p132 = scmp.eq.s32.totalorder %s24, 1
      %p133 = por %p131, %p132
      %p135 = scmp.ne.s32.totalorder %s120, %s134
      %p136 = scmp.eq.s32.totalorder %s24, 0
      %p137 = por %p135, %p136
      %s139 = sadd.s32 %s138, 1
      %p142 = scmp.eq.s32.totalorder %s18, 1
      %p143 = scmp.ne.s32.totalorder %s138, %s140
      %p144 = scmp.eq.s32.totalorder %s18, 0
      %p145 = por %p143, %p144
      %p146 = scmp.ne.s32.totalorder %s138, %s140
      %p147 = scmp.eq.s32.totalorder %s23, 1
      %p148 = por %p146, %p147
      %p149 = scmp.ne.s32.totalorder %s140, %s141
      %p150 = scmp.eq.s32.totalorder %s23, 0
      %p151 = por %p149, %p150
      %p152 = scmp.ne.s32.totalorder %s140, %s141
      %p153 = scmp.eq.s32.totalorder %s24, 1
      %p154 = por %p152, %p153
      %p156 = scmp.ne.s32.totalorder %s141, %s155
      %p157 = scmp.eq.s32.totalorder %s24, 0
      %p158 = por %p156, %p157
      %s160 = sadd.s32 %s159, 1
      %p163 = scmp.eq.s32.totalorder %s18, 1
      %p164 = scmp.ne.s32.totalorder %s159, %s161
      %p165 = scmp.eq.s32.totalorder %s18, 0
      %p166 = por %p164, %p165
      %p167 = scmp.ne.s32.totalorder %s159, %s161
      %p168 = scmp.eq.s32.totalorder %s23, 1
      %p169 = por %p167, %p168
      %p170 = scmp.ne.s32.totalorder %s161, %s162
      %p171 = scmp.eq.s32.totalorder %s23, 0
      %p172 = por %p170, %p171
      %p173 = scmp.ne.s32.totalorder %s161, %s162
      %p174 = scmp.eq.s32.totalorder %s24, 1
      %p175 = por %p173, %p174
      %p177 = scmp.ne.s32.totalorder %s162, %s176
      %p178 = scmp.eq.s32.totalorder %s24, 0
      %p179 = por %p177, %p178
      %s181 = sadd.s32 %s180, 1
      %p184 = scmp.eq.s32.totalorder %s18, 1
      %p185 = scmp.ne.s32.totalorder %s180, %s182
      %p186 = scmp.eq.s32.totalorder %s18, 0
      %p187 = por %p185, %p186
      %p188 = scmp.ne.s32.totalorder %s180, %s182
      %p189 = scmp.eq.s32.totalorder %s23, 1
      %p190 = por %p188, %p189
      %p191 = scmp.ne.s32.totalorder %s182, %s183
      %p192 = scmp.eq.s32.totalorder %s23, 0
      %p193 = por %p191, %p192
      %p194 = scmp.ne.s32.totalorder %s182, %s183
      %p195 = scmp.eq.s32.totalorder %s24, 1
      %p196 = por %p194, %p195
      %p198 = scmp.ne.s32.totalorder %s183, %s197
      %p199 = scmp.eq.s32.totalorder %s24, 0
      %p200 = por %p198, %p199
      %s202 = sadd.s32 %s201, 1
      %p205 = scmp.eq.s32.totalorder %s18, 1
      %p206 = scmp.ne.s32.totalorder %s201, %s203
      %p207 = scmp.eq.s32.totalorder %s18, 0
      %p208 = por %p206, %p207
      %p209 = scmp.ne.s32.totalorder %s201, %s203
      %p210 = scmp.eq.s32.totalorder %s23, 1
      %p211 = por %p209, %p210
      %p212 = scmp.ne.s32.totalorder %s203, %s204
      %p213 = scmp.eq.s32.totalorder %s23, 0
      %p214 = por %p212, %p213
      %p215 = scmp.ne.s32.totalorder %s203, %s204
      %p216 = scmp.eq.s32.totalorder %s24, 1
      %p217 = por %p215, %p216
      %p219 = scmp.ne.s32.totalorder %s204, %s218
      %p220 = scmp.eq.s32.totalorder %s24, 0
      %p221 = por %p219, %p220
      %s223 = sadd.s32 %s222, 1
      %p226 = scmp.eq.s32.totalorder %s18, 1
      %p227 = scmp.ne.s32.totalorder %s222, %s224
      %p228 = scmp.eq.s32.totalorder %s18, 0
      %p229 = por %p227, %p228
      %p230 = scmp.ne.s32.totalorder %s222, %s224
      %p231 = scmp.eq.s32.totalorder %s23, 1
      %p232 = por %p230, %p231
      %p233 = scmp.ne.s32.totalorder %s224, %s225
      %p234 = scmp.eq.s32.totalorder %s23, 0
      %p235 = por %p233, %p234
      %p236 = scmp.ne.s32.totalorder %s224, %s225
      %p237 = scmp.eq.s32.totalorder %s24, 1
      %p238 = por %p236, %p237
      %p240 = scmp.ne.s32.totalorder %s225, %s239
      %p241 = scmp.eq.s32.totalorder %s24, 0
      %p242 = por %p240, %p241
      %s244 = sadd.s32 %s243, 1
      %p247 = scmp.eq.s32.totalorder %s18, 1
      %p248 = scmp.ne.s32.totalorder %s243, %s245
      %p249 = scmp.eq.s32.totalorder %s18, 0
      %p250 = por %p248, %p249
      %p251 = scmp.ne.s32.totalorder %s243, %s245
      %p252 = scmp.eq.s32.totalorder %s23, 1
      %p253 = por %p251, %p252
      %p254 = scmp.ne.s32.totalorder %s245, %s246
      %p255 = scmp.eq.s32.totalorder %s23, 0
      %p256 = por %p254, %p255
      %p257 = scmp.ne.s32.totalorder %s245, %s246
      %p258 = scmp.eq.s32.totalorder %s24, 1
      %p259 = por %p257, %p258
      %p261 = scmp.ne.s32.totalorder %s246, %s260
      %p262 = scmp.eq.s32.totalorder %s24, 0
      %p263 = por %p261, %p262
      %s265 = sadd.s32 %s264, 1
      %p268 = scmp.eq.s32.totalorder %s18, 1
      %p269 = scmp.ne.s32.totalorder %s264, %s266
      %p270 = scmp.eq.s32.totalorder %s18, 0
      %p271 = por %p269, %p270
      %p272 = scmp.ne.s32.totalorder %s264, %s266
      %p273 = scmp.eq.s32.totalorder %s23, 1
      %p274 = por %p272, %p273
      %p275 = scmp.ne.s32.totalorder %s266, %s267
      %p276 = scmp.eq.s32.totalorder %s23, 0
      %p277 = por %p275, %p276
      %p278 = scmp.ne.s32.totalorder %s266, %s267
      %p279 = scmp.eq.s32.totalorder %s24, 1
      %p280 = por %p278, %p279
      %p282 = scmp.ne.s32.totalorder %s267, %s281
      %p283 = scmp.eq.s32.totalorder %s24, 0
      %p284 = por %p282, %p283
      %s286 = sadd.s32 %s285, 1
      %p289 = scmp.eq.s32.totalorder %s18, 1
      %p290 = scmp.ne.s32.totalorder %s285, %s287
      %p291 = scmp.eq.s32.totalorder %s18, 0
      %p292 = por %p290, %p291
      %p293 = scmp.ne.s32.totalorder %s285, %s287
      %p294 = scmp.eq.s32.totalorder %s23, 1
      %p295 = por %p293, %p294
      %p296 = scmp.ne.s32.totalorder %s287, %s288
      %p297 = scmp.eq.s32.totalorder %s23, 0
      %p298 = por %p296, %p297
      %p299 = scmp.ne.s32.totalorder %s287, %s288
      %p300 = scmp.eq.s32.totalorder %s24, 1
      %p301 = por %p299, %p300
      %p303 = scmp.ne.s32.totalorder %s288, %s302
      %p304 = scmp.eq.s32.totalorder %s24, 0
      %p305 = por %p303, %p304
      %p306 = scmp.le.s32.totalorder 1, %s18
      %p307 = scmp.lt.s32.totalorder %s18, 3
      %p308 = pnand %p306, %p307
      %p309 = pneg %p308
      // Predicated region
      $region9: #{mi_estimator_forward.6} parent=5 // pred_check
        _
      $region10: #{mi_estimator_forward.6} parent=5 // pred_check_branch
        %311 = sbr.rel (%p308) target = $region12
      $region11: #{mi_estimator_forward.6} parent=5 // pred_region
        %s312 = ssub.s32 %s18, 1
        // Predicated region
        $region13: #{mi_estimator_forward.6} parent=11 // pred_check
          %p313 = pneg %p109
        $region14: #{mi_estimator_forward.6} parent=11 // pred_check_branch
          %315 = sbr.rel (%p313) target = $region16
        $region15: #{mi_estimator_forward.6} parent=11 // pred_region
          _
        $region16: #{mi_estimator_forward.6} parent=11 // pred_fallthru
          _
        // Predicated region
        $region17: #{mi_estimator_forward.6} parent=11 // pred_check
          %p316 = pneg %p130
        $region18: #{mi_estimator_forward.6} parent=11 // pred_check_branch
          %318 = sbr.rel (%p316) target = $region20
        $region19: #{mi_estimator_forward.6} parent=11 // pred_region
          _
        $region20: #{mi_estimator_forward.6} parent=11 // pred_fallthru
          _
        // Predicated region
        $region21: #{mi_estimator_forward.6} parent=11 // pred_check
          %p319 = pneg %p151
        $region22: #{mi_estimator_forward.6} parent=11 // pred_check_branch
          %321 = sbr.rel (%p319) target = $region24
        $region23: #{mi_estimator_forward.6} parent=11 // pred_region
          _
        $region24: #{mi_estimator_forward.6} parent=11 // pred_fallthru
          _
        // Predicated region
        $region25: #{mi_estimator_forward.6} parent=11 // pred_check
          %p322 = pneg %p172
        $region26: #{mi_estimator_forward.6} parent=11 // pred_check_branch
          %324 = sbr.rel (%p322) target = $region28
        $region27: #{mi_estimator_forward.6} parent=11 // pred_region
          _
        $region28: #{mi_estimator_forward.6} parent=11 // pred_fallthru
          _
        // Predicated region
        $region29: #{mi_estimator_forward.6} parent=11 // pred_check
          %p325 = pneg %p193
        $region30: #{mi_estimator_forward.6} parent=11 // pred_check_branch
          %327 = sbr.rel (%p325) target = $region32
        $region31: #{mi_estimator_forward.6} parent=11 // pred_region
          _
        $region32: #{mi_estimator_forward.6} parent=11 // pred_fallthru
          _
        // Predicated region
        $region33: #{mi_estimator_forward.6} parent=11 // pred_check
          %p328 = pneg %p214
        $region34: #{mi_estimator_forward.6} parent=11 // pred_check_branch
          %330 = sbr.rel (%p328) target = $region36
        $region35: #{mi_estimator_forward.6} parent=11 // pred_region
          _
        $region36: #{mi_estimator_forward.6} parent=11 // pred_fallthru
          _
        // Predicated region
        $region37: #{mi_estimator_forward.6} parent=11 // pred_check
          %p331 = pneg %p235
        $region38: #{mi_estimator_forward.6} parent=11 // pred_check_branch
          %333 = sbr.rel (%p331) target = $region40
        $region39: #{mi_estimator_forward.6} parent=11 // pred_region
          _
        $region40: #{mi_estimator_forward.6} parent=11 // pred_fallthru
          _
        // Predicated region
        $region41: #{mi_estimator_forward.6} parent=11 // pred_check
          %p334 = pneg %p256
        $region42: #{mi_estimator_forward.6} parent=11 // pred_check_branch
          %336 = sbr.rel (%p334) target = $region44
        $region43: #{mi_estimator_forward.6} parent=11 // pred_region
          _
        $region44: #{mi_estimator_forward.6} parent=11 // pred_fallthru
          _
        // Predicated region
        $region45: #{mi_estimator_forward.6} parent=11 // pred_check
          %p337 = pneg %p277
        $region46: #{mi_estimator_forward.6} parent=11 // pred_check_branch
          %339 = sbr.rel (%p337) target = $region48
        $region47: #{mi_estimator_forward.6} parent=11 // pred_region
          _
        $region48: #{mi_estimator_forward.6} parent=11 // pred_fallthru
          _
      $region12: #{mi_estimator_forward.6} parent=5 // pred_fallthru
        _
      %p340 = scmp.lt.s32.totalorder %s18, 2
      // Predicated region
      $region49: #{mi_estimator_forward.6} parent=5 // pred_check
        %p341 = pneg %p340
      $region50: #{mi_estimator_forward.6} parent=5 // pred_check_branch
        %343 = sbr.rel (%p341) target = $region52
      $region51: #{mi_estimator_forward.6} parent=5 // pred_region
        // Predicated region
        $region53: #{mi_estimator_forward.6} parent=51 // pred_check
          %p344 = pneg %p54
        $region54: #{mi_estimator_forward.6} parent=51 // pred_check_branch
          %346 = sbr.rel (%p344) target = $region56
        $region55: #{mi_estimator_forward.6} parent=51 // pred_region
          %s347 = ssub.s32 1, %s25
          %s348 = smul.u32 %s347, %s26
          %s349 = smul.u32 2, %s348
          %p350 = scmp.lt.s32.totalorder %s349, 1
          %s351 = scalar_select %p350, %s349, 1
          %s352 = smul.addr %s351, 2
          %s353 = smul.addr %s352, 8
          %s354 = scalar_lea.vmem %s0, %s353
          %s355 = ssub.s32 1, %s25
          %s356 = smul.u32 %s355, %s26
          %s357 = smul.u32 2, %s356
        $region56: #{mi_estimator_forward.6} parent=51 // pred_fallthru
          _
        // Predicated region
        $region57: #{mi_estimator_forward.6} parent=51 // pred_check
          %p358 = pneg %p82
        $region58: #{mi_estimator_forward.6} parent=51 // pred_check_branch
          %360 = sbr.rel (%p358) target = $region60
        $region59: #{mi_estimator_forward.6} parent=51 // pred_region
          %s361 = smul.u32 %s25, %s26
          %p362 = scmp.lt.s32.totalorder %s361, 0
          %s363 = scalar_select %p362, %s361, 0
          %s364 = smul.addr %s363, 4
          %s365 = smul.addr %s364, 4
          %s366 = scalar_lea.vmem %s1, %s365
          %s367 = smul.u32 %s25, %s26
        $region60: #{mi_estimator_forward.6} parent=51 // pred_fallthru
          _
      $region52: #{mi_estimator_forward.6} parent=5 // pred_fallthru
        _
      %p368 = scmp.le.s32.totalorder 1, %s18
      %p369 = scmp.lt.s32.totalorder %s18, 3
      %p370 = pnand %p368, %p369
      %p371 = pneg %p370
      // Predicated region
      $region61: #{mi_estimator_forward.6} parent=5 // pred_check
        _
      $region62: #{mi_estimator_forward.6} parent=5 // pred_check_branch
        %373 = sbr.rel (%p370) target = $region64
      $region63: #{mi_estimator_forward.6} parent=5 // pred_region
        %s374 = ssub.s32 %s18, 1
        %s375 = ssub.s32 1, %s27
        %s376 = smul.u32 %s375, %s28
        %s377 = smul.u32 2, %s376
        %p378 = scmp.lt.s32.totalorder %s377, 1
        %s379 = scalar_select %p378, %s377, 1
        %s380 = smul.addr %s379, 2
        %s381 = smul.addr %s380, 8
        %s382 = scalar_lea.vmem %s0, %s381
        %p383 = pneg %p60
        %p384 = pneg %p57
        %s385 = smul.u32 %s27, %s28
        %p386 = scmp.lt.s32.totalorder %s385, 0
        %s387 = scalar_select %p386, %s385, 0
        %s388 = smul.addr %s387, 4
        %s389 = smul.addr %s388, 4
        %s390 = scalar_lea.vmem %s1, %s389
        %p391 = pneg %p88
        %p392 = pneg %p85
        %p393 = pneg %p109
        %p394 = pneg %p106
        %p395 = pneg %p130
        %p396 = pneg %p127
        %p397 = pneg %p151
        %p398 = pneg %p148
        %p399 = pneg %p172
        %p400 = pneg %p169
        %p401 = pneg %p193
        %p402 = pneg %p190
        %p403 = pneg %p214
        %p404 = pneg %p211
        %p405 = pneg %p235
        %p406 = pneg %p232
        %p407 = pneg %p256
        %p408 = pneg %p253
        %p409 = pneg %p277
        %p410 = pneg %p274
        %p411 = pneg %p298
        %p412 = pneg %p295
        %s413 = ssub.s32 1, %s27
        %s414 = smul.u32 %s413, %s28
        %s415 = smul.u32 2, %s414
        %p416 = scmp.lt.s32.totalorder %s415, 1
        %s417 = scalar_select %p416, %s415, 1
        %s418 = smul.addr %s417, 2
        %s419 = smul.addr %s418, 8
        %s420 = scalar_lea.vmem %s0, %s419
        %s421 = ssub.s32 1, %s27
        %s422 = smul.u32 %s421, %s28
        %s423 = smul.u32 2, %s422
        %s424 = smul.u32 %s27, %s28
        %p425 = scmp.lt.s32.totalorder %s424, 0
        %s426 = scalar_select %p425, %s424, 0
        %s427 = smul.addr %s426, 4
        %s428 = smul.addr %s427, 4
        %s429 = scalar_lea.vmem %s1, %s428
        %s430 = smul.u32 %s27, %s28
        %p431 = scmp.eq.s32.totalorder %s27, 0
        %p432 = scmp.eq.s32.totalorder %s28, 0
        %p433 = pnand %p431, %p432
        %p434 = pneg %p433
        // Predicated region
        $region65: #{mi_estimator_forward.6} parent=63 // pred_check
          _
        $region66: #{mi_estimator_forward.6} parent=63 // pred_check_branch
          %436 = sbr.rel (%p433) target = $region68
        $region67: #{mi_estimator_forward.6} parent=63 // pred_region
          %vm437 = vcmask 7168
          %438 = vst.msk [vmem:[#allocation3] sm:$0xff] %vm437, 0.0
          %vm439 = vcmask 3072
          %440 = vst.msk [vmem:[#allocation3 + $0x8] sm:$0xf] %vm439, 0.0
          %441 = vst.msk [vmem:[#allocation4] sm:$0xff] %vm437, 0.0
          %442 = vst.msk [vmem:[#allocation4 + $0x8] sm:$0xf] %vm439, 0.0
          %vm443 = vcmask 0
          %444 = vst.msk [vmem:[#allocation5] sm:$0x1] %vm443, 0.0
        $region68: #{mi_estimator_forward.6} parent=63 // pred_fallthru
          _
        // Predicated region
        $region69: #{mi_estimator_forward.6} parent=63 // pred_check
          %p445 = pneg %p431
        $region70: #{mi_estimator_forward.6} parent=63 // pred_check_branch
          %447 = sbr.rel (%p445) target = $region72
        $region71: #{mi_estimator_forward.6} parent=63 // pred_region
          %v448 = vld [vmem:[%s2] sm:$0xff]
          %v449 = vld [vmem:[%s2 + $0x8] sm:$0xff]
          %v450 = vld [vmem:[%s2 + $0x10] sm:$0xff]
          %v451 = vld [vmem:[%s2 + $0x18] sm:$0xff]
          %v452 = vld [vmem:[%s2 + $0x20] sm:$0xff]
          %v453 = vld [vmem:[%s2 + $0x28] sm:$0xff]
          %v454 = vld [vmem:[%s2 + $0x30] sm:$0xff]
          %v455 = vld [vmem:[%s2 + $0x38] sm:$0xff]
          %v456 = vld [vmem:[%s2 + $0x40] sm:$0xff]
          %v457 = vld [vmem:[%s2 + $0x48] sm:$0xff]
          %v458 = vld [vmem:[%s2 + $0x50] sm:$0xff]
          %v459 = vld [vmem:[%s2 + $0x58] sm:$0xff]
          %v460 = vld [vmem:[%s2 + $0x60] sm:$0xff]
          %v461 = vld [vmem:[%s2 + $0x68] sm:$0xff]
          %v462 = vld [vmem:[%s2 + $0x70] sm:$0xff]
          %v463 = vld [vmem:[%s2 + $0x78] sm:$0xff]
          %v464 = vld [vmem:[%s4] sm:$0xff]
          %v465 = vld [vmem:[%s4 + $0x8] sm:$0xff]
          %v466 = vld [vmem:[%s4 + $0x10] sm:$0xff]
          %v467 = vld [vmem:[%s4 + $0x18] sm:$0xff]
          %v468 = vld [vmem:[%s4 + $0x20] sm:$0xff]
          %v469 = vld [vmem:[%s4 + $0x28] sm:$0xff]
          %v470 = vld [vmem:[%s4 + $0x30] sm:$0xff]
          %v471 = vld [vmem:[%s4 + $0x38] sm:$0xff]
          %v472 = vld [vmem:[%s4 + $0x40] sm:$0xff]
          %v473 = vld [vmem:[%s4 + $0x48] sm:$0xff]
          %v474 = vld [vmem:[%s4 + $0x50] sm:$0xff]
          %v475 = vld [vmem:[%s4 + $0x58] sm:$0xff]
          %v476 = vld [vmem:[%s4 + $0x60] sm:$0xff]
          %v477 = vld [vmem:[%s4 + $0x68] sm:$0xf]
          %v478 = vld [vmem:[%s3] sm:$0xf]
          %v479 = vld [vmem:[%s3 + $0x4] sm:$0xf]
          %v480 = vld [vmem:[%s3 + $0x8] sm:$0xf]
          %v481 = vld [vmem:[%s3 + $0xc] sm:$0xf]
          %v482 = vld [vmem:[%s3 + $0x10] sm:$0xf]
          %v483 = vld [vmem:[%s3 + $0x14] sm:$0xf]
          %v484 = vld [vmem:[%s3 + $0x18] sm:$0xf]
          %v485 = vld [vmem:[%s3 + $0x1c] sm:$0xf]
          %v486 = vld [vmem:[%s3 + $0x20] sm:$0xf]
          %v487 = vld [vmem:[%s420] sm:$0xff]
          %v488 = vld [vmem:[%s420 + $0x8] sm:$0xff]
          %vm489 = vcmask 130048
          %v491 = vsel %vm489, %v464, 0
          %v494 = vsel %vm489, %v465, 0
          %v497 = vsel %vm489, %v466, 0
          %v500 = vsel %vm489, %v467, 0
          %v503 = vsel %vm489, %v468, 0
          %v506 = vsel %vm489, %v469, 0
          %v509 = vsel %vm489, %v470, 0
          %v512 = vsel %vm489, %v471, 0
          %v515 = vsel %vm489, %v472, 0
          %v518 = vsel %vm489, %v473, 0
          %v521 = vsel %vm489, %v474, 0
          %v524 = vsel %vm489, %v475, 0
          %v527 = vsel %vm489, %v476, 0
          %v530 = vsel %vm489, %v477, 0
          %532 = vmatprep.subr.mxu0 0.0
          %533 = vmatpush1.msra.mxu0 0.0
          %534 = vmatprep.subr.mxu0 0.0
          %535 = vmatpush1.msra.mxu0 0.0
          %536 = vmatprep.subr.mxu0 0.0
          %537 = vmatpush1.msra.mxu0 0.0
          %538 = vmatprep.subr.mxu0 0.0
          %539 = vmatpush1.msra.mxu0 0.0
          %540 = vmatprep.subr.mxu0 0.0
          %541 = vmatpush1.msra.mxu0 0.0
          %542 = vmatprep.subr.mxu0 0.0
          %543 = vmatpush1.msra.mxu0 0.0
          %544 = vmatprep.subr.mxu0 0.0
          %545 = vmatpush1.msra.mxu0 0.0
          %546 = vmatprep.subr.mxu0 0.0
          %547 = vmatpush1.msra.mxu0 0.0
          %548 = vmatprep.subr.mxu0 0.0
          %549 = vmatpush1.msra.mxu0 0.0
          %550 = vmatprep.subr.mxu0 0.0
          %551 = vmatpush1.msra.mxu0 0.0
          %552 = vmatprep.subr.mxu0 0.0
          %553 = vmatpush1.msra.mxu0 0.0
          %554 = vmatprep.subr.mxu0 0.0
          %555 = vmatpush1.msra.mxu0 0.0
          %556 = vmatprep.subr.mxu0 0.0
          %557 = vmatpush1.msra.mxu0 0.0
          %558 = vmatprep.subr.mxu0 0.0
          %559 = vmatpush1.msra.mxu0 0.0
          %560 = vmatprep.subr.mxu0 0.0
          %561 = vmatpush1.msra.mxu0 %v488
          %562 = vmatprep.subr.mxu0 0.0
          %563 = vmatpush1.msra.mxu0 %v487
          %564 = vmatprep.subr.mxu0 0.0
          %565 = vmatpush2.msra.mxu0 0.0
          %566 = vmatprep.subr.mxu0 0.0
          %567 = vmatpush2.msra.mxu0 0.0
          %568 = vmatprep.subr.mxu0 0.0
          %569 = vmatpush2.msra.mxu0 0.0
          %570 = vmatprep.subr.mxu0 0.0
          %571 = vmatpush2.msra.mxu0 0.0
          %572 = vmatprep.subr.mxu0 0.0
          %573 = vmatpush2.msra.mxu0 0.0
          %574 = vmatprep.subr.mxu0 0.0
          %575 = vmatpush2.msra.mxu0 0.0
          %576 = vmatprep.subr.mxu0 0.0
          %577 = vmatpush2.msra.mxu0 0.0
          %578 = vmatprep.subr.mxu0 0.0
          %579 = vmatpush2.msra.mxu0 0.0
          %580 = vmatprep.subr.mxu0 0.0
          %581 = vmatpush2.msra.mxu0 0.0
          %582 = vmatprep.subr.mxu0 0.0
          %583 = vmatpush2.msra.mxu0 0.0
          %584 = vmatprep.subr.mxu0 0.0
          %585 = vmatpush2.msra.mxu0 0.0
          %586 = vmatprep.subr.mxu0 0.0
          %587 = vmatpush2.msra.mxu0 0.0
          %588 = vmatprep.subr.mxu0 0.0
          %589 = vmatpush2.msra.mxu0 0.0
          %590 = vmatprep.subr.mxu0 0.0
          %591 = vmatpush2.msra.mxu0 0.0
          %592 = vmatprep.subr.mxu0 0.0
          %593 = vmatpush2.msra.mxu0 0.0
          %594 = vmatprep.subr.mxu0 0.0
          %595 = vmatpush2.msra.mxu0 0.0
          %596 = vmatprep.mubr.f32.mxu0 0.0
          %597 = vmatmul.mubr.f32.gmra.mxu0 %v491
          %v598 = vpop.f32.mrf.mxu0
          %v599 = vadd.f32 0.0, %v598
          %v600 = vpop.f32.mrf.mxu0
          %601 = vmatprep.mubr.f32.mxu0 0.0
          %602 = vmatmul.mubr.f32.gmra.mxu0 %v494
          %v603 = vpop.f32.mrf.mxu0
          %v604 = vadd.f32 0.0, %v603
          %v605 = vpop.f32.mrf.mxu0
          %606 = vmatprep.mubr.f32.mxu0 0.0
          %607 = vmatmul.mubr.f32.gmra.mxu0 %v497
          %v608 = vpop.f32.mrf.mxu0
          %v609 = vadd.f32 0.0, %v608
          %v610 = vpop.f32.mrf.mxu0
          %611 = vmatprep.mubr.f32.mxu0 0.0
          %612 = vmatmul.mubr.f32.gmra.mxu0 %v500
          %v613 = vpop.f32.mrf.mxu0
          %v614 = vadd.f32 0.0, %v613
          %v615 = vpop.f32.mrf.mxu0
          %616 = vmatprep.mubr.f32.mxu0 0.0
          %617 = vmatmul.mubr.f32.gmra.mxu0 %v503
          %v618 = vpop.f32.mrf.mxu0
          %v619 = vadd.f32 0.0, %v618
          %v620 = vpop.f32.mrf.mxu0
          %621 = vmatprep.mubr.f32.mxu0 0.0
          %622 = vmatmul.mubr.f32.gmra.mxu0 %v506
          %v623 = vpop.f32.mrf.mxu0
          %v624 = vadd.f32 0.0, %v623
          %v625 = vpop.f32.mrf.mxu0
          %626 = vmatprep.mubr.f32.mxu0 0.0
          %627 = vmatmul.mubr.f32.gmra.mxu0 %v509
          %v628 = vpop.f32.mrf.mxu0
          %v629 = vadd.f32 0.0, %v628
          %v630 = vpop.f32.mrf.mxu0
          %631 = vmatprep.mubr.f32.mxu0 0.0
          %632 = vmatmul.mubr.f32.gmra.mxu0 %v512
          %v633 = vpop.f32.mrf.mxu0
          %v634 = vadd.f32 0.0, %v633
          %v635 = vpop.f32.mrf.mxu0
          %636 = vmatprep.mubr.f32.mxu0 0.0
          %637 = vmatmul.mubr.f32.gmra.mxu0 %v515
          %v638 = vpop.f32.mrf.mxu0
          %v639 = vadd.f32 0.0, %v638
          %v640 = vpop.f32.mrf.mxu0
          %641 = vmatprep.mubr.f32.mxu0 0.0
          %642 = vmatmul.mubr.f32.gmra.mxu0 %v518
          %v643 = vpop.f32.mrf.mxu0
          %v644 = vadd.f32 0.0, %v643
          %v645 = vpop.f32.mrf.mxu0
          %646 = vmatprep.mubr.f32.mxu0 0.0
          %647 = vmatmul.mubr.f32.gmra.mxu0 %v521
          %v648 = vpop.f32.mrf.mxu0
          %v649 = vadd.f32 0.0, %v648
          %v650 = vpop.f32.mrf.mxu0
          %651 = vmatprep.mubr.f32.mxu0 0.0
          %652 = vmatmul.mubr.f32.gmra.mxu0 %v524
          %v653 = vpop.f32.mrf.mxu0
          %v654 = vadd.f32 0.0, %v653
          %v655 = vpop.f32.mrf.mxu0
          %656 = vmatprep.mubr.f32.mxu0 0.0
          %657 = vmatmul.mubr.f32.gmra.mxu0 %v527
          %v658 = vpop.f32.mrf.mxu0
          %v659 = vadd.f32 0.0, %v658
          %v660 = vpop.f32.mrf.mxu0
          %661 = vmatprep.mubr.f32.mxu0 0.0
          %662 = vmatmul.mubr.f32.gmra.mxu0 %v530
          %v663 = vpop.f32.mrf.mxu0
          %v664 = vadd.f32 0.0, %v663
          %v665 = vpop.f32.mrf.mxu0
          %666 = vdwg.mxu0
          %vm667 = vcmask 523264
          %v669 = vsel %vm667, %v599, 0
          %v672 = vsel %vm667, %v604, 0
          %v675 = vsel %vm667, %v609, 0
          %v678 = vsel %vm667, %v614, 0
          %v681 = vsel %vm667, %v619, 0
          %v684 = vsel %vm667, %v624, 0
          %v687 = vsel %vm667, %v629, 0
          %v690 = vsel %vm667, %v634, 0
          %v693 = vsel %vm667, %v639, 0
          %v696 = vsel %vm667, %v644, 0
          %v699 = vsel %vm667, %v649, 0
          %v702 = vsel %vm667, %v654, 0
          %v705 = vsel %vm667, %v659, 0
          %v708 = vsel %vm667, %v664, 0
          %710 = vmatprep.subr.mxu0 0.0
          %711 = vmatpush1.msra.mxu0 0.0
          %712 = vmatprep.subr.mxu0 0.0
          %713 = vmatpush1.msra.mxu0 0.0
          %714 = vmatprep.subr.mxu0 0.0
          %715 = vmatpush1.msra.mxu0 0.0
          %716 = vmatprep.subr.mxu0 0.0
          %717 = vmatpush1.msra.mxu0 0.0
          %718 = vmatprep.subr.mxu0 0.0
          %719 = vmatpush1.msra.mxu0 0.0
          %720 = vmatprep.subr.mxu0 0.0
          %721 = vmatpush1.msra.mxu0 0.0
          %722 = vmatprep.subr.mxu0 0.0
          %723 = vmatpush1.msra.mxu0 0.0
          %724 = vmatprep.subr.mxu0 0.0
          %725 = vmatpush1.msra.mxu0 0.0
          %726 = vmatprep.subr.mxu0 %v463
          %727 = vmatpush1.msra.mxu0 %v462
          %728 = vmatprep.subr.mxu0 %v461
          %729 = vmatpush1.msra.mxu0 %v460
          %730 = vmatprep.subr.mxu0 %v459
          %731 = vmatpush1.msra.mxu0 %v458
          %732 = vmatprep.subr.mxu0 %v457
          %733 = vmatpush1.msra.mxu0 %v456
          %734 = vmatprep.subr.mxu0 %v455
          %735 = vmatpush1.msra.mxu0 %v454
          %736 = vmatprep.subr.mxu0 %v453
          %737 = vmatpush1.msra.mxu0 %v452
          %738 = vmatprep.subr.mxu0 %v451
          %739 = vmatpush1.msra.mxu0 %v450
          %740 = vmatprep.subr.mxu0 %v449
          %741 = vmatpush1.msra.mxu0 %v448
          %742 = vmatprep.subr.mxu0 0.0
          %743 = vmatpush2.msra.mxu0 0.0
          %744 = vmatprep.subr.mxu0 0.0
          %745 = vmatpush2.msra.mxu0 0.0
          %746 = vmatprep.subr.mxu0 0.0
          %747 = vmatpush2.msra.mxu0 0.0
          %748 = vmatprep.subr.mxu0 0.0
          %749 = vmatpush2.msra.mxu0 0.0
          %750 = vmatprep.subr.mxu0 0.0
          %751 = vmatpush2.msra.mxu0 0.0
          %752 = vmatprep.subr.mxu0 0.0
          %753 = vmatpush2.msra.mxu0 0.0
          %754 = vmatprep.subr.mxu0 0.0
          %755 = vmatpush2.msra.mxu0 0.0
          %756 = vmatprep.subr.mxu0 0.0
          %757 = vmatpush2.msra.mxu0 0.0
          %758 = vmatprep.subr.mxu0 0.0
          %759 = vmatpush2.msra.mxu0 0.0
          %760 = vmatprep.subr.mxu0 0.0
          %761 = vmatpush2.msra.mxu0 0.0
          %762 = vmatprep.subr.mxu0 0.0
          %763 = vmatpush2.msra.mxu0 0.0
          %764 = vmatprep.subr.mxu0 0.0
          %765 = vmatpush2.msra.mxu0 0.0
          %766 = vmatprep.subr.mxu0 0.0
          %767 = vmatpush2.msra.mxu0 0.0
          %768 = vmatprep.subr.mxu0 0.0
          %769 = vmatpush2.msra.mxu0 0.0
          %770 = vmatprep.subr.mxu0 0.0
          %771 = vmatpush2.msra.mxu0 0.0
          %772 = vmatprep.subr.mxu0 0.0
          %773 = vmatpush2.msra.mxu0 0.0
          %774 = vmatprep.mubr.f32.mxu0 0.0
          %775 = vmatmul.mubr.f32.gmra.mxu0 %v669
          %v776 = vpop.f32.mrf.mxu0
          %v777 = vadd.f32 0.0, %v776
          %v778 = vpop.f32.mrf.mxu0
          %v779 = vadd.f32 0.0, %v778
          %780 = vmatprep.mubr.f32.mxu0 0.0
          %781 = vmatmul.mubr.f32.gmra.mxu0 %v672
          %v782 = vpop.f32.mrf.mxu0
          %v783 = vadd.f32 0.0, %v782
          %v784 = vpop.f32.mrf.mxu0
          %v785 = vadd.f32 0.0, %v784
          %786 = vmatprep.mubr.f32.mxu0 0.0
          %787 = vmatmul.mubr.f32.gmra.mxu0 %v675
          %v788 = vpop.f32.mrf.mxu0
          %v789 = vadd.f32 0.0, %v788
          %v790 = vpop.f32.mrf.mxu0
          %v791 = vadd.f32 0.0, %v790
          %792 = vmatprep.mubr.f32.mxu0 0.0
          %793 = vmatmul.mubr.f32.gmra.mxu0 %v678
          %v794 = vpop.f32.mrf.mxu0
          %v795 = vadd.f32 0.0, %v794
          %v796 = vpop.f32.mrf.mxu0
          %v797 = vadd.f32 0.0, %v796
          %798 = vmatprep.mubr.f32.mxu0 0.0
          %799 = vmatmul.mubr.f32.gmra.mxu0 %v681
          %v800 = vpop.f32.mrf.mxu0
          %v801 = vadd.f32 0.0, %v800
          %v802 = vpop.f32.mrf.mxu0
          %v803 = vadd.f32 0.0, %v802
          %804 = vmatprep.mubr.f32.mxu0 0.0
          %805 = vmatmul.mubr.f32.gmra.mxu0 %v684
          %v806 = vpop.f32.mrf.mxu0
          %v807 = vadd.f32 0.0, %v806
          %v808 = vpop.f32.mrf.mxu0
          %v809 = vadd.f32 0.0, %v808
          %810 = vmatprep.mubr.f32.mxu0 0.0
          %811 = vmatmul.mubr.f32.gmra.mxu0 %v687
          %v812 = vpop.f32.mrf.mxu0
          %v813 = vadd.f32 0.0, %v812
          %v814 = vpop.f32.mrf.mxu0
          %v815 = vadd.f32 0.0, %v814
          %816 = vmatprep.mubr.f32.mxu0 0.0
          %817 = vmatmul.mubr.f32.gmra.mxu0 %v690
          %v818 = vpop.f32.mrf.mxu0
          %v819 = vadd.f32 0.0, %v818
          %v820 = vpop.f32.mrf.mxu0
          %v821 = vadd.f32 0.0, %v820
          %822 = vmatprep.mubr.f32.mxu0 0.0
          %823 = vmatmul.mubr.f32.gmra.mxu0 %v693
          %v824 = vpop.f32.mrf.mxu0
          %v825 = vadd.f32 0.0, %v824
          %v826 = vpop.f32.mrf.mxu0
          %v827 = vadd.f32 0.0, %v826
          %828 = vmatprep.mubr.f32.mxu0 0.0
          %829 = vmatmul.mubr.f32.gmra.mxu0 %v696
          %v830 = vpop.f32.mrf.mxu0
          %v831 = vadd.f32 0.0, %v830
          %v832 = vpop.f32.mrf.mxu0
          %v833 = vadd.f32 0.0, %v832
          %834 = vmatprep.mubr.f32.mxu0 0.0
          %835 = vmatmul.mubr.f32.gmra.mxu0 %v699
          %v836 = vpop.f32.mrf.mxu0
          %v837 = vadd.f32 0.0, %v836
          %v838 = vpop.f32.mrf.mxu0
          %v839 = vadd.f32 0.0, %v838
          %840 = vmatprep.mubr.f32.mxu0 0.0
          %841 = vmatmul.mubr.f32.gmra.mxu0 %v702
          %v842 = vpop.f32.mrf.mxu0
          %v843 = vadd.f32 0.0, %v842
          %v844 = vpop.f32.mrf.mxu0
          %v845 = vadd.f32 0.0, %v844
          %846 = vmatprep.mubr.f32.mxu0 0.0
          %847 = vmatmul.mubr.f32.gmra.mxu0 %v705
          %v848 = vpop.f32.mrf.mxu0
          %v849 = vadd.f32 0.0, %v848
          %v850 = vpop.f32.mrf.mxu0
          %v851 = vadd.f32 0.0, %v850
          %852 = vmatprep.mubr.f32.mxu0 0.0
          %853 = vmatmul.mubr.f32.gmra.mxu0 %v708
          %v854 = vpop.f32.mrf.mxu0
          %v855 = vadd.f32 0.0, %v854
          %v856 = vpop.f32.mrf.mxu0
          %v857 = vadd.f32 0.0, %v856
          %858 = vdwg.mxu0
          %863 = vrot.lane.b32.xlu0 %v777, 17
          %v864 = vpop.permute.xlu0 %863
          %865 = vrot.lane.b32.xlu0 %v779, 17
          %v866 = vpop.permute.xlu0 %865
          %867 = vrot.lane.b32.xlu0 %v783, 17
          %v868 = vpop.permute.xlu0 %867
          %869 = vrot.lane.b32.xlu0 %v785, 17
          %v870 = vpop.permute.xlu0 %869
          %vm871 = vcmask 138240
          %v872 = vsel %vm871, %v864, %v866
          %v873 = vsel %vm871, %v868, %v870
          %v878 = vsel %vm871, 0.0, %v864
          %v879 = vsel %vm871, 0.0, %v868
          %v881 = vlaneseq
          %v882 = vshrl.u32 %v881, 7
          %v883 = vsub.s32 0, %v882
          %v884 = vrot.slane %v478, %v883
          %v885 = vlaneseq
          %v886 = vshrl.u32 %v885, 7
          %v887 = vsub.s32 1, %v886
          %v888 = vrot.slane %v478, %v887
          %v891 = vmul.f32 %v878, %v884
          %v892 = vmul.f32 %v872, %v888
          %v893 = vmul.f32 %v879, %v884
          %v894 = vmul.f32 %v873, %v888
          %v895 = vadd.f32 %v891, 0.0
          %v896 = vadd.f32 %v892, 0.0
          %v897 = vadd.f32 %v893, 0.0
          %v898 = vadd.f32 %v894, 0.0
          %vm901 = vcmask 1043456
          %v902 = vrot.slane %v783, 4
          %v903 = vrot.slane %v789, 4
          %v904 = vsel %vm901, %v902, %v903
          %v905 = vrot.slane %v785, 4
          %v906 = vrot.slane %v791, 4
          %v907 = vsel %vm901, %v905, %v906
          %908 = vrot.lane.b32.xlu0 %v904, 16
          %v909 = vpop.permute.xlu0 %908
          %910 = vrot.lane.b32.xlu0 %v907, 16
          %v911 = vpop.permute.xlu0 %910
          %912 = vrot.lane.b32.xlu0 %v903, 16
          %v913 = vpop.permute.xlu0 %912
          %914 = vrot.lane.b32.xlu0 %v906, 16
          %v915 = vpop.permute.xlu0 %914
          %v916 = vsel %vm489, %v909, %v911
          %v917 = vsel %vm489, %v913, %v915
          %v922 = vsel %vm489, 0.0, %v909
          %v923 = vsel %vm489, 0.0, %v913
          %v925 = vlaneseq
          %v926 = vshrl.u32 %v925, 7
          %v927 = vsub.s32 0, %v926
          %v928 = vrot.slane %v479, %v927
          %v929 = vlaneseq
          %v930 = vshrl.u32 %v929, 7
          %v931 = vsub.s32 1, %v930
          %v932 = vrot.slane %v479, %v931
          %v935 = vmul.f32 %v922, %v928
          %v936 = vmul.f32 %v916, %v932
          %v937 = vmul.f32 %v923, %v928
          %v938 = vmul.f32 %v917, %v932
          %v939 = vadd.f32 %v895, %v935
          %v940 = vadd.f32 %v896, %v936
          %v941 = vadd.f32 %v897, %v937
          %v942 = vadd.f32 %v898, %v938
          %947 = vrot.lane.b32.xlu0 %v795, 15
          %v948 = vpop.permute.xlu0 %947
          %949 = vrot.lane.b32.xlu0 %v797, 15
          %v950 = vpop.permute.xlu0 %949
          %951 = vrot.lane.b32.xlu0 %v801, 15
          %v952 = vpop.permute.xlu0 %951
          %953 = vrot.lane.b32.xlu0 %v803, 15
          %v954 = vpop.permute.xlu0 %953
          %vm955 = vcmask 121856
          %v956 = vsel %vm955, %v948, %v950
          %v957 = vsel %vm955, %v952, %v954
          %v962 = vsel %vm955, 0.0, %v948
          %v963 = vsel %vm955, 0.0, %v952
          %v965 = vlaneseq
          %v966 = vshrl.u32 %v965, 7
          %v967 = vsub.s32 0, %v966
          %v968 = vrot.slane %v480, %v967
          %v969 = vlaneseq
          %v970 = vshrl.u32 %v969, 7
          %v971 = vsub.s32 1, %v970
          %v972 = vrot.slane %v480, %v971
          %v975 = vmul.f32 %v962, %v968
          %v976 = vmul.f32 %v956, %v972
          %v977 = vmul.f32 %v963, %v968
          %v978 = vmul.f32 %v957, %v972
          %v979 = vadd.f32 %v939, %v975
          %v980 = vadd.f32 %v940, %v976
          %v981 = vadd.f32 %v941, %v977
          %v982 = vadd.f32 %v942, %v978
          %v985 = vrot.slane %v801, 4
          %v986 = vrot.slane %v807, 4
          %v987 = vsel %vm901, %v985, %v986
          %v988 = vrot.slane %v803, 4
          %v989 = vrot.slane %v809, 4
          %v990 = vsel %vm901, %v988, %v989
          %991 = vrot.lane.b32.xlu0 %v987, 1
          %v992 = vpop.permute.xlu0 %991
          %993 = vrot.lane.b32.xlu0 %v990, 1
          %v994 = vpop.permute.xlu0 %993
          %995 = vrot.lane.b32.xlu0 %v986, 1
          %v996 = vpop.permute.xlu0 %995
          %997 = vrot.lane.b32.xlu0 %v989, 1
          %v998 = vpop.permute.xlu0 %997
          %vm999 = vcmask 7168
          %v1000 = vsel %vm999, %v992, %v994
          %v1001 = vsel %vm999, %v996, %v998
          %v1006 = vsel %vm999, 0.0, %v992
          %v1007 = vsel %vm999, 0.0, %v996
          %v1009 = vlaneseq
          %v1010 = vshrl.u32 %v1009, 7
          %v1011 = vsub.s32 0, %v1010
          %v1012 = vrot.slane %v481, %v1011
          %v1013 = vlaneseq
          %v1014 = vshrl.u32 %v1013, 7
          %v1015 = vsub.s32 1, %v1014
          %v1016 = vrot.slane %v481, %v1015
          %v1019 = vmul.f32 %v1006, %v1012
          %v1020 = vmul.f32 %v1000, %v1016
          %v1021 = vmul.f32 %v1007, %v1012
          %v1022 = vmul.f32 %v1001, %v1016
          %v1023 = vadd.f32 %v979, %v1019
          %v1024 = vadd.f32 %v980, %v1020
          %v1025 = vadd.f32 %v981, %v1021
          %v1026 = vadd.f32 %v982, %v1022
          %v1028 = vlaneseq
          %v1029 = vshrl.u32 %v1028, 7
          %v1030 = vsub.s32 0, %v1029
          %v1031 = vrot.slane %v482, %v1030
          %v1032 = vlaneseq
          %v1033 = vshrl.u32 %v1032, 7
          %v1034 = vsub.s32 1, %v1033
          %v1035 = vrot.slane %v482, %v1034
          %v1038 = vmul.f32 %v813, %v1031
          %v1039 = vmul.f32 %v815, %v1035
          %v1040 = vmul.f32 %v819, %v1031
          %v1041 = vmul.f32 %v821, %v1035
          %v1042 = vadd.f32 %v1023, %v1038
          %v1043 = vadd.f32 %v1024, %v1039
          %v1044 = vadd.f32 %v1025, %v1040
          %v1045 = vadd.f32 %v1026, %v1041
          %1050 = vrot.lane.b32.xlu0 %v819, 127
          %v1051 = vpop.permute.xlu0 %1050
          %1052 = vrot.lane.b32.xlu0 %v821, 127
          %v1053 = vpop.permute.xlu0 %1052
          %1054 = vrot.lane.b32.xlu0 %v825, 127
          %v1055 = vpop.permute.xlu0 %1054
          %1056 = vrot.lane.b32.xlu0 %v827, 127
          %v1057 = vpop.permute.xlu0 %1056
          %vm1058 = vcmask 1039360
          %v1059 = vsel %vm1058, %v1051, %v1053
          %v1060 = vsel %vm1058, %v1055, %v1057
          %v1065 = vsel %vm1058, %v1053, 0.0
          %v1066 = vsel %vm1058, %v1057, 0.0
          %v1068 = vlaneseq
          %v1069 = vshrl.u32 %v1068, 7
          %v1070 = vsub.s32 0, %v1069
          %v1071 = vrot.slane %v483, %v1070
          %v1072 = vlaneseq
          %v1073 = vshrl.u32 %v1072, 7
          %v1074 = vsub.s32 1, %v1073
          %v1075 = vrot.slane %v483, %v1074
          %v1078 = vmul.f32 %v1059, %v1071
          %v1079 = vmul.f32 %v1065, %v1075
          %v1080 = vmul.f32 %v1060, %v1071
          %v1081 = vmul.f32 %v1066, %v1075
          %v1086 = vrot.slane %v1078, 4
          %v1087 = vrot.slane %v1080, 4
          %v1088 = vsel %vm901, %v1086, %v1087
          %v1089 = vrot.slane %v1079, 4
          %v1090 = vrot.slane %v1081, 4
          %v1091 = vsel %vm901, %v1089, %v1090
          %v1096 = vadd.f32 %v1042, %v1088
          %v1097 = vadd.f32 %v1043, %v1091
          %v1098 = vadd.f32 %v1044, %v1087
          %v1099 = vadd.f32 %v1045, %v1090
          %1104 = vrot.lane.b32.xlu0 %v831, 113
          %v1105 = vpop.permute.xlu0 %1104
          %1106 = vrot.lane.b32.xlu0 %v833, 113
          %v1107 = vpop.permute.xlu0 %1106
          %1108 = vrot.lane.b32.xlu0 %v837, 113
          %v1109 = vpop.permute.xlu0 %1108
          %1110 = vrot.lane.b32.xlu0 %v839, 113
          %v1111 = vpop.permute.xlu0 %1110
          %vm1112 = vcmask 924672
          %v1113 = vsel %vm1112, %v1105, %v1107
          %v1114 = vsel %vm1112, %v1109, %v1111
          %v1119 = vsel %vm1112, %v1107, 0.0
          %v1120 = vsel %vm1112, %v1111, 0.0
          %v1122 = vlaneseq
          %v1123 = vshrl.u32 %v1122, 7
          %v1124 = vsub.s32 0, %v1123
          %v1125 = vrot.slane %v484, %v1124
          %v1126 = vlaneseq
          %v1127 = vshrl.u32 %v1126, 7
          %v1128 = vsub.s32 1, %v1127
          %v1129 = vrot.slane %v484, %v1128
          %v1132 = vmul.f32 %v1113, %v1125
          %v1133 = vmul.f32 %v1119, %v1129
          %v1134 = vmul.f32 %v1114, %v1125
          %v1135 = vmul.f32 %v1120, %v1129
          %v1136 = vadd.f32 %v1096, %v1132
          %v1137 = vadd.f32 %v1097, %v1133
          %v1138 = vadd.f32 %v1098, %v1134
          %v1139 = vadd.f32 %v1099, %v1135
          %1142 = vrot.lane.b32.xlu0 %v837, 112
          %v1143 = vpop.permute.xlu0 %1142
          %1144 = vrot.lane.b32.xlu0 %v839, 112
          %v1145 = vpop.permute.xlu0 %1144
          %1146 = vrot.lane.b32.xlu0 %v843, 112
          %v1147 = vpop.permute.xlu0 %1146
          %1148 = vrot.lane.b32.xlu0 %v845, 112
          %v1149 = vpop.permute.xlu0 %1148
          %vm1150 = vcmask 916480
          %v1151 = vsel %vm1150, %v1143, %v1145
          %v1152 = vsel %vm1150, %v1147, %v1149
          %v1157 = vsel %vm1150, %v1145, 0.0
          %v1158 = vsel %vm1150, %v1149, 0.0
          %v1160 = vlaneseq
          %v1161 = vshrl.u32 %v1160, 7
          %v1162 = vsub.s32 0, %v1161
          %v1163 = vrot.slane %v485, %v1162
          %v1164 = vlaneseq
          %v1165 = vshrl.u32 %v1164, 7
          %v1166 = vsub.s32 1, %v1165
          %v1167 = vrot.slane %v485, %v1166
          %v1170 = vmul.f32 %v1151, %v1163
          %v1171 = vmul.f32 %v1157, %v1167
          %v1172 = vmul.f32 %v1152, %v1163
          %v1173 = vmul.f32 %v1158, %v1167
          %v1178 = vrot.slane %v1170, 4
          %v1179 = vrot.slane %v1172, 4
          %v1180 = vsel %vm901, %v1178, %v1179
          %v1181 = vrot.slane %v1171, 4
          %v1182 = vrot.slane %v1173, 4
          %v1183 = vsel %vm901, %v1181, %v1182
          %v1188 = vadd.f32 %v1136, %v1180
          %v1189 = vadd.f32 %v1137, %v1183
          %v1190 = vadd.f32 %v1138, %v1179
          %v1191 = vadd.f32 %v1139, %v1182
          %1196 = vrot.lane.b32.xlu0 %v849, 111
          %v1197 = vpop.permute.xlu0 %1196
          %1198 = vrot.lane.b32.xlu0 %v851, 111
          %v1199 = vpop.permute.xlu0 %1198
          %1200 = vrot.lane.b32.xlu0 %v855, 111
          %v1201 = vpop.permute.xlu0 %1200
          %1202 = vrot.lane.b32.xlu0 %v857, 111
          %v1203 = vpop.permute.xlu0 %1202
          %vm1204 = vcmask 908288
          %v1205 = vsel %vm1204, %v1197, %v1199
          %v1206 = vsel %vm1204, %v1201, %v1203
          %v1211 = vsel %vm1204, %v1199, 0.0
          %v1212 = vsel %vm1204, %v1203, 0.0
          %v1214 = vlaneseq
          %v1215 = vshrl.u32 %v1214, 7
          %v1216 = vsub.s32 0, %v1215
          %v1217 = vrot.slane %v486, %v1216
          %v1218 = vlaneseq
          %v1219 = vshrl.u32 %v1218, 7
          %v1220 = vsub.s32 1, %v1219
          %v1221 = vrot.slane %v486, %v1220
          %v1224 = vmul.f32 %v1205, %v1217
          %v1225 = vmul.f32 %v1211, %v1221
          %v1226 = vmul.f32 %v1206, %v1217
          %v1227 = vmul.f32 %v1212, %v1221
          %v1228 = vadd.f32 %v1188, %v1224
          %v1229 = vadd.f32 %v1189, %v1225
          %v1230 = vadd.f32 %v1190, %v1226
          %v1231 = vadd.f32 %v1191, %v1227
          %s1232 = scalar_lea.vmem %s420, 16
          %v1233 = vld [vmem:[%s1232] sm:$0xff]
          %v1234 = vld [vmem:[%s1232 + $0x8] sm:$0xff]
          %1235 = vmatprep.subr.mxu0 0.0
          %1236 = vmatpush1.msra.mxu0 0.0
          %1237 = vmatprep.subr.mxu0 0.0
          %1238 = vmatpush1.msra.mxu0 0.0
          %1239 = vmatprep.subr.mxu0 0.0
          %1240 = vmatpush1.msra.mxu0 0.0
          %1241 = vmatprep.subr.mxu0 0.0
          %1242 = vmatpush1.msra.mxu0 0.0
          %1243 = vmatprep.subr.mxu0 0.0
          %1244 = vmatpush1.msra.mxu0 0.0
          %1245 = vmatprep.subr.mxu0 0.0
          %1246 = vmatpush1.msra.mxu0 0.0
          %1247 = vmatprep.subr.mxu0 0.0
          %1248 = vmatpush1.msra.mxu0 0.0
          %1249 = vmatprep.subr.mxu0 0.0
          %1250 = vmatpush1.msra.mxu0 0.0
          %1251 = vmatprep.subr.mxu0 0.0
          %1252 = vmatpush1.msra.mxu0 0.0
          %1253 = vmatprep.subr.mxu0 0.0
          %1254 = vmatpush1.msra.mxu0 0.0
          %1255 = vmatprep.subr.mxu0 0.0
          %1256 = vmatpush1.msra.mxu0 0.0
          %1257 = vmatprep.subr.mxu0 0.0
          %1258 = vmatpush1.msra.mxu0 0.0
          %1259 = vmatprep.subr.mxu0 0.0
          %1260 = vmatpush1.msra.mxu0 0.0
          %1261 = vmatprep.subr.mxu0 0.0
          %1262 = vmatpush1.msra.mxu0 0.0
          %1263 = vmatprep.subr.mxu0 0.0
          %1264 = vmatpush1.msra.mxu0 %v1234
          %1265 = vmatprep.subr.mxu0 0.0
          %1266 = vmatpush1.msra.mxu0 %v1233
          %1267 = vmatprep.subr.mxu0 0.0
          %1268 = vmatpush2.msra.mxu0 0.0
          %1269 = vmatprep.subr.mxu0 0.0
          %1270 = vmatpush2.msra.mxu0 0.0
          %1271 = vmatprep.subr.mxu0 0.0
          %1272 = vmatpush2.msra.mxu0 0.0
          %1273 = vmatprep.subr.mxu0 0.0
          %1274 = vmatpush2.msra.mxu0 0.0
          %1275 = vmatprep.subr.mxu0 0.0
          %1276 = vmatpush2.msra.mxu0 0.0
          %1277 = vmatprep.subr.mxu0 0.0
          %1278 = vmatpush2.msra.mxu0 0.0
          %1279 = vmatprep.subr.mxu0 0.0
          %1280 = vmatpush2.msra.mxu0 0.0
          %1281 = vmatprep.subr.mxu0 0.0
          %1282 = vmatpush2.msra.mxu0 0.0
          %1283 = vmatprep.subr.mxu0 0.0
          %1284 = vmatpush2.msra.mxu0 0.0
          %1285 = vmatprep.subr.mxu0 0.0
          %1286 = vmatpush2.msra.mxu0 0.0
          %1287 = vmatprep.subr.mxu0 0.0
          %1288 = vmatpush2.msra.mxu0 0.0
          %1289 = vmatprep.subr.mxu0 0.0
          %1290 = vmatpush2.msra.mxu0 0.0
          %1291 = vmatprep.subr.mxu0 0.0
          %1292 = vmatpush2.msra.mxu0 0.0
          %1293 = vmatprep.subr.mxu0 0.0
          %1294 = vmatpush2.msra.mxu0 0.0
          %1295 = vmatprep.subr.mxu0 0.0
          %1296 = vmatpush2.msra.mxu0 0.0
          %1297 = vmatprep.subr.mxu0 0.0
          %1298 = vmatpush2.msra.mxu0 0.0
          %1299 = vmatprep.mubr.f32.mxu0 0.0
          %1300 = vmatmul.mubr.f32.gmra.mxu0 %v491
          %v1301 = vpop.f32.mrf.mxu0
          %v1302 = vadd.f32 0.0, %v1301
          %v1303 = vpop.f32.mrf.mxu0
          %1304 = vmatprep.mubr.f32.mxu0 0.0
          %1305 = vmatmul.mubr.f32.gmra.mxu0 %v494
          %v1306 = vpop.f32.mrf.mxu0
          %v1307 = vadd.f32 0.0, %v1306
          %v1308 = vpop.f32.mrf.mxu0
          %1309 = vmatprep.mubr.f32.mxu0 0.0
          %1310 = vmatmul.mubr.f32.gmra.mxu0 %v497
          %v1311 = vpop.f32.mrf.mxu0
          %v1312 = vadd.f32 0.0, %v1311
          %v1313 = vpop.f32.mrf.mxu0
          %1314 = vmatprep.mubr.f32.mxu0 0.0
          %1315 = vmatmul.mubr.f32.gmra.mxu0 %v500
          %v1316 = vpop.f32.mrf.mxu0
          %v1317 = vadd.f32 0.0, %v1316
          %v1318 = vpop.f32.mrf.mxu0
          %1319 = vmatprep.mubr.f32.mxu0 0.0
          %1320 = vmatmul.mubr.f32.gmra.mxu0 %v503
          %v1321 = vpop.f32.mrf.mxu0
          %v1322 = vadd.f32 0.0, %v1321
          %v1323 = vpop.f32.mrf.mxu0
          %1324 = vmatprep.mubr.f32.mxu0 0.0
          %1325 = vmatmul.mubr.f32.gmra.mxu0 %v506
          %v1326 = vpop.f32.mrf.mxu0
          %v1327 = vadd.f32 0.0, %v1326
          %v1328 = vpop.f32.mrf.mxu0
          %1329 = vmatprep.mubr.f32.mxu0 0.0
          %1330 = vmatmul.mubr.f32.gmra.mxu0 %v509
          %v1331 = vpop.f32.mrf.mxu0
          %v1332 = vadd.f32 0.0, %v1331
          %v1333 = vpop.f32.mrf.mxu0
          %1334 = vmatprep.mubr.f32.mxu0 0.0
          %1335 = vmatmul.mubr.f32.gmra.mxu0 %v512
          %v1336 = vpop.f32.mrf.mxu0
          %v1337 = vadd.f32 0.0, %v1336
          %v1338 = vpop.f32.mrf.mxu0
          %1339 = vmatprep.mubr.f32.mxu0 0.0
          %1340 = vmatmul.mubr.f32.gmra.mxu0 %v515
          %v1341 = vpop.f32.mrf.mxu0
          %v1342 = vadd.f32 0.0, %v1341
          %v1343 = vpop.f32.mrf.mxu0
          %1344 = vmatprep.mubr.f32.mxu0 0.0
          %1345 = vmatmul.mubr.f32.gmra.mxu0 %v518
          %v1346 = vpop.f32.mrf.mxu0
          %v1347 = vadd.f32 0.0, %v1346
          %v1348 = vpop.f32.mrf.mxu0
          %1349 = vmatprep.mubr.f32.mxu0 0.0
          %1350 = vmatmul.mubr.f32.gmra.mxu0 %v521
          %v1351 = vpop.f32.mrf.mxu0
          %v1352 = vadd.f32 0.0, %v1351
          %v1353 = vpop.f32.mrf.mxu0
          %1354 = vmatprep.mubr.f32.mxu0 0.0
          %1355 = vmatmul.mubr.f32.gmra.mxu0 %v524
          %v1356 = vpop.f32.mrf.mxu0
          %v1357 = vadd.f32 0.0, %v1356
          %v1358 = vpop.f32.mrf.mxu0
          %1359 = vmatprep.mubr.f32.mxu0 0.0
          %1360 = vmatmul.mubr.f32.gmra.mxu0 %v527
          %v1361 = vpop.f32.mrf.mxu0
          %v1362 = vadd.f32 0.0, %v1361
          %v1363 = vpop.f32.mrf.mxu0
          %1364 = vmatprep.mubr.f32.mxu0 0.0
          %1365 = vmatmul.mubr.f32.gmra.mxu0 %v530
          %v1366 = vpop.f32.mrf.mxu0
          %v1367 = vadd.f32 0.0, %v1366
          %v1368 = vpop.f32.mrf.mxu0
          %1369 = vdwg.mxu0
          %v1371 = vsel %vm667, %v1302, 0
          %v1374 = vsel %vm667, %v1307, 0
          %v1377 = vsel %vm667, %v1312, 0
          %v1380 = vsel %vm667, %v1317, 0
          %v1383 = vsel %vm667, %v1322, 0
          %v1386 = vsel %vm667, %v1327, 0
          %v1389 = vsel %vm667, %v1332, 0
          %v1392 = vsel %vm667, %v1337, 0
          %v1395 = vsel %vm667, %v1342, 0
          %v1398 = vsel %vm667, %v1347, 0
          %v1401 = vsel %vm667, %v1352, 0
          %v1404 = vsel %vm667, %v1357, 0
          %v1407 = vsel %vm667, %v1362, 0
          %v1410 = vsel %vm667, %v1367, 0
          %1412 = vmatprep.subr.mxu0 0.0
          %1413 = vmatpush1.msra.mxu0 0.0
          %1414 = vmatprep.subr.mxu0 0.0
          %1415 = vmatpush1.msra.mxu0 0.0
          %1416 = vmatprep.subr.mxu0 0.0
          %1417 = vmatpush1.msra.mxu0 0.0
          %1418 = vmatprep.subr.mxu0 0.0
          %1419 = vmatpush1.msra.mxu0 0.0
          %1420 = vmatprep.subr.mxu0 0.0
          %1421 = vmatpush1.msra.mxu0 0.0
          %1422 = vmatprep.subr.mxu0 0.0
          %1423 = vmatpush1.msra.mxu0 0.0
          %1424 = vmatprep.subr.mxu0 0.0
          %1425 = vmatpush1.msra.mxu0 0.0
          %1426 = vmatprep.subr.mxu0 0.0
          %1427 = vmatpush1.msra.mxu0 0.0
          %1428 = vmatprep.subr.mxu0 %v463
          %1429 = vmatpush1.msra.mxu0 %v462
          %1430 = vmatprep.subr.mxu0 %v461
          %1431 = vmatpush1.msra.mxu0 %v460
          %1432 = vmatprep.subr.mxu0 %v459
          %1433 = vmatpush1.msra.mxu0 %v458
          %1434 = vmatprep.subr.mxu0 %v457
          %1435 = vmatpush1.msra.mxu0 %v456
          %1436 = vmatprep.subr.mxu0 %v455
          %1437 = vmatpush1.msra.mxu0 %v454
          %1438 = vmatprep.subr.mxu0 %v453
          %1439 = vmatpush1.msra.mxu0 %v452
          %1440 = vmatprep.subr.mxu0 %v451
          %1441 = vmatpush1.msra.mxu0 %v450
          %1442 = vmatprep.subr.mxu0 %v449
          %1443 = vmatpush1.msra.mxu0 %v448
          %1444 = vmatprep.subr.mxu0 0.0
          %1445 = vmatpush2.msra.mxu0 0.0
          %1446 = vmatprep.subr.mxu0 0.0
          %1447 = vmatpush2.msra.mxu0 0.0
          %1448 = vmatprep.subr.mxu0 0.0
          %1449 = vmatpush2.msra.mxu0 0.0
          %1450 = vmatprep.subr.mxu0 0.0
          %1451 = vmatpush2.msra.mxu0 0.0
          %1452 = vmatprep.subr.mxu0 0.0
          %1453 = vmatpush2.msra.mxu0 0.0
          %1454 = vmatprep.subr.mxu0 0.0
          %1455 = vmatpush2.msra.mxu0 0.0
          %1456 = vmatprep.subr.mxu0 0.0
          %1457 = vmatpush2.msra.mxu0 0.0
          %1458 = vmatprep.subr.mxu0 0.0
          %1459 = vmatpush2.msra.mxu0 0.0
          %1460 = vmatprep.subr.mxu0 0.0
          %1461 = vmatpush2.msra.mxu0 0.0
          %1462 = vmatprep.subr.mxu0 0.0
          %1463 = vmatpush2.msra.mxu0 0.0
          %1464 = vmatprep.subr.mxu0 0.0
          %1465 = vmatpush2.msra.mxu0 0.0
          %1466 = vmatprep.subr.mxu0 0.0
          %1467 = vmatpush2.msra.mxu0 0.0
          %1468 = vmatprep.subr.mxu0 0.0
          %1469 = vmatpush2.msra.mxu0 0.0
          %1470 = vmatprep.subr.mxu0 0.0
          %1471 = vmatpush2.msra.mxu0 0.0
          %1472 = vmatprep.subr.mxu0 0.0
          %1473 = vmatpush2.msra.mxu0 0.0
          %1474 = vmatprep.subr.mxu0 0.0
          %1475 = vmatpush2.msra.mxu0 0.0
          %1476 = vmatprep.mubr.f32.mxu0 0.0
          %1477 = vmatmul.mubr.f32.gmra.mxu0 %v1371
          %v1478 = vpop.f32.mrf.mxu0
          %v1479 = vadd.f32 0.0, %v1478
          %v1480 = vpop.f32.mrf.mxu0
          %v1481 = vadd.f32 0.0, %v1480
          %1482 = vmatprep.mubr.f32.mxu0 0.0
          %1483 = vmatmul.mubr.f32.gmra.mxu0 %v1374
          %v1484 = vpop.f32.mrf.mxu0
          %v1485 = vadd.f32 0.0, %v1484
          %v1486 = vpop.f32.mrf.mxu0
          %v1487 = vadd.f32 0.0, %v1486
          %1488 = vmatprep.mubr.f32.mxu0 0.0
          %1489 = vmatmul.mubr.f32.gmra.mxu0 %v1377
          %v1490 = vpop.f32.mrf.mxu0
          %v1491 = vadd.f32 0.0, %v1490
          %v1492 = vpop.f32.mrf.mxu0
          %v1493 = vadd.f32 0.0, %v1492
          %1494 = vmatprep.mubr.f32.mxu0 0.0
          %1495 = vmatmul.mubr.f32.gmra.mxu0 %v1380
          %v1496 = vpop.f32.mrf.mxu0
          %v1497 = vadd.f32 0.0, %v1496
          %v1498 = vpop.f32.mrf.mxu0
          %v1499 = vadd.f32 0.0, %v1498
          %1500 = vmatprep.mubr.f32.mxu0 0.0
          %1501 = vmatmul.mubr.f32.gmra.mxu0 %v1383
          %v1502 = vpop.f32.mrf.mxu0
          %v1503 = vadd.f32 0.0, %v1502
          %v1504 = vpop.f32.mrf.mxu0
          %v1505 = vadd.f32 0.0, %v1504
          %1506 = vmatprep.mubr.f32.mxu0 0.0
          %1507 = vmatmul.mubr.f32.gmra.mxu0 %v1386
          %v1508 = vpop.f32.mrf.mxu0
          %v1509 = vadd.f32 0.0, %v1508
          %v1510 = vpop.f32.mrf.mxu0
          %v1511 = vadd.f32 0.0, %v1510
          %1512 = vmatprep.mubr.f32.mxu0 0.0
          %1513 = vmatmul.mubr.f32.gmra.mxu0 %v1389
          %v1514 = vpop.f32.mrf.mxu0
          %v1515 = vadd.f32 0.0, %v1514
          %v1516 = vpop.f32.mrf.mxu0
          %v1517 = vadd.f32 0.0, %v1516
          %1518 = vmatprep.mubr.f32.mxu0 0.0
          %1519 = vmatmul.mubr.f32.gmra.mxu0 %v1392
          %v1520 = vpop.f32.mrf.mxu0
          %v1521 = vadd.f32 0.0, %v1520
          %v1522 = vpop.f32.mrf.mxu0
          %v1523 = vadd.f32 0.0, %v1522
          %1524 = vmatprep.mubr.f32.mxu0 0.0
          %1525 = vmatmul.mubr.f32.gmra.mxu0 %v1395
          %v1526 = vpop.f32.mrf.mxu0
          %v1527 = vadd.f32 0.0, %v1526
          %v1528 = vpop.f32.mrf.mxu0
          %v1529 = vadd.f32 0.0, %v1528
          %1530 = vmatprep.mubr.f32.mxu0 0.0
          %1531 = vmatmul.mubr.f32.gmra.mxu0 %v1398
          %v1532 = vpop.f32.mrf.mxu0
          %v1533 = vadd.f32 0.0, %v1532
          %v1534 = vpop.f32.mrf.mxu0
          %v1535 = vadd.f32 0.0, %v1534
          %1536 = vmatprep.mubr.f32.mxu0 0.0
          %1537 = vmatmul.mubr.f32.gmra.mxu0 %v1401
          %v1538 = vpop.f32.mrf.mxu0
          %v1539 = vadd.f32 0.0, %v1538
          %v1540 = vpop.f32.mrf.mxu0
          %v1541 = vadd.f32 0.0, %v1540
          %1542 = vmatprep.mubr.f32.mxu0 0.0
          %1543 = vmatmul.mubr.f32.gmra.mxu0 %v1404
          %v1544 = vpop.f32.mrf.mxu0
          %v1545 = vadd.f32 0.0, %v1544
          %v1546 = vpop.f32.mrf.mxu0
          %v1547 = vadd.f32 0.0, %v1546
          %1548 = vmatprep.mubr.f32.mxu0 0.0
          %1549 = vmatmul.mubr.f32.gmra.mxu0 %v1407
          %v1550 = vpop.f32.mrf.mxu0
          %v1551 = vadd.f32 0.0, %v1550
          %v1552 = vpop.f32.mrf.mxu0
          %v1553 = vadd.f32 0.0, %v1552
          %1554 = vmatprep.mubr.f32.mxu0 0.0
          %1555 = vmatmul.mubr.f32.gmra.mxu0 %v1410
          %v1556 = vpop.f32.mrf.mxu0
          %v1557 = vadd.f32 0.0, %v1556
          %v1558 = vpop.f32.mrf.mxu0
          %v1559 = vadd.f32 0.0, %v1558
          %1560 = vdwg.mxu0
          %1565 = vrot.lane.b32.xlu0 %v1479, 17
          %v1566 = vpop.permute.xlu0 %1565
          %1567 = vrot.lane.b32.xlu0 %v1481, 17
          %v1568 = vpop.permute.xlu0 %1567
          %1569 = vrot.lane.b32.xlu0 %v1485, 17
          %v1570 = vpop.permute.xlu0 %1569
          %1571 = vrot.lane.b32.xlu0 %v1487, 17
          %v1572 = vpop.permute.xlu0 %1571
          %v1573 = vsel %vm871, %v1566, %v1568
          %v1574 = vsel %vm871, %v1570, %v1572
          %v1579 = vsel %vm871, 0.0, %v1566
          %v1580 = vsel %vm871, 0.0, %v1570
          %v1581 = vmul.f32 %v1579, %v884
          %v1582 = vmul.f32 %v1573, %v888
          %v1583 = vmul.f32 %v1580, %v884
          %v1584 = vmul.f32 %v1574, %v888
          %v1585 = vadd.f32 %v1581, 0.0
          %v1586 = vadd.f32 %v1582, 0.0
          %v1587 = vadd.f32 %v1583, 0.0
          %v1588 = vadd.f32 %v1584, 0.0
          %v1591 = vrot.slane %v1485, 4
          %v1592 = vrot.slane %v1491, 4
          %v1593 = vsel %vm901, %v1591, %v1592
          %v1594 = vrot.slane %v1487, 4
          %v1595 = vrot.slane %v1493, 4
          %v1596 = vsel %vm901, %v1594, %v1595
          %1597 = vrot.lane.b32.xlu0 %v1593, 16
          %v1598 = vpop.permute.xlu0 %1597
          %1599 = vrot.lane.b32.xlu0 %v1596, 16
          %v1600 = vpop.permute.xlu0 %1599
          %1601 = vrot.lane.b32.xlu0 %v1592, 16
          %v1602 = vpop.permute.xlu0 %1601
          %1603 = vrot.lane.b32.xlu0 %v1595, 16
          %v1604 = vpop.permute.xlu0 %1603
          %v1605 = vsel %vm489, %v1598, %v1600
          %v1606 = vsel %vm489, %v1602, %v1604
          %v1611 = vsel %vm489, 0.0, %v1598
          %v1612 = vsel %vm489, 0.0, %v1602
          %v1613 = vmul.f32 %v1611, %v928
          %v1614 = vmul.f32 %v1605, %v932
          %v1615 = vmul.f32 %v1612, %v928
          %v1616 = vmul.f32 %v1606, %v932
          %v1617 = vadd.f32 %v1585, %v1613
          %v1618 = vadd.f32 %v1586, %v1614
          %v1619 = vadd.f32 %v1587, %v1615
          %v1620 = vadd.f32 %v1588, %v1616
          %1625 = vrot.lane.b32.xlu0 %v1497, 15
          %v1626 = vpop.permute.xlu0 %1625
          %1627 = vrot.lane.b32.xlu0 %v1499, 15
          %v1628 = vpop.permute.xlu0 %1627
          %1629 = vrot.lane.b32.xlu0 %v1503, 15
          %v1630 = vpop.permute.xlu0 %1629
          %1631 = vrot.lane.b32.xlu0 %v1505, 15
          %v1632 = vpop.permute.xlu0 %1631
          %v1633 = vsel %vm955, %v1626, %v1628
          %v1634 = vsel %vm955, %v1630, %v1632
          %v1639 = vsel %vm955, 0.0, %v1626
          %v1640 = vsel %vm955, 0.0, %v1630
          %v1641 = vmul.f32 %v1639, %v968
          %v1642 = vmul.f32 %v1633, %v972
          %v1643 = vmul.f32 %v1640, %v968
          %v1644 = vmul.f32 %v1634, %v972
          %v1645 = vadd.f32 %v1617, %v1641
          %v1646 = vadd.f32 %v1618, %v1642
          %v1647 = vadd.f32 %v1619, %v1643
          %v1648 = vadd.f32 %v1620, %v1644
          %v1651 = vrot.slane %v1503, 4
          %v1652 = vrot.slane %v1509, 4
          %v1653 = vsel %vm901, %v1651, %v1652
          %v1654 = vrot.slane %v1505, 4
          %v1655 = vrot.slane %v1511, 4
          %v1656 = vsel %vm901, %v1654, %v1655
          %1657 = vrot.lane.b32.xlu0 %v1653, 1
          %v1658 = vpop.permute.xlu0 %1657
          %1659 = vrot.lane.b32.xlu0 %v1656, 1
          %v1660 = vpop.permute.xlu0 %1659
          %1661 = vrot.lane.b32.xlu0 %v1652, 1
          %v1662 = vpop.permute.xlu0 %1661
          %1663 = vrot.lane.b32.xlu0 %v1655, 1
          %v1664 = vpop.permute.xlu0 %1663
          %v1665 = vsel %vm999, %v1658, %v1660
          %v1666 = vsel %vm999, %v1662, %v1664
          %v1671 = vsel %vm999, 0.0, %v1658
          %v1672 = vsel %vm999, 0.0, %v1662
          %v1673 = vmul.f32 %v1671, %v1012
          %v1674 = vmul.f32 %v1665, %v1016
          %v1675 = vmul.f32 %v1672, %v1012
          %v1676 = vmul.f32 %v1666, %v1016
          %v1677 = vadd.f32 %v1645, %v1673
          %v1678 = vadd.f32 %v1646, %v1674
          %v1679 = vadd.f32 %v1647, %v1675
          %v1680 = vadd.f32 %v1648, %v1676
          %v1681 = vmul.f32 %v1515, %v1031
          %v1682 = vmul.f32 %v1517, %v1035
          %v1683 = vmul.f32 %v1521, %v1031
          %v1684 = vmul.f32 %v1523, %v1035
          %v1685 = vadd.f32 %v1677, %v1681
          %v1686 = vadd.f32 %v1678, %v1682
          %v1687 = vadd.f32 %v1679, %v1683
          %v1688 = vadd.f32 %v1680, %v1684
          %1693 = vrot.lane.b32.xlu0 %v1521, 127
          %v1694 = vpop.permute.xlu0 %1693
          %1695 = vrot.lane.b32.xlu0 %v1523, 127
          %v1696 = vpop.permute.xlu0 %1695
          %1697 = vrot.lane.b32.xlu0 %v1527, 127
          %v1698 = vpop.permute.xlu0 %1697
          %1699 = vrot.lane.b32.xlu0 %v1529, 127
          %v1700 = vpop.permute.xlu0 %1699
          %v1701 = vsel %vm1058, %v1694, %v1696
          %v1702 = vsel %vm1058, %v1698, %v1700
          %v1707 = vsel %vm1058, %v1696, 0.0
          %v1708 = vsel %vm1058, %v1700, 0.0
          %v1709 = vmul.f32 %v1701, %v1071
          %v1710 = vmul.f32 %v1707, %v1075
          %v1711 = vmul.f32 %v1702, %v1071
          %v1712 = vmul.f32 %v1708, %v1075
          %v1717 = vrot.slane %v1709, 4
          %v1718 = vrot.slane %v1711, 4
          %v1719 = vsel %vm901, %v1717, %v1718
          %v1720 = vrot.slane %v1710, 4
          %v1721 = vrot.slane %v1712, 4
          %v1722 = vsel %vm901, %v1720, %v1721
          %v1727 = vadd.f32 %v1685, %v1719
          %v1728 = vadd.f32 %v1686, %v1722
          %v1729 = vadd.f32 %v1687, %v1718
          %v1730 = vadd.f32 %v1688, %v1721
          %1735 = vrot.lane.b32.xlu0 %v1533, 113
          %v1736 = vpop.permute.xlu0 %1735
          %1737 = vrot.lane.b32.xlu0 %v1535, 113
          %v1738 = vpop.permute.xlu0 %1737
          %1739 = vrot.lane.b32.xlu0 %v1539, 113
          %v1740 = vpop.permute.xlu0 %1739
          %1741 = vrot.lane.b32.xlu0 %v1541, 113
          %v1742 = vpop.permute.xlu0 %1741
          %v1743 = vsel %vm1112, %v1736, %v1738
          %v1744 = vsel %vm1112, %v1740, %v1742
          %v1749 = vsel %vm1112, %v1738, 0.0
          %v1750 = vsel %vm1112, %v1742, 0.0
          %v1751 = vmul.f32 %v1743, %v1125
          %v1752 = vmul.f32 %v1749, %v1129
          %v1753 = vmul.f32 %v1744, %v1125
          %v1754 = vmul.f32 %v1750, %v1129
          %v1755 = vadd.f32 %v1727, %v1751
          %v1756 = vadd.f32 %v1728, %v1752
          %v1757 = vadd.f32 %v1729, %v1753
          %v1758 = vadd.f32 %v1730, %v1754
          %1761 = vrot.lane.b32.xlu0 %v1539, 112
          %v1762 = vpop.permute.xlu0 %1761
          %1763 = vrot.lane.b32.xlu0 %v1541, 112
          %v1764 = vpop.permute.xlu0 %1763
          %1765 = vrot.lane.b32.xlu0 %v1545, 112
          %v1766 = vpop.permute.xlu0 %1765
          %1767 = vrot.lane.b32.xlu0 %v1547, 112
          %v1768 = vpop.permute.xlu0 %1767
          %v1769 = vsel %vm1150, %v1762, %v1764
          %v1770 = vsel %vm1150, %v1766, %v1768
          %v1775 = vsel %vm1150, %v1764, 0.0
          %v1776 = vsel %vm1150, %v1768, 0.0
          %v1777 = vmul.f32 %v1769, %v1163
          %v1778 = vmul.f32 %v1775, %v1167
          %v1779 = vmul.f32 %v1770, %v1163
          %v1780 = vmul.f32 %v1776, %v1167
          %v1785 = vrot.slane %v1777, 4
          %v1786 = vrot.slane %v1779, 4
          %v1787 = vsel %vm901, %v1785, %v1786
          %v1788 = vrot.slane %v1778, 4
          %v1789 = vrot.slane %v1780, 4
          %v1790 = vsel %vm901, %v1788, %v1789
          %v1795 = vadd.f32 %v1755, %v1787
          %v1796 = vadd.f32 %v1756, %v1790
          %v1797 = vadd.f32 %v1757, %v1786
          %v1798 = vadd.f32 %v1758, %v1789
          %1803 = vrot.lane.b32.xlu0 %v1551, 111
          %v1804 = vpop.permute.xlu0 %1803
          %1805 = vrot.lane.b32.xlu0 %v1553, 111
          %v1806 = vpop.permute.xlu0 %1805
          %1807 = vrot.lane.b32.xlu0 %v1557, 111
          %v1808 = vpop.permute.xlu0 %1807
          %1809 = vrot.lane.b32.xlu0 %v1559, 111
          %v1810 = vpop.permute.xlu0 %1809
          %v1811 = vsel %vm1204, %v1804, %v1806
          %v1812 = vsel %vm1204, %v1808, %v1810
          %v1817 = vsel %vm1204, %v1806, 0.0
          %v1818 = vsel %vm1204, %v1810, 0.0
          %v1819 = vmul.f32 %v1811, %v1217
          %v1820 = vmul.f32 %v1817, %v1221
          %v1821 = vmul.f32 %v1812, %v1217
          %v1822 = vmul.f32 %v1818, %v1221
          %v1823 = vadd.f32 %v1795, %v1819
          %v1824 = vadd.f32 %v1796, %v1820
          %v1825 = vadd.f32 %v1797, %v1821
          %v1826 = vadd.f32 %v1798, %v1822
          %s1827 = smul.u32 %s28, 8
          %s1828 = smul.addr %s1827, 8
          %s1829 = scalar_lea.vmem [#allocation2], %s1828
          %1830 = vst [vmem:[%s1829] sm:$0xff] %v1228
          %1831 = vst [vmem:[%s1829 + $0x8] sm:$0xff] %v1229
          %1832 = vst [vmem:[%s1829 + $0x10] sm:$0xff] %v1823
          %1833 = vst [vmem:[%s1829 + $0x18] sm:$0xff] %v1824
          %1834 = vst [vmem:[%s1829 + $0x20] sm:$0xf] %v1230
          %1835 = vst [vmem:[%s1829 + $0x28] sm:$0xf] %v1231
          %1836 = vst [vmem:[%s1829 + $0x30] sm:$0xf] %v1825
          %1837 = vst [vmem:[%s1829 + $0x38] sm:$0xf] %v1826
          %v1838 = vld [vmem:[#allocation3] sm:$0xff]
          %v1839 = vld [vmem:[#allocation3 + $0x8] sm:$0xf]
          %v1840 = vadd.f32 %v1228, %v1229
          %v1841 = vadd.f32 %v1840, %v1823
          %v1842 = vadd.f32 %v1841, %v1824
          %1843 = vadd.xlane.f32.xlu0 %v1842
          %v1844 = vpop.xlane.xlu0 %1843
          %v1845 = vsel %vm901, %v1230, 0.0
          %v1846 = vsel %vm901, %v1231, 0.0
          %v1847 = vadd.f32 %v1845, %v1846
          %v1848 = vsel %vm901, %v1825, 0.0
          %v1849 = vadd.f32 %v1847, %v1848
          %v1850 = vsel %vm901, %v1826, 0.0
          %v1851 = vadd.f32 %v1849, %v1850
          %1852 = vadd.xlane.f32.xlu0 %v1851
          %v1853 = vpop.xlane.xlu0 %1852
          %v1854 = vadd.f32 %v1838, %v1844
          %v1855 = vadd.f32 %v1839, %v1853
          %1856 = vst.msk [vmem:[#allocation3] sm:$0xff] %vm999, %v1854
          %vm1857 = vcmask 3072
          %1858 = vst.msk [vmem:[#allocation3 + $0x8] sm:$0xf] %vm1857, %v1855
          %v1859 = vld [vmem:[#allocation4] sm:$0xff]
          %v1860 = vld [vmem:[#allocation4 + $0x8] sm:$0xf]
          %v1861 = vmul.f32 %v1228, %v1228
          %v1862 = vmul.f32 %v1229, %v1229
          %v1863 = vmul.f32 %v1823, %v1823
          %v1864 = vmul.f32 %v1824, %v1824
          %v1865 = vmul.f32 %v1230, %v1230
          %v1866 = vmul.f32 %v1231, %v1231
          %v1867 = vmul.f32 %v1825, %v1825
          %v1868 = vmul.f32 %v1826, %v1826
          %v1869 = vadd.f32 %v1861, %v1862
          %v1870 = vadd.f32 %v1869, %v1863
          %v1871 = vadd.f32 %v1870, %v1864
          %1872 = vadd.xlane.f32.xlu0 %v1871
          %v1873 = vpop.xlane.xlu0 %1872
          %v1874 = vsel %vm901, %v1865, 0.0
          %v1875 = vsel %vm901, %v1866, 0.0
          %v1876 = vadd.f32 %v1874, %v1875
          %v1877 = vsel %vm901, %v1867, 0.0
          %v1878 = vadd.f32 %v1876, %v1877
          %v1879 = vsel %vm901, %v1868, 0.0
          %v1880 = vadd.f32 %v1878, %v1879
          %1881 = vadd.xlane.f32.xlu0 %v1880
          %v1882 = vpop.xlane.xlu0 %1881
          %v1883 = vadd.f32 %v1859, %v1873
          %v1884 = vadd.f32 %v1860, %v1882
          %1885 = vst.msk [vmem:[#allocation4] sm:$0xff] %vm999, %v1883
          %1886 = vst.msk [vmem:[#allocation4 + $0x8] sm:$0xf] %vm1857, %v1884
        $region72: #{mi_estimator_forward.6} parent=63 // pred_fallthru
          _
        %p1887 = scmp.eq.s32.totalorder %s27, 1
        // Predicated region
        $region73: #{mi_estimator_forward.6} parent=63 // pred_check
          %p1888 = pneg %p1887
        $region74: #{mi_estimator_forward.6} parent=63 // pred_check_branch
          %1890 = sbr.rel (%p1888) target = $region76
        $region75: #{mi_estimator_forward.6} parent=63 // pred_region
          %s1891 = smul.u32 %s28, 8
          %s1892 = smul.addr %s1891, 8
          %s1893 = scalar_lea.vmem [#allocation2], %s1892
          %v1894 = vld [vmem:[%s1893] sm:$0xff]
          %v1895 = vld [vmem:[%s1893 + $0x8] sm:$0xff]
          %v1896 = vld [vmem:[%s1893 + $0x10] sm:$0xff]
          %v1897 = vld [vmem:[%s1893 + $0x18] sm:$0xff]
          %v1898 = vld [vmem:[%s1893 + $0x20] sm:$0xf]
          %v1899 = vld [vmem:[%s1893 + $0x28] sm:$0xf]
          %v1900 = vld [vmem:[%s1893 + $0x30] sm:$0xf]
          %v1901 = vld [vmem:[%s1893 + $0x38] sm:$0xf]
          %v1902 = vld [vmem:[#allocation3] sm:$0xff]
          %v1903 = vld [vmem:[#allocation3 + $0x8] sm:$0xf]
          %v1904 = vmul.f32 %v1902, 0.001953125
          %v1905 = vmul.f32 %v1903, 0.001953125
          %v1906 = vld [vmem:[#allocation4] sm:$0xff]
          %v1907 = vld [vmem:[#allocation4 + $0x8] sm:$0xf]
          %v1908 = vmul.f32 %v1906, 0.001953125
          %v1909 = vmul.f32 %v1907, 0.001953125
          %v1910 = vmul.f32 %v1904, %v1904
          %v1911 = vmul.f32 %v1905, %v1905
          %v1912 = vsub.f32 %v1908, %v1910
          %v1913 = vsub.f32 %v1909, %v1911
          %1915 = vset.pattern.permute.xlu0 0
          %1916 = vperm.xlu0 %1915, %v1904
          %v1917 = vpop.permute.xlu0 %1916
          %1920 = vset.pattern.permute.xlu0 0
          %1921 = vperm.xlu0 %1920, %v1905
          %v1922 = vpop.permute.xlu0 %1921
          %v1924 = vsub.f32 %v1894, %v1917
          %v1925 = vsub.f32 %v1895, %v1917
          %v1926 = vsub.f32 %v1896, %v1917
          %v1927 = vsub.f32 %v1897, %v1917
          %v1928 = vsub.f32 %v1898, %v1922
          %v1929 = vsub.f32 %v1899, %v1922
          %v1930 = vsub.f32 %v1900, %v1922
          %v1931 = vsub.f32 %v1901, %v1922
          %v1932 = vadd.f32 %v1912, 1e-05
          %v1933 = vadd.f32 %v1913, 1e-05
          %v1934 = vrsqrt.pop %v1932
          %v1935 = vrsqrt.pop %v1933
          %1937 = vset.pattern.permute.xlu0 0
          %1938 = vperm.xlu0 %1937, %v1934
          %v1939 = vpop.permute.xlu0 %1938
          %1942 = vset.pattern.permute.xlu0 0
          %1943 = vperm.xlu0 %1942, %v1935
          %v1944 = vpop.permute.xlu0 %1943
          %v1946 = vmul.f32 %v1924, %v1939
          %v1947 = vmul.f32 %v1925, %v1939
          %v1948 = vmul.f32 %v1926, %v1939
          %v1949 = vmul.f32 %v1927, %v1939
          %v1950 = vmul.f32 %v1928, %v1944
          %v1951 = vmul.f32 %v1929, %v1944
          %v1952 = vmul.f32 %v1930, %v1944
          %v1953 = vmul.f32 %v1931, %v1944
          %v1954 = vld [vmem:[%s5] sm:$0xff]
          %v1955 = vld [vmem:[%s5 + $0x8] sm:$0xf]
          %1957 = vset.pattern.permute.xlu0 0
          %1958 = vperm.xlu0 %1957, %v1954
          %v1959 = vpop.permute.xlu0 %1958
          %1962 = vset.pattern.permute.xlu0 0
          %1963 = vperm.xlu0 %1962, %v1955
          %v1964 = vpop.permute.xlu0 %1963
          %v1966 = vmul.f32 %v1946, %v1959
          %v1967 = vmul.f32 %v1947, %v1959
          %v1968 = vmul.f32 %v1948, %v1959
          %v1969 = vmul.f32 %v1949, %v1959
          %v1970 = vmul.f32 %v1950, %v1964
          %v1971 = vmul.f32 %v1951, %v1964
          %v1972 = vmul.f32 %v1952, %v1964
          %v1973 = vmul.f32 %v1953, %v1964
          %v1974 = vld [vmem:[%s6] sm:$0xff]
          %v1975 = vld [vmem:[%s6 + $0x8] sm:$0xf]
          %1977 = vset.pattern.permute.xlu0 0
          %1978 = vperm.xlu0 %1977, %v1974
          %v1979 = vpop.permute.xlu0 %1978
          %1982 = vset.pattern.permute.xlu0 0
          %1983 = vperm.xlu0 %1982, %v1975
          %v1984 = vpop.permute.xlu0 %1983
          %v1986 = vadd.f32 %v1966, %v1979
          %v1987 = vadd.f32 %v1967, %v1979
          %v1988 = vadd.f32 %v1968, %v1979
          %v1989 = vadd.f32 %v1969, %v1979
          %v1990 = vadd.f32 %v1970, %v1984
          %v1991 = vadd.f32 %v1971, %v1984
          %v1992 = vadd.f32 %v1972, %v1984
          %v1993 = vadd.f32 %v1973, %v1984
          %v1994 = vmax.f32 %v1986, 0.0
          %v1995 = vmax.f32 %v1987, 0.0
          %v1996 = vmax.f32 %v1988, 0.0
          %v1997 = vmax.f32 %v1989, 0.0
          %v1998 = vmax.f32 %v1990, 0.0
          %v1999 = vmax.f32 %v1991, 0.0
          %v2000 = vmax.f32 %v1992, 0.0
          %v2001 = vmax.f32 %v1993, 0.0
          %v2002 = vld [vmem:[%s7] sm:$0xff]
          %v2003 = vld [vmem:[%s7 + $0x8] sm:$0xff]
          %v2004 = vld [vmem:[%s7 + $0x10] sm:$0xff]
          %v2005 = vld [vmem:[%s7 + $0x18] sm:$0x7]
          %vm2006 = vcmask 97280
          %v2008 = vsel %vm2006, %v2002, 0
          %v2011 = vsel %vm2006, %v2003, 0
          %v2014 = vsel %vm2006, %v2004, 0
          %v2017 = vsel %vm2006, %v2005, 0
          %vm2019 = vcmask 1043456
          %v2021 = vsel %vm2019, %v1998, 0
          %v2024 = vsel %vm2019, %v1999, 0
          %v2027 = vsel %vm2019, %v2000, 0
          %v2030 = vsel %vm2019, %v2001, 0
          %2032 = vmatprep.subr.mxu0 0.0
          %2033 = vmatpush1.msra.mxu0 0.0
          %2034 = vmatprep.subr.mxu0 0.0
          %2035 = vmatpush1.msra.mxu0 0.0
          %2036 = vmatprep.subr.mxu0 0.0
          %2037 = vmatpush1.msra.mxu0 0.0
          %2038 = vmatprep.subr.mxu0 0.0
          %2039 = vmatpush1.msra.mxu0 0.0
          %2040 = vmatprep.subr.mxu0 0.0
          %2041 = vmatpush1.msra.mxu0 0.0
          %2042 = vmatprep.subr.mxu0 0.0
          %2043 = vmatpush1.msra.mxu0 0.0
          %2044 = vmatprep.subr.mxu0 0.0
          %2045 = vmatpush1.msra.mxu0 0.0
          %2046 = vmatprep.subr.mxu0 0.0
          %2047 = vmatpush1.msra.mxu0 0.0
          %2048 = vmatprep.subr.mxu0 0.0
          %2049 = vmatpush1.msra.mxu0 0.0
          %2050 = vmatprep.subr.mxu0 0.0
          %2051 = vmatpush1.msra.mxu0 0.0
          %2052 = vmatprep.subr.mxu0 0.0
          %2053 = vmatpush1.msra.mxu0 0.0
          %2054 = vmatprep.subr.mxu0 0.0
          %2055 = vmatpush1.msra.mxu0 0.0
          %2056 = vmatprep.subr.mxu0 0.0
          %2057 = vmatpush1.msra.mxu0 0.0
          %2058 = vmatprep.subr.mxu0 0.0
          %2059 = vmatpush1.msra.mxu0 0.0
          %2060 = vmatprep.subr.mxu0 %v2024
          %2061 = vmatpush1.msra.mxu0 %v2021
          %2062 = vmatprep.subr.mxu0 %v1995
          %2063 = vmatpush1.msra.mxu0 %v1994
          %2064 = vmatprep.subr.mxu0 0.0
          %2065 = vmatpush2.msra.mxu0 0.0
          %2066 = vmatprep.subr.mxu0 0.0
          %2067 = vmatpush2.msra.mxu0 0.0
          %2068 = vmatprep.subr.mxu0 0.0
          %2069 = vmatpush2.msra.mxu0 0.0
          %2070 = vmatprep.subr.mxu0 0.0
          %2071 = vmatpush2.msra.mxu0 0.0
          %2072 = vmatprep.subr.mxu0 0.0
          %2073 = vmatpush2.msra.mxu0 0.0
          %2074 = vmatprep.subr.mxu0 0.0
          %2075 = vmatpush2.msra.mxu0 0.0
          %2076 = vmatprep.subr.mxu0 0.0
          %2077 = vmatpush2.msra.mxu0 0.0
          %2078 = vmatprep.subr.mxu0 0.0
          %2079 = vmatpush2.msra.mxu0 0.0
          %2080 = vmatprep.subr.mxu0 0.0
          %2081 = vmatpush2.msra.mxu0 0.0
          %2082 = vmatprep.subr.mxu0 0.0
          %2083 = vmatpush2.msra.mxu0 0.0
          %2084 = vmatprep.subr.mxu0 0.0
          %2085 = vmatpush2.msra.mxu0 0.0
          %2086 = vmatprep.subr.mxu0 0.0
          %2087 = vmatpush2.msra.mxu0 0.0
          %2088 = vmatprep.subr.mxu0 0.0
          %2089 = vmatpush2.msra.mxu0 0.0
          %2090 = vmatprep.subr.mxu0 0.0
          %2091 = vmatpush2.msra.mxu0 0.0
          %2092 = vmatprep.subr.mxu0 0.0
          %2093 = vmatpush2.msra.mxu0 0.0
          %2094 = vmatprep.subr.mxu0 0.0
          %2095 = vmatpush2.msra.mxu0 0.0
          %2096 = vmatprep.mubr.f32.mxu0 0.0
          %2097 = vmatmul.mubr.f32.gmra.mxu0 %v2008
          %v2098 = vpop.f32.mrf.mxu0
          %v2099 = vadd.f32 0.0, %v2098
          %v2100 = vpop.f32.mrf.mxu0
          %v2101 = vadd.f32 0.0, %v2100
          %2102 = vmatprep.mubr.f32.mxu0 0.0
          %2103 = vmatmul.mubr.f32.gmra.mxu0 %v2011
          %v2104 = vpop.f32.mrf.mxu0
          %v2105 = vadd.f32 0.0, %v2104
          %v2106 = vpop.f32.mrf.mxu0
          %v2107 = vadd.f32 0.0, %v2106
          %2108 = vmatprep.mubr.f32.mxu0 0.0
          %2109 = vmatmul.mubr.f32.gmra.mxu0 %v2014
          %v2110 = vpop.f32.mrf.mxu0
          %v2111 = vadd.f32 0.0, %v2110
          %v2112 = vpop.f32.mrf.mxu0
          %v2113 = vadd.f32 0.0, %v2112
          %2114 = vmatprep.mubr.f32.mxu0 0.0
          %2115 = vmatmul.mubr.f32.gmra.mxu0 %v2017
          %v2116 = vpop.f32.mrf.mxu0
          %v2117 = vadd.f32 0.0, %v2116
          %v2118 = vpop.f32.mrf.mxu0
          %v2119 = vadd.f32 0.0, %v2118
          %2120 = vdwg.mxu0
          %2121 = vmatprep.subr.mxu0 0.0
          %2122 = vmatpush1.msra.mxu0 0.0
          %2123 = vmatprep.subr.mxu0 0.0
          %2124 = vmatpush1.msra.mxu0 0.0
          %2125 = vmatprep.subr.mxu0 0.0
          %2126 = vmatpush1.msra.mxu0 0.0
          %2127 = vmatprep.subr.mxu0 0.0
          %2128 = vmatpush1.msra.mxu0 0.0
          %2129 = vmatprep.subr.mxu0 0.0
          %2130 = vmatpush1.msra.mxu0 0.0
          %2131 = vmatprep.subr.mxu0 0.0
          %2132 = vmatpush1.msra.mxu0 0.0
          %2133 = vmatprep.subr.mxu0 0.0
          %2134 = vmatpush1.msra.mxu0 0.0
          %2135 = vmatprep.subr.mxu0 0.0
          %2136 = vmatpush1.msra.mxu0 0.0
          %2137 = vmatprep.subr.mxu0 0.0
          %2138 = vmatpush1.msra.mxu0 0.0
          %2139 = vmatprep.subr.mxu0 0.0
          %2140 = vmatpush1.msra.mxu0 0.0
          %2141 = vmatprep.subr.mxu0 0.0
          %2142 = vmatpush1.msra.mxu0 0.0
          %2143 = vmatprep.subr.mxu0 0.0
          %2144 = vmatpush1.msra.mxu0 0.0
          %2145 = vmatprep.subr.mxu0 0.0
          %2146 = vmatpush1.msra.mxu0 0.0
          %2147 = vmatprep.subr.mxu0 0.0
          %2148 = vmatpush1.msra.mxu0 0.0
          %2149 = vmatprep.subr.mxu0 %v2030
          %2150 = vmatpush1.msra.mxu0 %v2027
          %2151 = vmatprep.subr.mxu0 %v1997
          %2152 = vmatpush1.msra.mxu0 %v1996
          %2153 = vmatprep.subr.mxu0 0.0
          %2154 = vmatpush2.msra.mxu0 0.0
          %2155 = vmatprep.subr.mxu0 0.0
          %2156 = vmatpush2.msra.mxu0 0.0
          %2157 = vmatprep.subr.mxu0 0.0
          %2158 = vmatpush2.msra.mxu0 0.0
          %2159 = vmatprep.subr.mxu0 0.0
          %2160 = vmatpush2.msra.mxu0 0.0
          %2161 = vmatprep.subr.mxu0 0.0
          %2162 = vmatpush2.msra.mxu0 0.0
          %2163 = vmatprep.subr.mxu0 0.0
          %2164 = vmatpush2.msra.mxu0 0.0
          %2165 = vmatprep.subr.mxu0 0.0
          %2166 = vmatpush2.msra.mxu0 0.0
          %2167 = vmatprep.subr.mxu0 0.0
          %2168 = vmatpush2.msra.mxu0 0.0
          %2169 = vmatprep.subr.mxu0 0.0
          %2170 = vmatpush2.msra.mxu0 0.0
          %2171 = vmatprep.subr.mxu0 0.0
          %2172 = vmatpush2.msra.mxu0 0.0
          %2173 = vmatprep.subr.mxu0 0.0
          %2174 = vmatpush2.msra.mxu0 0.0
          %2175 = vmatprep.subr.mxu0 0.0
          %2176 = vmatpush2.msra.mxu0 0.0
          %2177 = vmatprep.subr.mxu0 0.0
          %2178 = vmatpush2.msra.mxu0 0.0
          %2179 = vmatprep.subr.mxu0 0.0
          %2180 = vmatpush2.msra.mxu0 0.0
          %2181 = vmatprep.subr.mxu0 0.0
          %2182 = vmatpush2.msra.mxu0 0.0
          %2183 = vmatprep.subr.mxu0 0.0
          %2184 = vmatpush2.msra.mxu0 0.0
          %2185 = vmatprep.mubr.f32.mxu0 0.0
          %2186 = vmatmul.mubr.f32.gmra.mxu0 %v2008
          %v2187 = vpop.f32.mrf.mxu0
          %v2188 = vadd.f32 0.0, %v2187
          %v2189 = vpop.f32.mrf.mxu0
          %v2190 = vadd.f32 0.0, %v2189
          %2191 = vmatprep.mubr.f32.mxu0 0.0
          %2192 = vmatmul.mubr.f32.gmra.mxu0 %v2011
          %v2193 = vpop.f32.mrf.mxu0
          %v2194 = vadd.f32 0.0, %v2193
          %v2195 = vpop.f32.mrf.mxu0
          %v2196 = vadd.f32 0.0, %v2195
          %2197 = vmatprep.mubr.f32.mxu0 0.0
          %2198 = vmatmul.mubr.f32.gmra.mxu0 %v2014
          %v2199 = vpop.f32.mrf.mxu0
          %v2200 = vadd.f32 0.0, %v2199
          %v2201 = vpop.f32.mrf.mxu0
          %v2202 = vadd.f32 0.0, %v2201
          %2203 = vmatprep.mubr.f32.mxu0 0.0
          %2204 = vmatmul.mubr.f32.gmra.mxu0 %v2017
          %v2205 = vpop.f32.mrf.mxu0
          %v2206 = vadd.f32 0.0, %v2205
          %v2207 = vpop.f32.mrf.mxu0
          %v2208 = vadd.f32 0.0, %v2207
          %2209 = vdwg.mxu0
          %v2210 = vld [vmem:[%s3] sm:$0xf]
          %v2211 = vld [vmem:[%s3 + $0x4] sm:$0xf]
          %v2212 = vld [vmem:[%s3 + $0x8] sm:$0xf]
          %v2213 = vld [vmem:[%s3 + $0xc] sm:$0xf]
          %v2214 = vld [vmem:[%s3 + $0x10] sm:$0xf]
          %v2215 = vld [vmem:[%s3 + $0x14] sm:$0xf]
          %v2216 = vld [vmem:[%s3 + $0x18] sm:$0xf]
          %v2217 = vld [vmem:[%s3 + $0x1c] sm:$0xf]
          %v2218 = vld [vmem:[%s3 + $0x20] sm:$0xf]
          %v2219 = vld [vmem:[%s8] sm:$0x7]
          %2221 = vset.pattern.permute.xlu0 0
          %2222 = vperm.xlu0 %2221, %v2219
          %v2223 = vpop.permute.xlu0 %2222
          %v2225 = vadd.f32 %v2223, 0.0
          %2230 = vrot.lane.b32.xlu0 %v2099, 17
          %v2231 = vpop.permute.xlu0 %2230
          %2232 = vrot.lane.b32.xlu0 %v2101, 17
          %v2233 = vpop.permute.xlu0 %2232
          %2234 = vrot.lane.b32.xlu0 %v2188, 17
          %v2235 = vpop.permute.xlu0 %2234
          %2236 = vrot.lane.b32.xlu0 %v2190, 17
          %v2237 = vpop.permute.xlu0 %2236
          %vm2238 = vcmask 138240
          %v2239 = vsel %vm2238, %v2231, %v2233
          %v2240 = vsel %vm2238, %v2233, %v2235
          %v2241 = vsel %vm2238, %v2235, %v2237
          %v2246 = vsel %vm2238, 0.0, %v2231
          %v2248 = vlaneseq
          %v2249 = vshrl.u32 %v2248, 7
          %v2250 = vsub.s32 0, %v2249
          %v2251 = vrot.slane %v2210, %v2250
          %v2252 = vlaneseq
          %v2253 = vshrl.u32 %v2252, 7
          %v2254 = vsub.s32 1, %v2253
          %v2255 = vrot.slane %v2210, %v2254
          %v2256 = vlaneseq
          %v2257 = vshrl.u32 %v2256, 7
          %v2258 = vsub.s32 2, %v2257
          %v2259 = vrot.slane %v2210, %v2258
          %v2260 = vlaneseq
          %v2261 = vshrl.u32 %v2260, 7
          %v2262 = vsub.s32 3, %v2261
          %v2263 = vrot.slane %v2210, %v2262
          %v2268 = vmul.f32 %v2246, %v2251
          %v2269 = vmul.f32 %v2239, %v2255
          %v2270 = vmul.f32 %v2240, %v2259
          %v2271 = vmul.f32 %v2241, %v2263
          %v2272 = vadd.f32 %v2225, %v2268
          %v2273 = vadd.f32 %v2225, %v2269
          %v2274 = vadd.f32 %v2225, %v2270
          %v2275 = vadd.f32 %v2225, %v2271
          %v2276 = vrot.slane %v2099, 3
          %v2277 = vrot.slane %v2101, 3
          %v2278 = vrot.slane %v2188, 3
          %v2279 = vrot.slane %v2190, 3
          %2280 = vrot.lane.b32.xlu0 %v2276, 16
          %v2281 = vpop.permute.xlu0 %2280
          %2282 = vrot.lane.b32.xlu0 %v2277, 16
          %v2283 = vpop.permute.xlu0 %2282
          %2284 = vrot.lane.b32.xlu0 %v2278, 16
          %v2285 = vpop.permute.xlu0 %2284
          %2286 = vrot.lane.b32.xlu0 %v2279, 16
          %v2287 = vpop.permute.xlu0 %2286
          %vm2288 = vcmask 130048
          %v2289 = vsel %vm2288, %v2281, %v2283
          %v2290 = vsel %vm2288, %v2283, %v2285
          %v2291 = vsel %vm2288, %v2285, %v2287
          %v2296 = vsel %vm2288, 0.0, %v2281
          %v2298 = vlaneseq
          %v2299 = vshrl.u32 %v2298, 7
          %v2300 = vsub.s32 0, %v2299
          %v2301 = vrot.slane %v2211, %v2300
          %v2302 = vlaneseq
          %v2303 = vshrl.u32 %v2302, 7
          %v2304 = vsub.s32 1, %v2303
          %v2305 = vrot.slane %v2211, %v2304
          %v2306 = vlaneseq
          %v2307 = vshrl.u32 %v2306, 7
          %v2308 = vsub.s32 2, %v2307
          %v2309 = vrot.slane %v2211, %v2308
          %v2310 = vlaneseq
          %v2311 = vshrl.u32 %v2310, 7
          %v2312 = vsub.s32 3, %v2311
          %v2313 = vrot.slane %v2211, %v2312
          %v2318 = vmul.f32 %v2296, %v2301
          %v2319 = vmul.f32 %v2289, %v2305
          %v2320 = vmul.f32 %v2290, %v2309
          %v2321 = vmul.f32 %v2291, %v2313
          %v2322 = vadd.f32 %v2272, %v2318
          %v2323 = vadd.f32 %v2273, %v2319
          %v2324 = vadd.f32 %v2274, %v2320
          %v2325 = vadd.f32 %v2275, %v2321
          %vm2330 = vcmask 1041408
          %v2331 = vrot.slane %v2099, 6
          %v2332 = vrot.slane %v2105, 6
          %v2333 = vsel %vm2330, %v2331, %v2332
          %v2334 = vrot.slane %v2101, 6
          %v2335 = vrot.slane %v2107, 6
          %v2336 = vsel %vm2330, %v2334, %v2335
          %v2337 = vrot.slane %v2188, 6
          %v2338 = vrot.slane %v2194, 6
          %v2339 = vsel %vm2330, %v2337, %v2338
          %v2340 = vrot.slane %v2190, 6
          %v2341 = vrot.slane %v2196, 6
          %v2342 = vsel %vm2330, %v2340, %v2341
          %2343 = vrot.lane.b32.xlu0 %v2333, 15
          %v2344 = vpop.permute.xlu0 %2343
          %2345 = vrot.lane.b32.xlu0 %v2336, 15
          %v2346 = vpop.permute.xlu0 %2345
          %2347 = vrot.lane.b32.xlu0 %v2339, 15
          %v2348 = vpop.permute.xlu0 %2347
          %2349 = vrot.lane.b32.xlu0 %v2342, 15
          %v2350 = vpop.permute.xlu0 %2349
          %vm2351 = vcmask 121856
          %v2352 = vsel %vm2351, %v2344, %v2346
          %v2353 = vsel %vm2351, %v2346, %v2348
          %v2354 = vsel %vm2351, %v2348, %v2350
          %v2359 = vsel %vm2351, 0.0, %v2344
          %v2361 = vlaneseq
          %v2362 = vshrl.u32 %v2361, 7
          %v2363 = vsub.s32 0, %v2362
          %v2364 = vrot.slane %v2212, %v2363
          %v2365 = vlaneseq
          %v2366 = vshrl.u32 %v2365, 7
          %v2367 = vsub.s32 1, %v2366
          %v2368 = vrot.slane %v2212, %v2367
          %v2369 = vlaneseq
          %v2370 = vshrl.u32 %v2369, 7
          %v2371 = vsub.s32 2, %v2370
          %v2372 = vrot.slane %v2212, %v2371
          %v2373 = vlaneseq
          %v2374 = vshrl.u32 %v2373, 7
          %v2375 = vsub.s32 3, %v2374
          %v2376 = vrot.slane %v2212, %v2375
          %v2381 = vmul.f32 %v2359, %v2364
          %v2382 = vmul.f32 %v2352, %v2368
          %v2383 = vmul.f32 %v2353, %v2372
          %v2384 = vmul.f32 %v2354, %v2376
          %v2385 = vadd.f32 %v2322, %v2381
          %v2386 = vadd.f32 %v2323, %v2382
          %v2387 = vadd.f32 %v2324, %v2383
          %v2388 = vadd.f32 %v2325, %v2384
          %v2389 = vrot.slane %v2105, 1
          %v2390 = vrot.slane %v2107, 1
          %v2391 = vrot.slane %v2194, 1
          %v2392 = vrot.slane %v2196, 1
          %2393 = vrot.lane.b32.xlu0 %v2389, 1
          %v2394 = vpop.permute.xlu0 %2393
          %2395 = vrot.lane.b32.xlu0 %v2390, 1
          %v2396 = vpop.permute.xlu0 %2395
          %2397 = vrot.lane.b32.xlu0 %v2391, 1
          %v2398 = vpop.permute.xlu0 %2397
          %2399 = vrot.lane.b32.xlu0 %v2392, 1
          %v2400 = vpop.permute.xlu0 %2399
          %vm2401 = vcmask 7168
          %v2402 = vsel %vm2401, %v2394, %v2396
          %v2403 = vsel %vm2401, %v2396, %v2398
          %v2404 = vsel %vm2401, %v2398, %v2400
          %v2409 = vsel %vm2401, 0.0, %v2394
          %v2411 = vlaneseq
          %v2412 = vshrl.u32 %v2411, 7
          %v2413 = vsub.s32 0, %v2412
          %v2414 = vrot.slane %v2213, %v2413
          %v2415 = vlaneseq
          %v2416 = vshrl.u32 %v2415, 7
          %v2417 = vsub.s32 1, %v2416
          %v2418 = vrot.slane %v2213, %v2417
          %v2419 = vlaneseq
          %v2420 = vshrl.u32 %v2419, 7
          %v2421 = vsub.s32 2, %v2420
          %v2422 = vrot.slane %v2213, %v2421
          %v2423 = vlaneseq
          %v2424 = vshrl.u32 %v2423, 7
          %v2425 = vsub.s32 3, %v2424
          %v2426 = vrot.slane %v2213, %v2425
          %v2431 = vmul.f32 %v2409, %v2414
          %v2432 = vmul.f32 %v2402, %v2418
          %v2433 = vmul.f32 %v2403, %v2422
          %v2434 = vmul.f32 %v2404, %v2426
          %v2435 = vadd.f32 %v2385, %v2431
          %v2436 = vadd.f32 %v2386, %v2432
          %v2437 = vadd.f32 %v2387, %v2433
          %v2438 = vadd.f32 %v2388, %v2434
          %v2440 = vlaneseq
          %v2441 = vshrl.u32 %v2440, 7
          %v2442 = vsub.s32 0, %v2441
          %v2443 = vrot.slane %v2214, %v2442
          %v2444 = vlaneseq
          %v2445 = vshrl.u32 %v2444, 7
          %v2446 = vsub.s32 1, %v2445
          %v2447 = vrot.slane %v2214, %v2446
          %v2448 = vlaneseq
          %v2449 = vshrl.u32 %v2448, 7
          %v2450 = vsub.s32 2, %v2449
          %v2451 = vrot.slane %v2214, %v2450
          %v2452 = vlaneseq
          %v2453 = vshrl.u32 %v2452, 7
          %v2454 = vsub.s32 3, %v2453
          %v2455 = vrot.slane %v2214, %v2454
          %v2460 = vmul.f32 %v2105, %v2443
          %v2461 = vmul.f32 %v2107, %v2447
          %v2462 = vmul.f32 %v2194, %v2451
          %v2463 = vmul.f32 %v2196, %v2455
          %v2468 = vrot.slane %v2460, 4
          %v2469 = vrot.slane %v2461, 4
          %v2470 = vrot.slane %v2462, 4
          %v2471 = vrot.slane %v2463, 4
          %v2476 = vadd.f32 %v2435, %v2468
          %v2477 = vadd.f32 %v2436, %v2469
          %v2478 = vadd.f32 %v2437, %v2470
          %v2479 = vadd.f32 %v2438, %v2471
          %2484 = vrot.lane.b32.xlu0 %v2105, 127
          %v2485 = vpop.permute.xlu0 %2484
          %2486 = vrot.lane.b32.xlu0 %v2107, 127
          %v2487 = vpop.permute.xlu0 %2486
          %2488 = vrot.lane.b32.xlu0 %v2194, 127
          %v2489 = vpop.permute.xlu0 %2488
          %2490 = vrot.lane.b32.xlu0 %v2196, 127
          %v2491 = vpop.permute.xlu0 %2490
          %2492 = vrot.lane.b32.xlu0 %v2111, 127
          %v2493 = vpop.permute.xlu0 %2492
          %2494 = vrot.lane.b32.xlu0 %v2113, 127
          %v2495 = vpop.permute.xlu0 %2494
          %2496 = vrot.lane.b32.xlu0 %v2200, 127
          %v2497 = vpop.permute.xlu0 %2496
          %2498 = vrot.lane.b32.xlu0 %v2202, 127
          %v2499 = vpop.permute.xlu0 %2498
          %vm2500 = vcmask 1039360
          %v2501 = vsel %vm2500, %v2485, %v2487
          %v2502 = vsel %vm2500, %v2487, %v2489
          %v2503 = vsel %vm2500, %v2489, %v2491
          %v2504 = vsel %vm2500, %v2493, %v2495
          %v2505 = vsel %vm2500, %v2495, %v2497
          %v2506 = vsel %vm2500, %v2497, %v2499
          %v2515 = vsel %vm2500, %v2491, 0.0
          %v2516 = vsel %vm2500, %v2499, 0.0
          %v2518 = vlaneseq
          %v2519 = vshrl.u32 %v2518, 7
          %v2520 = vsub.s32 0, %v2519
          %v2521 = vrot.slane %v2215, %v2520
          %v2522 = vlaneseq
          %v2523 = vshrl.u32 %v2522, 7
          %v2524 = vsub.s32 1, %v2523
          %v2525 = vrot.slane %v2215, %v2524
          %v2526 = vlaneseq
          %v2527 = vshrl.u32 %v2526, 7
          %v2528 = vsub.s32 2, %v2527
          %v2529 = vrot.slane %v2215, %v2528
          %v2530 = vlaneseq
          %v2531 = vshrl.u32 %v2530, 7
          %v2532 = vsub.s32 3, %v2531
          %v2533 = vrot.slane %v2215, %v2532
          %v2538 = vmul.f32 %v2501, %v2521
          %v2539 = vmul.f32 %v2502, %v2525
          %v2540 = vmul.f32 %v2503, %v2529
          %v2541 = vmul.f32 %v2515, %v2533
          %v2542 = vmul.f32 %v2504, %v2521
          %v2543 = vmul.f32 %v2505, %v2525
          %v2544 = vmul.f32 %v2506, %v2529
          %v2545 = vmul.f32 %v2516, %v2533
          %vm2554 = vcmask 1040384
          %v2555 = vrot.slane %v2538, 7
          %v2556 = vrot.slane %v2542, 7
          %v2557 = vsel %vm2554, %v2555, %v2556
          %v2558 = vrot.slane %v2539, 7
          %v2559 = vrot.slane %v2543, 7
          %v2560 = vsel %vm2554, %v2558, %v2559
          %v2561 = vrot.slane %v2540, 7
          %v2562 = vrot.slane %v2544, 7
          %v2563 = vsel %vm2554, %v2561, %v2562
          %v2564 = vrot.slane %v2541, 7
          %v2565 = vrot.slane %v2545, 7
          %v2566 = vsel %vm2554, %v2564, %v2565
          %v2571 = vadd.f32 %v2476, %v2557
          %v2572 = vadd.f32 %v2477, %v2560
          %v2573 = vadd.f32 %v2478, %v2563
          %v2574 = vadd.f32 %v2479, %v2566
          %2575 = vrot.lane.b32.xlu0 %v2111, 113
          %v2576 = vpop.permute.xlu0 %2575
          %2577 = vrot.lane.b32.xlu0 %v2113, 113
          %v2578 = vpop.permute.xlu0 %2577
          %2579 = vrot.lane.b32.xlu0 %v2200, 113
          %v2580 = vpop.permute.xlu0 %2579
          %2581 = vrot.lane.b32.xlu0 %v2202, 113
          %v2582 = vpop.permute.xlu0 %2581
          %vm2583 = vcmask 924672
          %v2584 = vsel %vm2583, %v2576, %v2578
          %v2585 = vsel %vm2583, %v2578, %v2580
          %v2586 = vsel %vm2583, %v2580, %v2582
          %v2591 = vsel %vm2583, %v2582, 0.0
          %v2593 = vlaneseq
          %v2594 = vshrl.u32 %v2593, 7
          %v2595 = vsub.s32 0, %v2594
          %v2596 = vrot.slane %v2216, %v2595
          %v2597 = vlaneseq
          %v2598 = vshrl.u32 %v2597, 7
          %v2599 = vsub.s32 1, %v2598
          %v2600 = vrot.slane %v2216, %v2599
          %v2601 = vlaneseq
          %v2602 = vshrl.u32 %v2601, 7
          %v2603 = vsub.s32 2, %v2602
          %v2604 = vrot.slane %v2216, %v2603
          %v2605 = vlaneseq
          %v2606 = vshrl.u32 %v2605, 7
          %v2607 = vsub.s32 3, %v2606
          %v2608 = vrot.slane %v2216, %v2607
          %v2613 = vmul.f32 %v2584, %v2596
          %v2614 = vmul.f32 %v2585, %v2600
          %v2615 = vmul.f32 %v2586, %v2604
          %v2616 = vmul.f32 %v2591, %v2608
          %v2621 = vrot.slane %v2613, 2
          %v2622 = vrot.slane %v2614, 2
          %v2623 = vrot.slane %v2615, 2
          %v2624 = vrot.slane %v2616, 2
          %v2629 = vadd.f32 %v2571, %v2621
          %v2630 = vadd.f32 %v2572, %v2622
          %v2631 = vadd.f32 %v2573, %v2623
          %v2632 = vadd.f32 %v2574, %v2624
          %2633 = vrot.lane.b32.xlu0 %v2111, 112
          %v2634 = vpop.permute.xlu0 %2633
          %2635 = vrot.lane.b32.xlu0 %v2113, 112
          %v2636 = vpop.permute.xlu0 %2635
          %2637 = vrot.lane.b32.xlu0 %v2200, 112
          %v2638 = vpop.permute.xlu0 %2637
          %2639 = vrot.lane.b32.xlu0 %v2202, 112
          %v2640 = vpop.permute.xlu0 %2639
          %vm2641 = vcmask 916480
          %v2642 = vsel %vm2641, %v2634, %v2636
          %v2643 = vsel %vm2641, %v2636, %v2638
          %v2644 = vsel %vm2641, %v2638, %v2640
          %v2649 = vsel %vm2641, %v2640, 0.0
          %v2651 = vlaneseq
          %v2652 = vshrl.u32 %v2651, 7
          %v2653 = vsub.s32 0, %v2652
          %v2654 = vrot.slane %v2217, %v2653
          %v2655 = vlaneseq
          %v2656 = vshrl.u32 %v2655, 7
          %v2657 = vsub.s32 1, %v2656
          %v2658 = vrot.slane %v2217, %v2657
          %v2659 = vlaneseq
          %v2660 = vshrl.u32 %v2659, 7
          %v2661 = vsub.s32 2, %v2660
          %v2662 = vrot.slane %v2217, %v2661
          %v2663 = vlaneseq
          %v2664 = vshrl.u32 %v2663, 7
          %v2665 = vsub.s32 3, %v2664
          %v2666 = vrot.slane %v2217, %v2665
          %v2671 = vmul.f32 %v2642, %v2654
          %v2672 = vmul.f32 %v2643, %v2658
          %v2673 = vmul.f32 %v2644, %v2662
          %v2674 = vmul.f32 %v2649, %v2666
          %v2679 = vrot.slane %v2671, 5
          %v2680 = vrot.slane %v2672, 5
          %v2681 = vrot.slane %v2673, 5
          %v2682 = vrot.slane %v2674, 5
          %v2687 = vadd.f32 %v2629, %v2679
          %v2688 = vadd.f32 %v2630, %v2680
          %v2689 = vadd.f32 %v2631, %v2681
          %v2690 = vadd.f32 %v2632, %v2682
          %2695 = vrot.lane.b32.xlu0 %v2117, 111
          %v2696 = vpop.permute.xlu0 %2695
          %2697 = vrot.lane.b32.xlu0 %v2119, 111
          %v2698 = vpop.permute.xlu0 %2697
          %2699 = vrot.lane.b32.xlu0 %v2206, 111
          %v2700 = vpop.permute.xlu0 %2699
          %2701 = vrot.lane.b32.xlu0 %v2208, 111
          %v2702 = vpop.permute.xlu0 %2701
          %vm2703 = vcmask 908288
          %v2704 = vsel %vm2703, %v2696, %v2698
          %v2705 = vsel %vm2703, %v2698, %v2700
          %v2706 = vsel %vm2703, %v2700, %v2702
          %v2711 = vsel %vm2703, %v2702, 0.0
          %v2713 = vlaneseq
          %v2714 = vshrl.u32 %v2713, 7
          %v2715 = vsub.s32 0, %v2714
          %v2716 = vrot.slane %v2218, %v2715
          %v2717 = vlaneseq
          %v2718 = vshrl.u32 %v2717, 7
          %v2719 = vsub.s32 1, %v2718
          %v2720 = vrot.slane %v2218, %v2719
          %v2721 = vlaneseq
          %v2722 = vshrl.u32 %v2721, 7
          %v2723 = vsub.s32 2, %v2722
          %v2724 = vrot.slane %v2218, %v2723
          %v2725 = vlaneseq
          %v2726 = vshrl.u32 %v2725, 7
          %v2727 = vsub.s32 3, %v2726
          %v2728 = vrot.slane %v2218, %v2727
          %v2733 = vmul.f32 %v2704, %v2716
          %v2734 = vmul.f32 %v2705, %v2720
          %v2735 = vmul.f32 %v2706, %v2724
          %v2736 = vmul.f32 %v2711, %v2728
          %v2737 = vadd.f32 %v2687, %v2733
          %v2738 = vadd.f32 %v2688, %v2734
          %v2739 = vadd.f32 %v2689, %v2735
          %v2740 = vadd.f32 %v2690, %v2736
          %v2741 = vld [vmem:[%s429] sm:$0x77]
          %v2742 = vld [vmem:[%s429 + $0x8] sm:$0x77]
          %v2743 = vld [vmem:[%s9] sm:$0x7]
          %2745 = vset.pattern.permute.xlu0 0
          %2746 = vperm.xlu0 %2745, %v2743
          %v2747 = vpop.permute.xlu0 %2746
          %v2749 = vunpack.c.l.s4 839922192
          %v2750 = vunpack.c.0.s8 %v2749
          %v2751 = vlaneseq
          %v2752 = vshrl.u32 %v2751, 7
          %v2753 = vsub.s32 %v2750, %v2752
          %v2754 = vrot.slane %v2747, %v2753
          %v2756 = vmul.f32 %v2741, %v2754
          %v2757 = vmul.f32 %v2742, %v2754
          %v2758 = vld [vmem:[%s10] sm:$0x7]
          %2760 = vset.pattern.permute.xlu0 0
          %2761 = vperm.xlu0 %2760, %v2758
          %v2762 = vpop.permute.xlu0 %2761
          %v2764 = vunpack.c.l.s4 839922192
          %v2765 = vunpack.c.0.s8 %v2764
          %v2766 = vlaneseq
          %v2767 = vshrl.u32 %v2766, 7
          %v2768 = vsub.s32 %v2765, %v2767
          %v2769 = vrot.slane %v2762, %v2768
          %v2771 = vadd.f32 %v2756, %v2769
          %v2772 = vadd.f32 %v2757, %v2769
          %v2773 = vmax.f32 %v2737, 0.0
          %v2774 = vmax.f32 %v2738, 0.0
          %v2775 = vmax.f32 %v2739, 0.0
          %v2776 = vmax.f32 %v2740, 0.0
          %v2777 = vand.u32 2147483647, %v2737
          %v2778 = vand.u32 2147483647, %v2738
          %v2779 = vand.u32 2147483647, %v2739
          %v2780 = vand.u32 2147483647, %v2740
          %v2781 = vsub.f32 0.0, %v2777
          %v2782 = vsub.f32 0.0, %v2778
          %v2783 = vsub.f32 0.0, %v2779
          %v2784 = vsub.f32 0.0, %v2780
          %v2785 = vmul.f32 %v2781, 1.442695
          %v2786 = vpow.pop %v2785
          %v2787 = vmul.f32 %v2782, 1.442695
          %v2788 = vpow.pop %v2787
          %v2789 = vmul.f32 %v2783, 1.442695
          %v2790 = vpow.pop %v2789
          %v2791 = vmul.f32 %v2784, 1.442695
          %v2792 = vpow.pop %v2791
          %v2793 = vadd.f32 %v2786, 1.0
          %v2794 = vadd.f32 %v2788, 1.0
          %v2795 = vadd.f32 %v2790, 1.0
          %v2796 = vadd.f32 %v2792, 1.0
          %v2797 = vlog2.pop %v2793
          %v2798 = vmul.f32 %v2797, 0.6931472
          %v2799 = vlog2.pop %v2794
          %v2800 = vmul.f32 %v2799, 0.6931472
          %v2801 = vlog2.pop %v2795
          %v2802 = vmul.f32 %v2801, 0.6931472
          %v2803 = vlog2.pop %v2796
          %v2804 = vmul.f32 %v2803, 0.6931472
          %v2805 = vadd.f32 %v2773, %v2798
          %v2806 = vadd.f32 %v2774, %v2800
          %v2807 = vadd.f32 %v2775, %v2802
          %v2808 = vadd.f32 %v2776, %v2804
          %v2809 = vsub.f32 %v2805, %v2737
          %v2810 = vsub.f32 %v2806, %v2738
          %v2811 = vsub.f32 %v2807, %v2739
          %v2812 = vsub.f32 %v2808, %v2740
          %v2813 = vmin.f32 %v2809, 100.0
          %v2814 = vmin.f32 %v2810, 100.0
          %v2815 = vmin.f32 %v2811, 100.0
          %v2816 = vmin.f32 %v2812, 100.0
          %v2821 = vcombine.low %v2813, %v2814
          %v2822 = vcombine.low %v2815, %v2816
          %v2825 = vmul.f32 %v2771, %v2821
          %v2826 = vmul.f32 %v2772, %v2822
          %v2827 = vsub.f32 1.0, %v2771
          %v2828 = vsub.f32 1.0, %v2772
          %v2829 = vmin.f32 %v2805, 100.0
          %v2830 = vmin.f32 %v2806, 100.0
          %v2831 = vmin.f32 %v2807, 100.0
          %v2832 = vmin.f32 %v2808, 100.0
          %v2837 = vcombine.low %v2829, %v2830
          %v2838 = vcombine.low %v2831, %v2832
          %v2841 = vmul.f32 %v2827, %v2837
          %v2842 = vmul.f32 %v2828, %v2838
          %v2843 = vadd.f32 %v2825, %v2841
          %v2844 = vadd.f32 %v2826, %v2842
          %v2845 = vld [vmem:[#allocation5] sm:$0x1]
          %v2848 = vcombine.high %v2843, %v2843
          %v2849 = vcombine.high %v2844, %v2844
          %vm2852 = vcmask 1042432
          %v2853 = vsel %vm2852, %v2843, 0.0
          %v2854 = vsel %vm2852, %v2848, 0.0
          %v2855 = vadd.f32 %v2853, %v2854
          %v2856 = vsel %vm2852, %v2844, 0.0
          %v2857 = vadd.f32 %v2855, %v2856
          %v2858 = vsel %vm2852, %v2849, 0.0
          %v2859 = vadd.f32 %v2857, %v2858
          %2860 = vadd.xlane.f32.xlu0 %v2859
          %v2861 = vpop.xlane.xlu0 %2860
          %v2862 = vrot.slane %v2861, 4
          %v2863 = vadd.f32 %v2861, %v2862
          %v2864 = vrot.slane %v2863, 2
          %v2865 = vadd.f32 %v2863, %v2864
          %v2866 = vrot.slane %v2865, 1
          %v2867 = vadd.f32 %v2865, %v2866
          %s2868 = vtos %v2867
          %v2869 = vstv %s2868
          %v2870 = vadd.f32 %v2845, %v2869
          %vm2871 = vcmask 0
          %2872 = vst.msk [vmem:[#allocation5] sm:$0x1] %vm2871, %v2870
          // Predicated region
          $region77: #{mi_estimator_forward.6} parent=75 // pred_check
            %p2873 = pneg %p432
          $region78: #{mi_estimator_forward.6} parent=75 // pred_check_branch
            %2875 = sbr.rel (%p2873) target = $region80
          $region79: #{mi_estimator_forward.6} parent=75 // pred_region
            %v2876 = vld [vmem:[#allocation5] sm:$0x1]
            %v2877 = vmul.f32 %v2876, 0.0006510417
            %2878 = vst.msk [vmem:[#allocation6] sm:$0x1] %vm2871, %v2877
          $region80: #{mi_estimator_forward.6} parent=75 // pred_fallthru
            _
        $region76: #{mi_estimator_forward.6} parent=63 // pred_fallthru
          _
        // Predicated region
        $region81: #{mi_estimator_forward.6} parent=63 // pred_check
          %p2879 = pneg %p295
        $region82: #{mi_estimator_forward.6} parent=63 // pred_check_branch
          %2881 = sbr.rel (%p2879) target = $region84
        $region83: #{mi_estimator_forward.6} parent=63 // pred_region
          %s2883 = ssub.s32 16, 16
          %2884 = vsyncadd [#allocation7], %s2883
          %s2886 = sshll.u32 [#allocation6], 4
          %s2887 = int_to_ptr.vmem [resolvable:$true] %s2886
          %2889 = dma.vmem_to_hbm [thread:$0]  %s2887, 16, %s11, [#allocation7]
        $region84: #{mi_estimator_forward.6} parent=63 // pred_fallthru
          _
        // Predicated region
        $region85: #{mi_estimator_forward.6} parent=63 // pred_check
          %p2890 = pneg %p295
        $region86: #{mi_estimator_forward.6} parent=63 // pred_check_branch
          %2892 = sbr.rel (%p2890) target = $region88
        $region87: #{mi_estimator_forward.6} parent=63 // pred_region
          %2893 = dma.done [#allocation7], 16
        $region88: #{mi_estimator_forward.6} parent=63 // pred_fallthru
          _
      $region64: #{mi_estimator_forward.6} parent=5 // pred_fallthru
        _
      %p2894 = scmp.le.s32.totalorder 2, %s18
      // Predicated region
      $region89: #{mi_estimator_forward.6} parent=5 // pred_check
        %p2895 = pneg %p2894
      $region90: #{mi_estimator_forward.6} parent=5 // pred_check_branch
        %2897 = sbr.rel (%p2895) target = $region92
      $region91: #{mi_estimator_forward.6} parent=5 // pred_region
        %s2898 = ssub.s32 %s18, 2
      $region92: #{mi_estimator_forward.6} parent=5 // pred_fallthru
        _
    $region6: #{mi_estimator_forward.6} parent=1 // loop_footer
      %s22 = sadd.s32 1, %s18
    $region7: #{mi_estimator_forward.6} parent=1 // loop_footer_branch
      %17 = sbr.rel target = $region3
    $region8: #{mi_estimator_forward.6} parent=1 // loop_exit
      _
    %2899 = vsyncpa [#allocation7], 1
    %s2900 = scalar_lea.sflag [#allocation7], 1
    %2901 = vsyncpa %s2900, 1

</llo_original>
